<compile_context>
chip_gen: v7x
topology: tpu7x:2x2x1
jax: 0.10.0
libtpu: 0.0.40
codegen_flags: <defaults>
</compile_context>

<pallas_src>
import jax
import jax.numpy as jnp
from jax.experimental import pallas as pl
from jax.experimental.pallas import tpu as pltpu

IN_DIM = 3200
HID = 512
OUT_DIM = 2
OUT_PAD = 128          # lane-dense padded output width


def _disc_kernel(x_ref, w1_ref, b1_ref, w2_ref, b2_ref, w3_ref, b3_ref, o_ref):
    # f32 -> bf16 convert folded into the kernel (no separate XLA HBM pass).
    x = x_ref[...].astype(jnp.bfloat16)
    # Layer 1: (tb, 3200) @ (3200, 512) + b1, ReLU   (bf16 MXU, f32 accum)
    h1 = jnp.dot(x, w1_ref[...], preferred_element_type=jnp.float32)
    h1 = jnp.maximum(h1 + b1_ref[...], 0.0).astype(jnp.bfloat16)
    # Layer 2: (tb, 512) @ (512, 512) + b2, ReLU
    h2 = jnp.dot(h1, w2_ref[...], preferred_element_type=jnp.float32)
    h2 = jnp.maximum(h2 + b2_ref[...], 0.0).astype(jnp.bfloat16)
    # Layer 3: (tb, 512) @ (512, 128) + b3   (cols 2..127 of w3/b3 are zero pad)
    o = jnp.dot(h2, w3_ref[...], preferred_element_type=jnp.float32)
    o_ref[...] = (o + b3_ref[...]).astype(o_ref.dtype)   # bf16 lane-dense store


def adda_discriminator_forward(img, params, tile_b=512):
    """img: (B, C, H, W) with C*H*W == 3200. Returns (B, 2) f32 logits."""
    w1, b1, w2, b2, w3p, b3p = params
    B = img.shape[0]
    x = img.reshape(B, -1)                      # stays f32; no extra HBM pass
    assert x.shape[1] == IN_DIM, f"expected flattened dim {IN_DIM}, got {x.shape[1]}"
    assert tile_b % 128 == 0, "tile_b must be a multiple of 128 (prefer 256/512)"

    # Batch tiling: small B -> single full-array block; otherwise tile the grid
    # over batch and let Pallas mask the ragged last block (no jnp.pad copy).
    tb = B if B <= tile_b else tile_b
    grid = (pl.cdiv(B, tb),)

    def resident(shape):
        # Constant-index block: DMA'd once, reused every step -> 1 buffer.
        return pl.BlockSpec(shape, lambda i: (0, 0), pipeline_mode=pl.Buffered(1))

    # VMEM budget: x (f32, 2 bufs) + in-kernel bf16 x copy + weights (bf16, 1
    # buf) + biases + f32 intermediates + out (bf16, 2 bufs); 1.5x slack,
    # capped at 48 MiB so it never squeezes v7x (64 MiB/TC).
    footprint = (2 * tb * IN_DIM * 4
                 + tb * IN_DIM * 2
                 + (IN_DIM * HID + HID * HID + HID * OUT_PAD) * 2
                 + (2 * HID + OUT_PAD) * 4
                 + 2 * tb * HID * 4
                 + tb * OUT_PAD * 4
                 + 2 * tb * OUT_PAD * 2)
    vmem_limit = max(24 << 20, min(int(footprint * 1.5), 48 << 20))

    out = pl.pallas_call(
        _disc_kernel,
        out_shape=jax.ShapeDtypeStruct((B, OUT_PAD), jnp.bfloat16),
        grid=grid,
        in_specs=[
            pl.BlockSpec((tb, IN_DIM), lambda i: (i, 0)),   # x  (tiled over batch)
            resident((IN_DIM, HID)),                        # w1 (bf16, resident)
            resident((1, HID)),                             # b1 (f32)
            resident((HID, HID)),                           # w2
            resident((1, HID)),                             # b2
            resident((HID, OUT_PAD)),                       # w3 (padded to 128)
            resident((1, OUT_PAD)),                         # b3 (padded to 128)
        ],
        out_specs=pl.BlockSpec((tb, OUT_PAD), lambda i: (i, 0)),
        compiler_params=pltpu.CompilerParams(
            dimension_semantics=("parallel",),
            vmem_limit_bytes=vmem_limit,
        ),
    )(x, w1, b1, w2, b2, w3p, b3p)
    return out[:, :OUT_DIM].astype(jnp.float32)


def init_params(key):
    """Deterministic synthetic parameters matching the module's shapes.

    Weights stored as (in, out) in bf16; biases (1, out) in f32.
    w3/b3 are zero-padded from 2 to 128 output lanes.
    """
    k1, k2, k3, k4, k5, k6 = jax.random.split(key, 6)
    w1 = (jax.random.normal(k1, (IN_DIM, HID), jnp.float32)
          * (1.0 / jnp.sqrt(IN_DIM))).astype(jnp.bfloat16)
    b1 = jax.random.normal(k2, (1, HID), jnp.float32) * 0.01
    w2 = (jax.random.normal(k3, (HID, HID), jnp.float32)
          * (1.0 / jnp.sqrt(HID))).astype(jnp.bfloat16)
    b2 = jax.random.normal(k4, (1, HID), jnp.float32) * 0.01
    w3 = (jax.random.normal(k5, (HID, OUT_DIM), jnp.float32)
          * (1.0 / jnp.sqrt(HID))).astype(jnp.bfloat16)
    b3 = jax.random.normal(k6, (1, OUT_DIM), jnp.float32) * 0.01
    w3p = jnp.zeros((HID, OUT_PAD), jnp.bfloat16).at[:, :OUT_DIM].set(w3)
    b3p = jnp.zeros((1, OUT_PAD), jnp.float32).at[:, :OUT_DIM].set(b3)
    return (w1, b1, w2, b2, w3p, b3p)


def _reference_forward(img, params):
    """Pure-JAX reference: f32 math on the (bf16-quantized) params."""
    w1, b1, w2, b2, w3p, b3p = params
    x = img.reshape(img.shape[0], -1).astype(jnp.bfloat16).astype(jnp.float32)
    h1 = jnp.maximum(x @ w1.astype(jnp.float32) + b1, 0.0)
    h2 = jnp.maximum(h1 @ w2.astype(jnp.float32) + b2, 0.0)
    o = h2 @ w3p.astype(jnp.float32) + b3p
    return o[:, :OUT_DIM]


if __name__ == "__main__":
    key = jax.random.PRNGKey(0)
    pkey, xkey, xkey2 = jax.random.split(key, 3)
    params = init_params(pkey)

    fwd = jax.jit(adda_discriminator_forward, static_argnames=("tile_b",))

    # Small NCHW input whose flattened feature dim is 3200: 8 * 20 * 20 = 3200.
    img = jax.random.normal(xkey, (2, 8, 20, 20), jnp.float32)
    out = jax.block_until_ready(fwd(img, params))
    ref = _reference_forward(img, params)
    assert out.shape == (2, OUT_DIM)
    assert jnp.allclose(out, ref, atol=5e-2, rtol=5e-2), "single-tile mismatch"

    # Batch-tiled path: grid > 1 with a ragged (masked) last block, no padding.
    img2 = jax.random.normal(xkey2, (200, 8, 20, 20), jnp.float32)
    out2 = jax.block_until_ready(fwd(img2, params, tile_b=128))
    ref2 = _reference_forward(img2, params)
    assert out2.shape == (200, OUT_DIM)
    assert jnp.allclose(out2, ref2, atol=5e-2, rtol=5e-2), "tiled-path mismatch"

    print("KERNEL_OK")
</pallas_src>

<mosaic_0001>
module attributes {stable_mosaic.version = 11 : i64} {
  func.func @_disc_kernel(%arg0: i32, %arg1: memref<2x3200xf32, #tpu.memory_space<vmem>>, %arg2: memref<3200x512xbf16, #tpu.memory_space<vmem>>, %arg3: memref<1x512xf32, #tpu.memory_space<vmem>>, %arg4: memref<512x512xbf16, #tpu.memory_space<vmem>>, %arg5: memref<1x512xf32, #tpu.memory_space<vmem>>, %arg6: memref<512x128xbf16, #tpu.memory_space<vmem>>, %arg7: memref<1x128xf32, #tpu.memory_space<vmem>>, %arg8: memref<2x128xbf16, #tpu.memory_space<vmem>>) attributes {dimension_semantics = [#tpu.dimension_semantics<parallel>], iteration_bounds = array<i64: 1>, scalar_prefetch = 0 : i64, scratch_operands = 0 : i64, tpu.core_type = #tpu.core_type<tc>, window_params = [{transform_indices = @transform_0, window_bounds = array<i64: 2, 3200>}, {pipeline_mode = #tpu.pipeline_mode<synchronous>, transform_indices = @transform_1, window_bounds = array<i64: 3200, 512>}, {pipeline_mode = #tpu.pipeline_mode<synchronous>, transform_indices = @transform_2, window_bounds = array<i64: 1, 512>}, {pipeline_mode = #tpu.pipeline_mode<synchronous>, transform_indices = @transform_3, window_bounds = array<i64: 512, 512>}, {pipeline_mode = #tpu.pipeline_mode<synchronous>, transform_indices = @transform_4, window_bounds = array<i64: 1, 512>}, {pipeline_mode = #tpu.pipeline_mode<synchronous>, transform_indices = @transform_5, window_bounds = array<i64: 512, 128>}, {pipeline_mode = #tpu.pipeline_mode<synchronous>, transform_indices = @transform_6, window_bounds = array<i64: 1, 128>}, {transform_indices = @transform_7, window_bounds = array<i64: 2, 128>}]} {
    %c0 = arith.constant 0 : index
    %c0_0 = arith.constant 0 : index
    %0 = vector.load %arg1[%c0, %c0_0] : memref<2x3200xf32, #tpu.memory_space<vmem>>, vector<2x3200xf32>
    %1 = arith.truncf %0 : vector<2x3200xf32> to vector<2x3200xbf16>
    %c0_1 = arith.constant 0 : index
    %c0_2 = arith.constant 0 : index
    %2 = vector.load %arg2[%c0_1, %c0_2] : memref<3200x512xbf16, #tpu.memory_space<vmem>>, vector<3200x512xbf16>
    %cst = arith.constant dense<0.000000e+00> : vector<2x512xf32>
    %3 = tpu.matmul %1, %2, %cst {dimension_numbers = #tpu.dot_dimension_numbers<[1], [0], [0], [1], [0, 0, 1, 1], [], []>} : vector<2x3200xbf16>, vector<3200x512xbf16>, vector<2x512xf32> -> vector<2x512xf32>
    %c0_3 = arith.constant 0 : index
    %c0_4 = arith.constant 0 : index
    %4 = vector.load %arg3[%c0_3, %c0_4] : memref<1x512xf32, #tpu.memory_space<vmem>>, vector<1x512xf32>
    %5 = vector.broadcast %4 : vector<1x512xf32> to vector<2x512xf32>
    %6 = arith.addf %3, %5 : vector<2x512xf32>
    %cst_5 = arith.constant 0.000000e+00 : f32
    %7 = vector.broadcast %cst_5 : f32 to vector<2x512xf32>
    %8 = arith.maximumf %6, %7 : vector<2x512xf32>
    %9 = arith.truncf %8 : vector<2x512xf32> to vector<2x512xbf16>
    %c0_6 = arith.constant 0 : index
    %c0_7 = arith.constant 0 : index
    %10 = vector.load %arg4[%c0_6, %c0_7] : memref<512x512xbf16, #tpu.memory_space<vmem>>, vector<512x512xbf16>
    %cst_8 = arith.constant dense<0.000000e+00> : vector<2x512xf32>
    %11 = tpu.matmul %9, %10, %cst_8 {dimension_numbers = #tpu.dot_dimension_numbers<[1], [0], [0], [1], [0, 0, 1, 1], [], []>} : vector<2x512xbf16>, vector<512x512xbf16>, vector<2x512xf32> -> vector<2x512xf32>
    %c0_9 = arith.constant 0 : index
    %c0_10 = arith.constant 0 : index
    %12 = vector.load %arg5[%c0_9, %c0_10] : memref<1x512xf32, #tpu.memory_space<vmem>>, vector<1x512xf32>
    %13 = vector.broadcast %12 : vector<1x512xf32> to vector<2x512xf32>
    %14 = arith.addf %11, %13 : vector<2x512xf32>
    %cst_11 = arith.constant 0.000000e+00 : f32
    %15 = vector.broadcast %cst_11 : f32 to vector<2x512xf32>
    %16 = arith.maximumf %14, %15 : vector<2x512xf32>
    %17 = arith.truncf %16 : vector<2x512xf32> to vector<2x512xbf16>
    %c0_12 = arith.constant 0 : index
    %c0_13 = arith.constant 0 : index
    %18 = vector.load %arg6[%c0_12, %c0_13] : memref<512x128xbf16, #tpu.memory_space<vmem>>, vector<512x128xbf16>
    %cst_14 = arith.constant dense<0.000000e+00> : vector<2x128xf32>
    %19 = tpu.matmul %17, %18, %cst_14 {dimension_numbers = #tpu.dot_dimension_numbers<[1], [0], [0], [1], [0, 0, 1, 1], [], []>} : vector<2x512xbf16>, vector<512x128xbf16>, vector<2x128xf32> -> vector<2x128xf32>
    %c0_15 = arith.constant 0 : index
    %c0_16 = arith.constant 0 : index
    %20 = vector.load %arg7[%c0_15, %c0_16] : memref<1x128xf32, #tpu.memory_space<vmem>>, vector<1x128xf32>
    %21 = vector.broadcast %20 : vector<1x128xf32> to vector<2x128xf32>
    %22 = arith.addf %19, %21 : vector<2x128xf32>
    %23 = arith.truncf %22 : vector<2x128xf32> to vector<2x128xbf16>
    %c0_17 = arith.constant 0 : index
    %c0_18 = arith.constant 0 : index
    %24 = vector.load %arg8[%c0_17, %c0_18] : memref<2x128xbf16, #tpu.memory_space<vmem>>, vector<2x128xbf16>
    tpu.vector_store %arg8[%c0_17, %c0_18], %23 {strides = array<i32>} : memref<2x128xbf16, #tpu.memory_space<vmem>>, vector<2x128xbf16>,
    return
  }
  func.func @transform_0(%arg0: i32) -> (i32, i32) {
    %c0_i32 = arith.constant 0 : i32
    %c0_i32_0 = arith.constant 0 : i32
    return %arg0, %c0_i32 : i32, i32
  }
  func.func @transform_1(%arg0: i32) -> (i32, i32) {
    %c0_i32 = arith.constant 0 : i32
    %c0_i32_0 = arith.constant 0 : i32
    %c0_i32_1 = arith.constant 0 : i32
    return %c0_i32, %c0_i32_0 : i32, i32
  }
  func.func @transform_2(%arg0: i32) -> (i32, i32) {
    %c0_i32 = arith.constant 0 : i32
    %c0_i32_0 = arith.constant 0 : i32
    %c0_i32_1 = arith.constant 0 : i32
    return %c0_i32, %c0_i32_0 : i32, i32
  }
  func.func @transform_3(%arg0: i32) -> (i32, i32) {
    %c0_i32 = arith.constant 0 : i32
    %c0_i32_0 = arith.constant 0 : i32
    %c0_i32_1 = arith.constant 0 : i32
    return %c0_i32, %c0_i32_0 : i32, i32
  }
  func.func @transform_4(%arg0: i32) -> (i32, i32) {
    %c0_i32 = arith.constant 0 : i32
    %c0_i32_0 = arith.constant 0 : i32
    %c0_i32_1 = arith.constant 0 : i32
    return %c0_i32, %c0_i32_0 : i32, i32
  }
  func.func @transform_5(%arg0: i32) -> (i32, i32) {
    %c0_i32 = arith.constant 0 : i32
    %c0_i32_0 = arith.constant 0 : i32
    %c0_i32_1 = arith.constant 0 : i32
    return %c0_i32, %c0_i32_0 : i32, i32
  }
  func.func @transform_6(%arg0: i32) -> (i32, i32) {
    %c0_i32 = arith.constant 0 : i32
    %c0_i32_0 = arith.constant 0 : i32
    %c0_i32_1 = arith.constant 0 : i32
    return %c0_i32, %c0_i32_0 : i32, i32
  }
  func.func @transform_7(%arg0: i32) -> (i32, i32) {
    %c0_i32 = arith.constant 0 : i32
    %c0_i32_0 = arith.constant 0 : i32
    return %arg0, %c0_i32 : i32, i32
  }
}

</mosaic_0001>

<llo_original>
// kernel: adda_discriminator_forward.1
$region0: #{adda_discriminator_forward.1}
  #allocation0 [shape = 'u32[]', space=smem, size = 0x4, offset = 0x4, fixed_abs, tag = 'smem constant byte address 0x4 - core index']
  #allocation1 [shape = 'u32[144,128]{1,0:T(1,128)}', space=vmem, size = 0x12000, scoped, tag = 'internal scratch']
  %s0 = inlined_call_operand.vmem [shape: f32[2,3200], index: 0, kind: input, shape index: {}]
  %s1 = inlined_call_operand.hbm [shape: bf16[3200,512], index: 1, kind: input, shape index: {}]
  %s2 = inlined_call_operand.hbm [shape: f32[1,512], index: 2, kind: input, shape index: {}]
  %s3 = inlined_call_operand.hbm [shape: bf16[512,512], index: 3, kind: input, shape index: {}]
  %s4 = inlined_call_operand.hbm [shape: f32[1,512], index: 4, kind: input, shape index: {}]
  %s5 = inlined_call_operand.hbm [shape: bf16[512,128], index: 5, kind: input, shape index: {}]
  %s6 = inlined_call_operand.hbm [shape: f32[1,128], index: 6, kind: input, shape index: {}]
  %s7 = inlined_call_operand.vmem [shape: bf16[2,128], index: 7, kind: output, shape index: {}]
  %s8 = sld [smem:[#allocation0]]
  $region62: #{adda_discriminator_forward.1} parent=0
    _
  %s10 = ssub.s32 1, %s8
  %s11 = scalar_select 0, %s10, %s8
  $region1: #{adda_discriminator_forward.1} parent=0
    #allocation2 [shape = 'u8[3276800]{0}', space=vmem, size = 0x320000, scoped, tag = 'input window, operand 1, single buffered']
    #allocation3 [shape = 's32[1]{0}', space=sflag, size = 0x4, scoped, tag = 'scoped memory for adda_discriminator_forward.1']
    #allocation4 [shape = 'u8[2048]{0}', space=vmem, size = 0x800, scoped, tag = 'input window, operand 2, single buffered']
    #allocation5 [shape = 's32[1]{0}', space=sflag, size = 0x4, scoped, tag = 'scoped memory for adda_discriminator_forward.1']
    #allocation6 [shape = 'u8[524288]{0}', space=vmem, size = 0x80000, scoped, tag = 'input window, operand 3, single buffered']
    #allocation7 [shape = 'u8[2048]{0}', space=vmem, size = 0x800, scoped, tag = 'input window, operand 4, single buffered']
    #allocation8 [shape = 's32[1]{0}', space=sflag, size = 0x4, scoped, tag = 'scoped memory for adda_discriminator_forward.1']
    #allocation9 [shape = 'u8[131072]{0}', space=vmem, size = 0x20000, scoped, tag = 'input window, operand 5, single buffered']
    #allocation10 [shape = 'u8[512]{0}', space=vmem, size = 0x400, scoped, tag = 'input window, operand 6, single buffered']
    #allocation11 [shape = 's32[1]{0}', space=sflag, size = 0x4, scoped, tag = 'scoped memory for adda_discriminator_forward.1']
    %12 = vsyncpa [#allocation3], 0
    %13 = vsyncpa [#allocation5], 0
    %14 = vsyncpa [#allocation8], 0
    %15 = vsyncpa [#allocation11], 0
    // Predicated region
    $region2: #{adda_discriminator_forward.1} parent=1 // pred_check
      _
    $region3: #{adda_discriminator_forward.1} parent=1 // pred_check_branch
      %17 = sbr.rel (0) target = $region5
    $region4: #{adda_discriminator_forward.1} parent=1 // pred_region
      _
    $region5: #{adda_discriminator_forward.1} parent=1 // pred_fallthru
      _
    // Predicated region
    $region6: #{adda_discriminator_forward.1} parent=1 // pred_check
      _
    $region7: #{adda_discriminator_forward.1} parent=1 // pred_check_branch
      %19 = sbr.rel (0) target = $region9
    $region8: #{adda_discriminator_forward.1} parent=1 // pred_region
      %s21 = ssub.s32 102400, 102400
      %22 = vsyncadd [#allocation3], %s21
      %s23 = sshll.u32 [#allocation2], 4
      %s24 = int_to_ptr.vmem [resolvable:$true] %s23
      %29 = dma.hbm_to_vmem [thread:$0]  %s1, 102400, %s24, [#allocation3], 256, 256, 16
    $region9: #{adda_discriminator_forward.1} parent=1 // pred_fallthru
      _
    // Predicated region
    $region10: #{adda_discriminator_forward.1} parent=1 // pred_check
      _
    $region11: #{adda_discriminator_forward.1} parent=1 // pred_check_branch
      %31 = sbr.rel (0) target = $region13
    $region12: #{adda_discriminator_forward.1} parent=1 // pred_region
      %s33 = ssub.s32 64, 64
      %34 = vsyncadd [#allocation5], %s33
      %s36 = sshll.u32 [#allocation4], 4
      %s37 = int_to_ptr.vmem [resolvable:$true] %s36
      %39 = dma.hbm_to_vmem [thread:$0]  %s2, 64, %s37, [#allocation5]
    $region13: #{adda_discriminator_forward.1} parent=1 // pred_fallthru
      _
    // Predicated region
    $region14: #{adda_discriminator_forward.1} parent=1 // pred_check
      _
    $region15: #{adda_discriminator_forward.1} parent=1 // pred_check_branch
      %41 = sbr.rel (0) target = $region17
    $region16: #{adda_discriminator_forward.1} parent=1 // pred_region
      %s43 = ssub.s32 16384, 16384
      %44 = vsyncadd [#allocation5], %s43
      %s45 = sshll.u32 [#allocation6], 4
      %s46 = int_to_ptr.vmem [resolvable:$true] %s45
      %51 = dma.hbm_to_vmem [thread:$0]  %s3, 16384, %s46, [#allocation5], 256, 256, 16
    $region17: #{adda_discriminator_forward.1} parent=1 // pred_fallthru
      _
    // Predicated region
    $region18: #{adda_discriminator_forward.1} parent=1 // pred_check
      _
    $region19: #{adda_discriminator_forward.1} parent=1 // pred_check_branch
      %53 = sbr.rel (0) target = $region21
    $region20: #{adda_discriminator_forward.1} parent=1 // pred_region
      %s55 = ssub.s32 64, 64
      %56 = vsyncadd [#allocation8], %s55
      %s58 = sshll.u32 [#allocation7], 4
      %s59 = int_to_ptr.vmem [resolvable:$true] %s58
      %61 = dma.hbm_to_vmem [thread:$0]  %s4, 64, %s59, [#allocation8]
    $region21: #{adda_discriminator_forward.1} parent=1 // pred_fallthru
      _
    // Predicated region
    $region22: #{adda_discriminator_forward.1} parent=1 // pred_check
      _
    $region23: #{adda_discriminator_forward.1} parent=1 // pred_check_branch
      %63 = sbr.rel (0) target = $region25
    $region24: #{adda_discriminator_forward.1} parent=1 // pred_region
      %s65 = ssub.s32 4096, 4096
      %66 = vsyncadd [#allocation8], %s65
      %s67 = sshll.u32 [#allocation9], 4
      %s68 = int_to_ptr.vmem [resolvable:$true] %s67
      %73 = dma.hbm_to_vmem [thread:$0]  %s5, 4096, %s68, [#allocation8], 64, 64, 4
    $region25: #{adda_discriminator_forward.1} parent=1 // pred_fallthru
      _
    // Predicated region
    $region26: #{adda_discriminator_forward.1} parent=1 // pred_check
      _
    $region27: #{adda_discriminator_forward.1} parent=1 // pred_check_branch
      %75 = sbr.rel (0) target = $region29
    $region28: #{adda_discriminator_forward.1} parent=1 // pred_region
      %s77 = ssub.s32 16, 16
      %78 = vsyncadd [#allocation11], %s77
      %s80 = sshll.u32 [#allocation10], 4
      %s81 = int_to_ptr.vmem [resolvable:$true] %s80
      %83 = dma.hbm_to_vmem [thread:$0]  %s6, 16, %s81, [#allocation11]
    $region29: #{adda_discriminator_forward.1} parent=1 // pred_fallthru
      _
    // Predicated region
    $region30: #{adda_discriminator_forward.1} parent=1 // pred_check
      _
    $region31: #{adda_discriminator_forward.1} parent=1 // pred_check_branch
      %85 = sbr.rel (0) target = $region33
    $region32: #{adda_discriminator_forward.1} parent=1 // pred_region
      %86 = dma.done [#allocation3], 102400
    $region33: #{adda_discriminator_forward.1} parent=1 // pred_fallthru
      _
    // Predicated region
    $region34: #{adda_discriminator_forward.1} parent=1 // pred_check
      _
    $region35: #{adda_discriminator_forward.1} parent=1 // pred_check_branch
      %88 = sbr.rel (0) target = $region37
    $region36: #{adda_discriminator_forward.1} parent=1 // pred_region
      %89 = dma.done [#allocation5], 64
    $region37: #{adda_discriminator_forward.1} parent=1 // pred_fallthru
      _
    // Predicated region
    $region38: #{adda_discriminator_forward.1} parent=1 // pred_check
      _
    $region39: #{adda_discriminator_forward.1} parent=1 // pred_check_branch
      %91 = sbr.rel (0) target = $region41
    $region40: #{adda_discriminator_forward.1} parent=1 // pred_region
      %92 = dma.done [#allocation5], 16384
    $region41: #{adda_discriminator_forward.1} parent=1 // pred_fallthru
      _
    // Predicated region
    $region42: #{adda_discriminator_forward.1} parent=1 // pred_check
      _
    $region43: #{adda_discriminator_forward.1} parent=1 // pred_check_branch
      %94 = sbr.rel (0) target = $region45
    $region44: #{adda_discriminator_forward.1} parent=1 // pred_region
      %95 = dma.done [#allocation8], 64
    $region45: #{adda_discriminator_forward.1} parent=1 // pred_fallthru
      _
    // Predicated region
    $region46: #{adda_discriminator_forward.1} parent=1 // pred_check
      _
    $region47: #{adda_discriminator_forward.1} parent=1 // pred_check_branch
      %97 = sbr.rel (0) target = $region49
    $region48: #{adda_discriminator_forward.1} parent=1 // pred_region
      %98 = dma.done [#allocation8], 4096
    $region49: #{adda_discriminator_forward.1} parent=1 // pred_fallthru
      _
    // Predicated region
    $region50: #{adda_discriminator_forward.1} parent=1 // pred_check
      _
    $region51: #{adda_discriminator_forward.1} parent=1 // pred_check_branch
      %100 = sbr.rel (0) target = $region53
    $region52: #{adda_discriminator_forward.1} parent=1 // pred_region
      %101 = dma.done [#allocation11], 16
    $region53: #{adda_discriminator_forward.1} parent=1 // pred_fallthru
      _
    %v103 = vld [vmem:[%s0] sm:$0xff]
    %v104 = vld [vmem:[%s0 + $0x8] sm:$0xff]
    %v105 = vld [vmem:[%s0 + $0x10] sm:$0xff]
    %v106 = vld [vmem:[%s0 + $0x18] sm:$0xff]
    %v107 = vld [vmem:[%s0 + $0x20] sm:$0xff]
    %v108 = vld [vmem:[%s0 + $0x28] sm:$0xff]
    %v109 = vld [vmem:[%s0 + $0x30] sm:$0x3]
    %v117 = vcombine.high %v103, %v103
    %v119 = vunpack.c.l.s4 1983009808
    %v120 = vunpack.c.0.s8 %v119
    %v121 = vlaneseq
    %v122 = vshrl.u32 %v121, 7
    %v123 = vsub.s32 %v120, %v122
    %v124 = vrot.slane %v103, %v123
    %v126 = vunpack.c.l.s4 1983009808
    %v127 = vunpack.c.0.s8 %v126
    %v128 = vlaneseq
    %v129 = vshrl.u32 %v128, 7
    %v130 = vsub.s32 %v127, %v129
    %v131 = vrot.slane %v117, %v130
    %v132 = vcombine.high %v124, %v124
    %v133 = vcombine.high %v131, %v131
    %v134 = vcombine.high %v104, %v104
    %v136 = vunpack.c.l.s4 1983009808
    %v137 = vunpack.c.0.s8 %v136
    %v138 = vlaneseq
    %v139 = vshrl.u32 %v138, 7
    %v140 = vsub.s32 %v137, %v139
    %v141 = vrot.slane %v104, %v140
    %v143 = vunpack.c.l.s4 1983009808
    %v144 = vunpack.c.0.s8 %v143
    %v145 = vlaneseq
    %v146 = vshrl.u32 %v145, 7
    %v147 = vsub.s32 %v144, %v146
    %v148 = vrot.slane %v134, %v147
    %v149 = vcombine.high %v141, %v141
    %v150 = vcombine.high %v148, %v148
    %v151 = vcombine.high %v105, %v105
    %v153 = vunpack.c.l.s4 1983009808
    %v154 = vunpack.c.0.s8 %v153
    %v155 = vlaneseq
    %v156 = vshrl.u32 %v155, 7
    %v157 = vsub.s32 %v154, %v156
    %v158 = vrot.slane %v105, %v157
    %v160 = vunpack.c.l.s4 1983009808
    %v161 = vunpack.c.0.s8 %v160
    %v162 = vlaneseq
    %v163 = vshrl.u32 %v162, 7
    %v164 = vsub.s32 %v161, %v163
    %v165 = vrot.slane %v151, %v164
    %v166 = vcombine.high %v158, %v158
    %v167 = vcombine.high %v165, %v165
    %v168 = vcombine.high %v106, %v106
    %v170 = vunpack.c.l.s4 1983009808
    %v171 = vunpack.c.0.s8 %v170
    %v172 = vlaneseq
    %v173 = vshrl.u32 %v172, 7
    %v174 = vsub.s32 %v171, %v173
    %v175 = vrot.slane %v106, %v174
    %v177 = vunpack.c.l.s4 1983009808
    %v178 = vunpack.c.0.s8 %v177
    %v179 = vlaneseq
    %v180 = vshrl.u32 %v179, 7
    %v181 = vsub.s32 %v178, %v180
    %v182 = vrot.slane %v168, %v181
    %v183 = vcombine.high %v175, %v175
    %v184 = vcombine.high %v182, %v182
    %v185 = vcombine.high %v107, %v107
    %v187 = vunpack.c.l.s4 1983009808
    %v188 = vunpack.c.0.s8 %v187
    %v189 = vlaneseq
    %v190 = vshrl.u32 %v189, 7
    %v191 = vsub.s32 %v188, %v190
    %v192 = vrot.slane %v107, %v191
    %v194 = vunpack.c.l.s4 1983009808
    %v195 = vunpack.c.0.s8 %v194
    %v196 = vlaneseq
    %v197 = vshrl.u32 %v196, 7
    %v198 = vsub.s32 %v195, %v197
    %v199 = vrot.slane %v185, %v198
    %v200 = vcombine.high %v192, %v192
    %v201 = vcombine.high %v199, %v199
    %v202 = vcombine.high %v108, %v108
    %v204 = vunpack.c.l.s4 1983009808
    %v205 = vunpack.c.0.s8 %v204
    %v206 = vlaneseq
    %v207 = vshrl.u32 %v206, 7
    %v208 = vsub.s32 %v205, %v207
    %v209 = vrot.slane %v108, %v208
    %v211 = vunpack.c.l.s4 1983009808
    %v212 = vunpack.c.0.s8 %v211
    %v213 = vlaneseq
    %v214 = vshrl.u32 %v213, 7
    %v215 = vsub.s32 %v212, %v214
    %v216 = vrot.slane %v202, %v215
    %v217 = vcombine.high %v209, %v209
    %v218 = vcombine.high %v216, %v216
    %v220 = vunpack.c.l.s4 1983009808
    %v221 = vunpack.c.0.s8 %v220
    %v222 = vlaneseq
    %v223 = vshrl.u32 %v222, 7
    %v224 = vsub.s32 %v221, %v223
    %v225 = vrot.slane %v109, %v224
    %v251 = vpack.c.bf16 %v124, %v124
    %v252 = vpack.c.bf16 %v132, %v132
    %v253 = vpack.c.bf16 %v131, %v131
    %v254 = vpack.c.bf16 %v133, %v133
    %v255 = vpack.c.bf16 %v141, %v141
    %v256 = vpack.c.bf16 %v149, %v149
    %v257 = vpack.c.bf16 %v148, %v148
    %v258 = vpack.c.bf16 %v150, %v150
    %v259 = vpack.c.bf16 %v158, %v158
    %v260 = vpack.c.bf16 %v166, %v166
    %v261 = vpack.c.bf16 %v165, %v165
    %v262 = vpack.c.bf16 %v167, %v167
    %v263 = vpack.c.bf16 %v175, %v175
    %v264 = vpack.c.bf16 %v183, %v183
    %v265 = vpack.c.bf16 %v182, %v182
    %v266 = vpack.c.bf16 %v184, %v184
    %v267 = vpack.c.bf16 %v192, %v192
    %v268 = vpack.c.bf16 %v200, %v200
    %v269 = vpack.c.bf16 %v199, %v199
    %v270 = vpack.c.bf16 %v201, %v201
    %v271 = vpack.c.bf16 %v209, %v209
    %v272 = vpack.c.bf16 %v217, %v217
    %v273 = vpack.c.bf16 %v216, %v216
    %v274 = vpack.c.bf16 %v218, %v218
    %v275 = vpack.c.bf16 %v225, %v225
    %v276 = vld [vmem:[#allocation2] sm:$0xff]
    %v277 = vld [vmem:[#allocation2 + $0x8] sm:$0xff]
    %v278 = vld [vmem:[#allocation2 + $0x10] sm:$0xff]
    %v279 = vld [vmem:[#allocation2 + $0x18] sm:$0xff]
    %v280 = vld [vmem:[#allocation2 + $0x20] sm:$0xff]
    %v281 = vld [vmem:[#allocation2 + $0x28] sm:$0xff]
    %v282 = vld [vmem:[#allocation2 + $0x30] sm:$0xff]
    %v283 = vld [vmem:[#allocation2 + $0x38] sm:$0xff]
    %v284 = vld [vmem:[#allocation2 + $0x40] sm:$0xff]
    %v285 = vld [vmem:[#allocation2 + $0x48] sm:$0xff]
    %v286 = vld [vmem:[#allocation2 + $0x50] sm:$0xff]
    %v287 = vld [vmem:[#allocation2 + $0x58] sm:$0xff]
    %v288 = vld [vmem:[#allocation2 + $0x60] sm:$0xff]
    %v289 = vld [vmem:[#allocation2 + $0x68] sm:$0xff]
    %v290 = vld [vmem:[#allocation2 + $0x70] sm:$0xff]
    %v291 = vld [vmem:[#allocation2 + $0x78] sm:$0xff]
    %v292 = vld [vmem:[#allocation2 + $0x80] sm:$0xff]
    %v293 = vld [vmem:[#allocation2 + $0x88] sm:$0xff]
    %v294 = vld [vmem:[#allocation2 + $0x90] sm:$0xff]
    %v295 = vld [vmem:[#allocation2 + $0x98] sm:$0xff]
    %v296 = vld [vmem:[#allocation2 + $0xa0] sm:$0xff]
    %v297 = vld [vmem:[#allocation2 + $0xa8] sm:$0xff]
    %v298 = vld [vmem:[#allocation2 + $0xb0] sm:$0xff]
    %v299 = vld [vmem:[#allocation2 + $0xb8] sm:$0xff]
    %v300 = vld [vmem:[#allocation2 + $0xc0] sm:$0xff]
    %v301 = vld [vmem:[#allocation2 + $0xc8] sm:$0xff]
    %v302 = vld [vmem:[#allocation2 + $0xd0] sm:$0xff]
    %v303 = vld [vmem:[#allocation2 + $0xd8] sm:$0xff]
    %v304 = vld [vmem:[#allocation2 + $0xe0] sm:$0xff]
    %v305 = vld [vmem:[#allocation2 + $0xe8] sm:$0xff]
    %v306 = vld [vmem:[#allocation2 + $0xf0] sm:$0xff]
    %v307 = vld [vmem:[#allocation2 + $0xf8] sm:$0xff]
    %v308 = vld [vmem:[#allocation2 + $0x100] sm:$0xff]
    %v309 = vld [vmem:[#allocation2 + $0x108] sm:$0xff]
    %v310 = vld [vmem:[#allocation2 + $0x110] sm:$0xff]
    %v311 = vld [vmem:[#allocation2 + $0x118] sm:$0xff]
    %v312 = vld [vmem:[#allocation2 + $0x120] sm:$0xff]
    %v313 = vld [vmem:[#allocation2 + $0x128] sm:$0xff]
    %v314 = vld [vmem:[#allocation2 + $0x130] sm:$0xff]
    %v315 = vld [vmem:[#allocation2 + $0x138] sm:$0xff]
    %v316 = vld [vmem:[#allocation2 + $0x140] sm:$0xff]
    %v317 = vld [vmem:[#allocation2 + $0x148] sm:$0xff]
    %v318 = vld [vmem:[#allocation2 + $0x150] sm:$0xff]
    %v319 = vld [vmem:[#allocation2 + $0x158] sm:$0xff]
    %v320 = vld [vmem:[#allocation2 + $0x160] sm:$0xff]
    %v321 = vld [vmem:[#allocation2 + $0x168] sm:$0xff]
    %v322 = vld [vmem:[#allocation2 + $0x170] sm:$0xff]
    %v323 = vld [vmem:[#allocation2 + $0x178] sm:$0xff]
    %v324 = vld [vmem:[#allocation2 + $0x180] sm:$0xff]
    %v325 = vld [vmem:[#allocation2 + $0x188] sm:$0xff]
    %v326 = vld [vmem:[#allocation2 + $0x190] sm:$0xff]
    %v327 = vld [vmem:[#allocation2 + $0x198] sm:$0xff]
    %v328 = vld [vmem:[#allocation2 + $0x1a0] sm:$0xff]
    %v329 = vld [vmem:[#allocation2 + $0x1a8] sm:$0xff]
    %v330 = vld [vmem:[#allocation2 + $0x1b0] sm:$0xff]
    %v331 = vld [vmem:[#allocation2 + $0x1b8] sm:$0xff]
    %v332 = vld [vmem:[#allocation2 + $0x1c0] sm:$0xff]
    %v333 = vld [vmem:[#allocation2 + $0x1c8] sm:$0xff]
    %v334 = vld [vmem:[#allocation2 + $0x1d0] sm:$0xff]
    %v335 = vld [vmem:[#allocation2 + $0x1d8] sm:$0xff]
    %v336 = vld [vmem:[#allocation2 + $0x1e0] sm:$0xff]
    %v337 = vld [vmem:[#allocation2 + $0x1e8] sm:$0xff]
    %v338 = vld [vmem:[#allocation2 + $0x1f0] sm:$0xff]
    %v339 = vld [vmem:[#allocation2 + $0x1f8] sm:$0xff]
    %v340 = vld [vmem:[#allocation2 + $0x200] sm:$0xff]
    %v341 = vld [vmem:[#allocation2 + $0x208] sm:$0xff]
    %v342 = vld [vmem:[#allocation2 + $0x210] sm:$0xff]
    %v343 = vld [vmem:[#allocation2 + $0x218] sm:$0xff]
    %v344 = vld [vmem:[#allocation2 + $0x220] sm:$0xff]
    %v345 = vld [vmem:[#allocation2 + $0x228] sm:$0xff]
    %v346 = vld [vmem:[#allocation2 + $0x230] sm:$0xff]
    %v347 = vld [vmem:[#allocation2 + $0x238] sm:$0xff]
    %v348 = vld [vmem:[#allocation2 + $0x240] sm:$0xff]
    %v349 = vld [vmem:[#allocation2 + $0x248] sm:$0xff]
    %v350 = vld [vmem:[#allocation2 + $0x250] sm:$0xff]
    %v351 = vld [vmem:[#allocation2 + $0x258] sm:$0xff]
    %v352 = vld [vmem:[#allocation2 + $0x260] sm:$0xff]
    %v353 = vld [vmem:[#allocation2 + $0x268] sm:$0xff]
    %v354 = vld [vmem:[#allocation2 + $0x270] sm:$0xff]
    %v355 = vld [vmem:[#allocation2 + $0x278] sm:$0xff]
    %v356 = vld [vmem:[#allocation2 + $0x280] sm:$0xff]
    %v357 = vld [vmem:[#allocation2 + $0x288] sm:$0xff]
    %v358 = vld [vmem:[#allocation2 + $0x290] sm:$0xff]
    %v359 = vld [vmem:[#allocation2 + $0x298] sm:$0xff]
    %v360 = vld [vmem:[#allocation2 + $0x2a0] sm:$0xff]
    %v361 = vld [vmem:[#allocation2 + $0x2a8] sm:$0xff]
    %v362 = vld [vmem:[#allocation2 + $0x2b0] sm:$0xff]
    %v363 = vld [vmem:[#allocation2 + $0x2b8] sm:$0xff]
    %v364 = vld [vmem:[#allocation2 + $0x2c0] sm:$0xff]
    %v365 = vld [vmem:[#allocation2 + $0x2c8] sm:$0xff]
    %v366 = vld [vmem:[#allocation2 + $0x2d0] sm:$0xff]
    %v367 = vld [vmem:[#allocation2 + $0x2d8] sm:$0xff]
    %v368 = vld [vmem:[#allocation2 + $0x2e0] sm:$0xff]
    %v369 = vld [vmem:[#allocation2 + $0x2e8] sm:$0xff]
    %v370 = vld [vmem:[#allocation2 + $0x2f0] sm:$0xff]
    %v371 = vld [vmem:[#allocation2 + $0x2f8] sm:$0xff]
    %v372 = vld [vmem:[#allocation2 + $0x300] sm:$0xff]
    %v373 = vld [vmem:[#allocation2 + $0x308] sm:$0xff]
    %v374 = vld [vmem:[#allocation2 + $0x310] sm:$0xff]
    %v375 = vld [vmem:[#allocation2 + $0x318] sm:$0xff]
    %v376 = vld [vmem:[#allocation2 + $0x320] sm:$0xff]
    %v377 = vld [vmem:[#allocation2 + $0x328] sm:$0xff]
    %v378 = vld [vmem:[#allocation2 + $0x330] sm:$0xff]
    %v379 = vld [vmem:[#allocation2 + $0x338] sm:$0xff]
    %v380 = vld [vmem:[#allocation2 + $0x340] sm:$0xff]
    %v381 = vld [vmem:[#allocation2 + $0x348] sm:$0xff]
    %v382 = vld [vmem:[#allocation2 + $0x350] sm:$0xff]
    %v383 = vld [vmem:[#allocation2 + $0x358] sm:$0xff]
    %v384 = vld [vmem:[#allocation2 + $0x360] sm:$0xff]
    %v385 = vld [vmem:[#allocation2 + $0x368] sm:$0xff]
    %v386 = vld [vmem:[#allocation2 + $0x370] sm:$0xff]
    %v387 = vld [vmem:[#allocation2 + $0x378] sm:$0xff]
    %v388 = vld [vmem:[#allocation2 + $0x380] sm:$0xff]
    %v389 = vld [vmem:[#allocation2 + $0x388] sm:$0xff]
    %v390 = vld [vmem:[#allocation2 + $0x390] sm:$0xff]
    %v391 = vld [vmem:[#allocation2 + $0x398] sm:$0xff]
    %v392 = vld [vmem:[#allocation2 + $0x3a0] sm:$0xff]
    %v393 = vld [vmem:[#allocation2 + $0x3a8] sm:$0xff]
    %v394 = vld [vmem:[#allocation2 + $0x3b0] sm:$0xff]
    %v395 = vld [vmem:[#allocation2 + $0x3b8] sm:$0xff]
    %v396 = vld [vmem:[#allocation2 + $0x3c0] sm:$0xff]
    %v397 = vld [vmem:[#allocation2 + $0x3c8] sm:$0xff]
    %v398 = vld [vmem:[#allocation2 + $0x3d0] sm:$0xff]
    %v399 = vld [vmem:[#allocation2 + $0x3d8] sm:$0xff]
    %v400 = vld [vmem:[#allocation2 + $0x3e0] sm:$0xff]
    %v401 = vld [vmem:[#allocation2 + $0x3e8] sm:$0xff]
    %v402 = vld [vmem:[#allocation2 + $0x3f0] sm:$0xff]
    %v403 = vld [vmem:[#allocation2 + $0x3f8] sm:$0xff]
    %v404 = vld [vmem:[#allocation2 + $0x400] sm:$0xff]
    %v405 = vld [vmem:[#allocation2 + $0x408] sm:$0xff]
    %v406 = vld [vmem:[#allocation2 + $0x410] sm:$0xff]
    %v407 = vld [vmem:[#allocation2 + $0x418] sm:$0xff]
    %v408 = vld [vmem:[#allocation2 + $0x420] sm:$0xff]
    %v409 = vld [vmem:[#allocation2 + $0x428] sm:$0xff]
    %v410 = vld [vmem:[#allocation2 + $0x430] sm:$0xff]
    %v411 = vld [vmem:[#allocation2 + $0x438] sm:$0xff]
    %v412 = vld [vmem:[#allocation2 + $0x440] sm:$0xff]
    %v413 = vld [vmem:[#allocation2 + $0x448] sm:$0xff]
    %v414 = vld [vmem:[#allocation2 + $0x450] sm:$0xff]
    %v415 = vld [vmem:[#allocation2 + $0x458] sm:$0xff]
    %v416 = vld [vmem:[#allocation2 + $0x460] sm:$0xff]
    %v417 = vld [vmem:[#allocation2 + $0x468] sm:$0xff]
    %v418 = vld [vmem:[#allocation2 + $0x470] sm:$0xff]
    %v419 = vld [vmem:[#allocation2 + $0x478] sm:$0xff]
    %v420 = vld [vmem:[#allocation2 + $0x480] sm:$0xff]
    %v421 = vld [vmem:[#allocation2 + $0x488] sm:$0xff]
    %v422 = vld [vmem:[#allocation2 + $0x490] sm:$0xff]
    %v423 = vld [vmem:[#allocation2 + $0x498] sm:$0xff]
    %v424 = vld [vmem:[#allocation2 + $0x4a0] sm:$0xff]
    %v425 = vld [vmem:[#allocation2 + $0x4a8] sm:$0xff]
    %v426 = vld [vmem:[#allocation2 + $0x4b0] sm:$0xff]
    %v427 = vld [vmem:[#allocation2 + $0x4b8] sm:$0xff]
    %v428 = vld [vmem:[#allocation2 + $0x4c0] sm:$0xff]
    %v429 = vld [vmem:[#allocation2 + $0x4c8] sm:$0xff]
    %v430 = vld [vmem:[#allocation2 + $0x4d0] sm:$0xff]
    %v431 = vld [vmem:[#allocation2 + $0x4d8] sm:$0xff]
    %v432 = vld [vmem:[#allocation2 + $0x4e0] sm:$0xff]
    %v433 = vld [vmem:[#allocation2 + $0x4e8] sm:$0xff]
    %v434 = vld [vmem:[#allocation2 + $0x4f0] sm:$0xff]
    %v435 = vld [vmem:[#allocation2 + $0x4f8] sm:$0xff]
    %v436 = vld [vmem:[#allocation2 + $0x500] sm:$0xff]
    %v437 = vld [vmem:[#allocation2 + $0x508] sm:$0xff]
    %v438 = vld [vmem:[#allocation2 + $0x510] sm:$0xff]
    %v439 = vld [vmem:[#allocation2 + $0x518] sm:$0xff]
    %v440 = vld [vmem:[#allocation2 + $0x520] sm:$0xff]
    %v441 = vld [vmem:[#allocation2 + $0x528] sm:$0xff]
    %v442 = vld [vmem:[#allocation2 + $0x530] sm:$0xff]
    %v443 = vld [vmem:[#allocation2 + $0x538] sm:$0xff]
    %v444 = vld [vmem:[#allocation2 + $0x540] sm:$0xff]
    %v445 = vld [vmem:[#allocation2 + $0x548] sm:$0xff]
    %v446 = vld [vmem:[#allocation2 + $0x550] sm:$0xff]
    %v447 = vld [vmem:[#allocation2 + $0x558] sm:$0xff]
    %v448 = vld [vmem:[#allocation2 + $0x560] sm:$0xff]
    %v449 = vld [vmem:[#allocation2 + $0x568] sm:$0xff]
    %v450 = vld [vmem:[#allocation2 + $0x570] sm:$0xff]
    %v451 = vld [vmem:[#allocation2 + $0x578] sm:$0xff]
    %v452 = vld [vmem:[#allocation2 + $0x580] sm:$0xff]
    %v453 = vld [vmem:[#allocation2 + $0x588] sm:$0xff]
    %v454 = vld [vmem:[#allocation2 + $0x590] sm:$0xff]
    %v455 = vld [vmem:[#allocation2 + $0x598] sm:$0xff]
    %v456 = vld [vmem:[#allocation2 + $0x5a0] sm:$0xff]
    %v457 = vld [vmem:[#allocation2 + $0x5a8] sm:$0xff]
    %v458 = vld [vmem:[#allocation2 + $0x5b0] sm:$0xff]
    %v459 = vld [vmem:[#allocation2 + $0x5b8] sm:$0xff]
    %v460 = vld [vmem:[#allocation2 + $0x5c0] sm:$0xff]
    %v461 = vld [vmem:[#allocation2 + $0x5c8] sm:$0xff]
    %v462 = vld [vmem:[#allocation2 + $0x5d0] sm:$0xff]
    %v463 = vld [vmem:[#allocation2 + $0x5d8] sm:$0xff]
    %v464 = vld [vmem:[#allocation2 + $0x5e0] sm:$0xff]
    %v465 = vld [vmem:[#allocation2 + $0x5e8] sm:$0xff]
    %v466 = vld [vmem:[#allocation2 + $0x5f0] sm:$0xff]
    %v467 = vld [vmem:[#allocation2 + $0x5f8] sm:$0xff]
    %v468 = vld [vmem:[#allocation2 + $0x600] sm:$0xff]
    %v469 = vld [vmem:[#allocation2 + $0x608] sm:$0xff]
    %v470 = vld [vmem:[#allocation2 + $0x610] sm:$0xff]
    %v471 = vld [vmem:[#allocation2 + $0x618] sm:$0xff]
    %v472 = vld [vmem:[#allocation2 + $0x620] sm:$0xff]
    %v473 = vld [vmem:[#allocation2 + $0x628] sm:$0xff]
    %v474 = vld [vmem:[#allocation2 + $0x630] sm:$0xff]
    %v475 = vld [vmem:[#allocation2 + $0x638] sm:$0xff]
    %v476 = vld [vmem:[#allocation2 + $0x640] sm:$0xff]
    %v477 = vld [vmem:[#allocation2 + $0x648] sm:$0xff]
    %v478 = vld [vmem:[#allocation2 + $0x650] sm:$0xff]
    %v479 = vld [vmem:[#allocation2 + $0x658] sm:$0xff]
    %v480 = vld [vmem:[#allocation2 + $0x660] sm:$0xff]
    %v481 = vld [vmem:[#allocation2 + $0x668] sm:$0xff]
    %v482 = vld [vmem:[#allocation2 + $0x670] sm:$0xff]
    %v483 = vld [vmem:[#allocation2 + $0x678] sm:$0xff]
    %v484 = vld [vmem:[#allocation2 + $0x680] sm:$0xff]
    %v485 = vld [vmem:[#allocation2 + $0x688] sm:$0xff]
    %v486 = vld [vmem:[#allocation2 + $0x690] sm:$0xff]
    %v487 = vld [vmem:[#allocation2 + $0x698] sm:$0xff]
    %v488 = vld [vmem:[#allocation2 + $0x6a0] sm:$0xff]
    %v489 = vld [vmem:[#allocation2 + $0x6a8] sm:$0xff]
    %v490 = vld [vmem:[#allocation2 + $0x6b0] sm:$0xff]
    %v491 = vld [vmem:[#allocation2 + $0x6b8] sm:$0xff]
    %v492 = vld [vmem:[#allocation2 + $0x6c0] sm:$0xff]
    %v493 = vld [vmem:[#allocation2 + $0x6c8] sm:$0xff]
    %v494 = vld [vmem:[#allocation2 + $0x6d0] sm:$0xff]
    %v495 = vld [vmem:[#allocation2 + $0x6d8] sm:$0xff]
    %v496 = vld [vmem:[#allocation2 + $0x6e0] sm:$0xff]
    %v497 = vld [vmem:[#allocation2 + $0x6e8] sm:$0xff]
    %v498 = vld [vmem:[#allocation2 + $0x6f0] sm:$0xff]
    %v499 = vld [vmem:[#allocation2 + $0x6f8] sm:$0xff]
    %v500 = vld [vmem:[#allocation2 + $0x700] sm:$0xff]
    %v501 = vld [vmem:[#allocation2 + $0x708] sm:$0xff]
    %v502 = vld [vmem:[#allocation2 + $0x710] sm:$0xff]
    %v503 = vld [vmem:[#allocation2 + $0x718] sm:$0xff]
    %v504 = vld [vmem:[#allocation2 + $0x720] sm:$0xff]
    %v505 = vld [vmem:[#allocation2 + $0x728] sm:$0xff]
    %v506 = vld [vmem:[#allocation2 + $0x730] sm:$0xff]
    %v507 = vld [vmem:[#allocation2 + $0x738] sm:$0xff]
    %v508 = vld [vmem:[#allocation2 + $0x740] sm:$0xff]
    %v509 = vld [vmem:[#allocation2 + $0x748] sm:$0xff]
    %v510 = vld [vmem:[#allocation2 + $0x750] sm:$0xff]
    %v511 = vld [vmem:[#allocation2 + $0x758] sm:$0xff]
    %v512 = vld [vmem:[#allocation2 + $0x760] sm:$0xff]
    %v513 = vld [vmem:[#allocation2 + $0x768] sm:$0xff]
    %v514 = vld [vmem:[#allocation2 + $0x770] sm:$0xff]
    %v515 = vld [vmem:[#allocation2 + $0x778] sm:$0xff]
    %v516 = vld [vmem:[#allocation2 + $0x780] sm:$0xff]
    %v517 = vld [vmem:[#allocation2 + $0x788] sm:$0xff]
    %v518 = vld [vmem:[#allocation2 + $0x790] sm:$0xff]
    %v519 = vld [vmem:[#allocation2 + $0x798] sm:$0xff]
    %v520 = vld [vmem:[#allocation2 + $0x7a0] sm:$0xff]
    %v521 = vld [vmem:[#allocation2 + $0x7a8] sm:$0xff]
    %v522 = vld [vmem:[#allocation2 + $0x7b0] sm:$0xff]
    %v523 = vld [vmem:[#allocation2 + $0x7b8] sm:$0xff]
    %v524 = vld [vmem:[#allocation2 + $0x7c0] sm:$0xff]
    %v525 = vld [vmem:[#allocation2 + $0x7c8] sm:$0xff]
    %v526 = vld [vmem:[#allocation2 + $0x7d0] sm:$0xff]
    %v527 = vld [vmem:[#allocation2 + $0x7d8] sm:$0xff]
    %v528 = vld [vmem:[#allocation2 + $0x7e0] sm:$0xff]
    %v529 = vld [vmem:[#allocation2 + $0x7e8] sm:$0xff]
    %v530 = vld [vmem:[#allocation2 + $0x7f0] sm:$0xff]
    %v531 = vld [vmem:[#allocation2 + $0x7f8] sm:$0xff]
    %v532 = vld [vmem:[#allocation2 + $0x800] sm:$0xff]
    %v533 = vld [vmem:[#allocation2 + $0x808] sm:$0xff]
    %v534 = vld [vmem:[#allocation2 + $0x810] sm:$0xff]
    %v535 = vld [vmem:[#allocation2 + $0x818] sm:$0xff]
    %v536 = vld [vmem:[#allocation2 + $0x820] sm:$0xff]
    %v537 = vld [vmem:[#allocation2 + $0x828] sm:$0xff]
    %v538 = vld [vmem:[#allocation2 + $0x830] sm:$0xff]
    %v539 = vld [vmem:[#allocation2 + $0x838] sm:$0xff]
    %v540 = vld [vmem:[#allocation2 + $0x840] sm:$0xff]
    %v541 = vld [vmem:[#allocation2 + $0x848] sm:$0xff]
    %v542 = vld [vmem:[#allocation2 + $0x850] sm:$0xff]
    %v543 = vld [vmem:[#allocation2 + $0x858] sm:$0xff]
    %v544 = vld [vmem:[#allocation2 + $0x860] sm:$0xff]
    %v545 = vld [vmem:[#allocation2 + $0x868] sm:$0xff]
    %v546 = vld [vmem:[#allocation2 + $0x870] sm:$0xff]
    %v547 = vld [vmem:[#allocation2 + $0x878] sm:$0xff]
    %v548 = vld [vmem:[#allocation2 + $0x880] sm:$0xff]
    %v549 = vld [vmem:[#allocation2 + $0x888] sm:$0xff]
    %v550 = vld [vmem:[#allocation2 + $0x890] sm:$0xff]
    %v551 = vld [vmem:[#allocation2 + $0x898] sm:$0xff]
    %v552 = vld [vmem:[#allocation2 + $0x8a0] sm:$0xff]
    %v553 = vld [vmem:[#allocation2 + $0x8a8] sm:$0xff]
    %v554 = vld [vmem:[#allocation2 + $0x8b0] sm:$0xff]
    %v555 = vld [vmem:[#allocation2 + $0x8b8] sm:$0xff]
    %v556 = vld [vmem:[#allocation2 + $0x8c0] sm:$0xff]
    %v557 = vld [vmem:[#allocation2 + $0x8c8] sm:$0xff]
    %v558 = vld [vmem:[#allocation2 + $0x8d0] sm:$0xff]
    %v559 = vld [vmem:[#allocation2 + $0x8d8] sm:$0xff]
    %v560 = vld [vmem:[#allocation2 + $0x8e0] sm:$0xff]
    %v561 = vld [vmem:[#allocation2 + $0x8e8] sm:$0xff]
    %v562 = vld [vmem:[#allocation2 + $0x8f0] sm:$0xff]
    %v563 = vld [vmem:[#allocation2 + $0x8f8] sm:$0xff]
    %v564 = vld [vmem:[#allocation2 + $0x900] sm:$0xff]
    %v565 = vld [vmem:[#allocation2 + $0x908] sm:$0xff]
    %v566 = vld [vmem:[#allocation2 + $0x910] sm:$0xff]
    %v567 = vld [vmem:[#allocation2 + $0x918] sm:$0xff]
    %v568 = vld [vmem:[#allocation2 + $0x920] sm:$0xff]
    %v569 = vld [vmem:[#allocation2 + $0x928] sm:$0xff]
    %v570 = vld [vmem:[#allocation2 + $0x930] sm:$0xff]
    %v571 = vld [vmem:[#allocation2 + $0x938] sm:$0xff]
    %v572 = vld [vmem:[#allocation2 + $0x940] sm:$0xff]
    %v573 = vld [vmem:[#allocation2 + $0x948] sm:$0xff]
    %v574 = vld [vmem:[#allocation2 + $0x950] sm:$0xff]
    %v575 = vld [vmem:[#allocation2 + $0x958] sm:$0xff]
    %v576 = vld [vmem:[#allocation2 + $0x960] sm:$0xff]
    %v577 = vld [vmem:[#allocation2 + $0x968] sm:$0xff]
    %v578 = vld [vmem:[#allocation2 + $0x970] sm:$0xff]
    %v579 = vld [vmem:[#allocation2 + $0x978] sm:$0xff]
    %v580 = vld [vmem:[#allocation2 + $0x980] sm:$0xff]
    %v581 = vld [vmem:[#allocation2 + $0x988] sm:$0xff]
    %v582 = vld [vmem:[#allocation2 + $0x990] sm:$0xff]
    %v583 = vld [vmem:[#allocation2 + $0x998] sm:$0xff]
    %v584 = vld [vmem:[#allocation2 + $0x9a0] sm:$0xff]
    %v585 = vld [vmem:[#allocation2 + $0x9a8] sm:$0xff]
    %v586 = vld [vmem:[#allocation2 + $0x9b0] sm:$0xff]
    %v587 = vld [vmem:[#allocation2 + $0x9b8] sm:$0xff]
    %v588 = vld [vmem:[#allocation2 + $0x9c0] sm:$0xff]
    %v589 = vld [vmem:[#allocation2 + $0x9c8] sm:$0xff]
    %v590 = vld [vmem:[#allocation2 + $0x9d0] sm:$0xff]
    %v591 = vld [vmem:[#allocation2 + $0x9d8] sm:$0xff]
    %v592 = vld [vmem:[#allocation2 + $0x9e0] sm:$0xff]
    %v593 = vld [vmem:[#allocation2 + $0x9e8] sm:$0xff]
    %v594 = vld [vmem:[#allocation2 + $0x9f0] sm:$0xff]
    %v595 = vld [vmem:[#allocation2 + $0x9f8] sm:$0xff]
    %v596 = vld [vmem:[#allocation2 + $0xa00] sm:$0xff]
    %v597 = vld [vmem:[#allocation2 + $0xa08] sm:$0xff]
    %v598 = vld [vmem:[#allocation2 + $0xa10] sm:$0xff]
    %v599 = vld [vmem:[#allocation2 + $0xa18] sm:$0xff]
    %v600 = vld [vmem:[#allocation2 + $0xa20] sm:$0xff]
    %v601 = vld [vmem:[#allocation2 + $0xa28] sm:$0xff]
    %v602 = vld [vmem:[#allocation2 + $0xa30] sm:$0xff]
    %v603 = vld [vmem:[#allocation2 + $0xa38] sm:$0xff]
    %v604 = vld [vmem:[#allocation2 + $0xa40] sm:$0xff]
    %v605 = vld [vmem:[#allocation2 + $0xa48] sm:$0xff]
    %v606 = vld [vmem:[#allocation2 + $0xa50] sm:$0xff]
    %v607 = vld [vmem:[#allocation2 + $0xa58] sm:$0xff]
    %v608 = vld [vmem:[#allocation2 + $0xa60] sm:$0xff]
    %v609 = vld [vmem:[#allocation2 + $0xa68] sm:$0xff]
    %v610 = vld [vmem:[#allocation2 + $0xa70] sm:$0xff]
    %v611 = vld [vmem:[#allocation2 + $0xa78] sm:$0xff]
    %v612 = vld [vmem:[#allocation2 + $0xa80] sm:$0xff]
    %v613 = vld [vmem:[#allocation2 + $0xa88] sm:$0xff]
    %v614 = vld [vmem:[#allocation2 + $0xa90] sm:$0xff]
    %v615 = vld [vmem:[#allocation2 + $0xa98] sm:$0xff]
    %v616 = vld [vmem:[#allocation2 + $0xaa0] sm:$0xff]
    %v617 = vld [vmem:[#allocation2 + $0xaa8] sm:$0xff]
    %v618 = vld [vmem:[#allocation2 + $0xab0] sm:$0xff]
    %v619 = vld [vmem:[#allocation2 + $0xab8] sm:$0xff]
    %v620 = vld [vmem:[#allocation2 + $0xac0] sm:$0xff]
    %v621 = vld [vmem:[#allocation2 + $0xac8] sm:$0xff]
    %v622 = vld [vmem:[#allocation2 + $0xad0] sm:$0xff]
    %v623 = vld [vmem:[#allocation2 + $0xad8] sm:$0xff]
    %v624 = vld [vmem:[#allocation2 + $0xae0] sm:$0xff]
    %v625 = vld [vmem:[#allocation2 + $0xae8] sm:$0xff]
    %v626 = vld [vmem:[#allocation2 + $0xaf0] sm:$0xff]
    %v627 = vld [vmem:[#allocation2 + $0xaf8] sm:$0xff]
    %v628 = vld [vmem:[#allocation2 + $0xb00] sm:$0xff]
    %v629 = vld [vmem:[#allocation2 + $0xb08] sm:$0xff]
    %v630 = vld [vmem:[#allocation2 + $0xb10] sm:$0xff]
    %v631 = vld [vmem:[#allocation2 + $0xb18] sm:$0xff]
    %v632 = vld [vmem:[#allocation2 + $0xb20] sm:$0xff]
    %v633 = vld [vmem:[#allocation2 + $0xb28] sm:$0xff]
    %v634 = vld [vmem:[#allocation2 + $0xb30] sm:$0xff]
    %v635 = vld [vmem:[#allocation2 + $0xb38] sm:$0xff]
    %v636 = vld [vmem:[#allocation2 + $0xb40] sm:$0xff]
    %v637 = vld [vmem:[#allocation2 + $0xb48] sm:$0xff]
    %v638 = vld [vmem:[#allocation2 + $0xb50] sm:$0xff]
    %v639 = vld [vmem:[#allocation2 + $0xb58] sm:$0xff]
    %v640 = vld [vmem:[#allocation2 + $0xb60] sm:$0xff]
    %v641 = vld [vmem:[#allocation2 + $0xb68] sm:$0xff]
    %v642 = vld [vmem:[#allocation2 + $0xb70] sm:$0xff]
    %v643 = vld [vmem:[#allocation2 + $0xb78] sm:$0xff]
    %v644 = vld [vmem:[#allocation2 + $0xb80] sm:$0xff]
    %v645 = vld [vmem:[#allocation2 + $0xb88] sm:$0xff]
    %v646 = vld [vmem:[#allocation2 + $0xb90] sm:$0xff]
    %v647 = vld [vmem:[#allocation2 + $0xb98] sm:$0xff]
    %v648 = vld [vmem:[#allocation2 + $0xba0] sm:$0xff]
    %v649 = vld [vmem:[#allocation2 + $0xba8] sm:$0xff]
    %v650 = vld [vmem:[#allocation2 + $0xbb0] sm:$0xff]
    %v651 = vld [vmem:[#allocation2 + $0xbb8] sm:$0xff]
    %v652 = vld [vmem:[#allocation2 + $0xbc0] sm:$0xff]
    %v653 = vld [vmem:[#allocation2 + $0xbc8] sm:$0xff]
    %v654 = vld [vmem:[#allocation2 + $0xbd0] sm:$0xff]
    %v655 = vld [vmem:[#allocation2 + $0xbd8] sm:$0xff]
    %v656 = vld [vmem:[#allocation2 + $0xbe0] sm:$0xff]
    %v657 = vld [vmem:[#allocation2 + $0xbe8] sm:$0xff]
    %v658 = vld [vmem:[#allocation2 + $0xbf0] sm:$0xff]
    %v659 = vld [vmem:[#allocation2 + $0xbf8] sm:$0xff]
    %v660 = vld [vmem:[#allocation2 + $0xc00] sm:$0xff]
    %v661 = vld [vmem:[#allocation2 + $0xc08] sm:$0xff]
    %v662 = vld [vmem:[#allocation2 + $0xc10] sm:$0xff]
    %v663 = vld [vmem:[#allocation2 + $0xc18] sm:$0xff]
    %v664 = vld [vmem:[#allocation2 + $0xc20] sm:$0xff]
    %v665 = vld [vmem:[#allocation2 + $0xc28] sm:$0xff]
    %v666 = vld [vmem:[#allocation2 + $0xc30] sm:$0xff]
    %v667 = vld [vmem:[#allocation2 + $0xc38] sm:$0xff]
    %v668 = vld [vmem:[#allocation2 + $0xc40] sm:$0xff]
    %v669 = vld [vmem:[#allocation2 + $0xc48] sm:$0xff]
    %v670 = vld [vmem:[#allocation2 + $0xc50] sm:$0xff]
    %v671 = vld [vmem:[#allocation2 + $0xc58] sm:$0xff]
    %v672 = vld [vmem:[#allocation2 + $0xc60] sm:$0xff]
    %v673 = vld [vmem:[#allocation2 + $0xc68] sm:$0xff]
    %v674 = vld [vmem:[#allocation2 + $0xc70] sm:$0xff]
    %v675 = vld [vmem:[#allocation2 + $0xc78] sm:$0xff]
    %v676 = vld [vmem:[#allocation2 + $0xc80] sm:$0xff]
    %v677 = vld [vmem:[#allocation2 + $0xc88] sm:$0xff]
    %v678 = vld [vmem:[#allocation2 + $0xc90] sm:$0xff]
    %v679 = vld [vmem:[#allocation2 + $0xc98] sm:$0xff]
    %v680 = vld [vmem:[#allocation2 + $0xca0] sm:$0xff]
    %v681 = vld [vmem:[#allocation2 + $0xca8] sm:$0xff]
    %v682 = vld [vmem:[#allocation2 + $0xcb0] sm:$0xff]
    %v683 = vld [vmem:[#allocation2 + $0xcb8] sm:$0xff]
    %v684 = vld [vmem:[#allocation2 + $0xcc0] sm:$0xff]
    %v685 = vld [vmem:[#allocation2 + $0xcc8] sm:$0xff]
    %v686 = vld [vmem:[#allocation2 + $0xcd0] sm:$0xff]
    %v687 = vld [vmem:[#allocation2 + $0xcd8] sm:$0xff]
    %v688 = vld [vmem:[#allocation2 + $0xce0] sm:$0xff]
    %v689 = vld [vmem:[#allocation2 + $0xce8] sm:$0xff]
    %v690 = vld [vmem:[#allocation2 + $0xcf0] sm:$0xff]
    %v691 = vld [vmem:[#allocation2 + $0xcf8] sm:$0xff]
    %v692 = vld [vmem:[#allocation2 + $0xd00] sm:$0xff]
    %v693 = vld [vmem:[#allocation2 + $0xd08] sm:$0xff]
    %v694 = vld [vmem:[#allocation2 + $0xd10] sm:$0xff]
    %v695 = vld [vmem:[#allocation2 + $0xd18] sm:$0xff]
    %v696 = vld [vmem:[#allocation2 + $0xd20] sm:$0xff]
    %v697 = vld [vmem:[#allocation2 + $0xd28] sm:$0xff]
    %v698 = vld [vmem:[#allocation2 + $0xd30] sm:$0xff]
    %v699 = vld [vmem:[#allocation2 + $0xd38] sm:$0xff]
    %v700 = vld [vmem:[#allocation2 + $0xd40] sm:$0xff]
    %v701 = vld [vmem:[#allocation2 + $0xd48] sm:$0xff]
    %v702 = vld [vmem:[#allocation2 + $0xd50] sm:$0xff]
    %v703 = vld [vmem:[#allocation2 + $0xd58] sm:$0xff]
    %v704 = vld [vmem:[#allocation2 + $0xd60] sm:$0xff]
    %v705 = vld [vmem:[#allocation2 + $0xd68] sm:$0xff]
    %v706 = vld [vmem:[#allocation2 + $0xd70] sm:$0xff]
    %v707 = vld [vmem:[#allocation2 + $0xd78] sm:$0xff]
    %v708 = vld [vmem:[#allocation2 + $0xd80] sm:$0xff]
    %v709 = vld [vmem:[#allocation2 + $0xd88] sm:$0xff]
    %v710 = vld [vmem:[#allocation2 + $0xd90] sm:$0xff]
    %v711 = vld [vmem:[#allocation2 + $0xd98] sm:$0xff]
    %v712 = vld [vmem:[#allocation2 + $0xda0] sm:$0xff]
    %v713 = vld [vmem:[#allocation2 + $0xda8] sm:$0xff]
    %v714 = vld [vmem:[#allocation2 + $0xdb0] sm:$0xff]
    %v715 = vld [vmem:[#allocation2 + $0xdb8] sm:$0xff]
    %v716 = vld [vmem:[#allocation2 + $0xdc0] sm:$0xff]
    %v717 = vld [vmem:[#allocation2 + $0xdc8] sm:$0xff]
    %v718 = vld [vmem:[#allocation2 + $0xdd0] sm:$0xff]
    %v719 = vld [vmem:[#allocation2 + $0xdd8] sm:$0xff]
    %v720 = vld [vmem:[#allocation2 + $0xde0] sm:$0xff]
    %v721 = vld [vmem:[#allocation2 + $0xde8] sm:$0xff]
    %v722 = vld [vmem:[#allocation2 + $0xdf0] sm:$0xff]
    %v723 = vld [vmem:[#allocation2 + $0xdf8] sm:$0xff]
    %v724 = vld [vmem:[#allocation2 + $0xe00] sm:$0xff]
    %v725 = vld [vmem:[#allocation2 + $0xe08] sm:$0xff]
    %v726 = vld [vmem:[#allocation2 + $0xe10] sm:$0xff]
    %v727 = vld [vmem:[#allocation2 + $0xe18] sm:$0xff]
    %v728 = vld [vmem:[#allocation2 + $0xe20] sm:$0xff]
    %v729 = vld [vmem:[#allocation2 + $0xe28] sm:$0xff]
    %v730 = vld [vmem:[#allocation2 + $0xe30] sm:$0xff]
    %v731 = vld [vmem:[#allocation2 + $0xe38] sm:$0xff]
    %v732 = vld [vmem:[#allocation2 + $0xe40] sm:$0xff]
    %v733 = vld [vmem:[#allocation2 + $0xe48] sm:$0xff]
    %v734 = vld [vmem:[#allocation2 + $0xe50] sm:$0xff]
    %v735 = vld [vmem:[#allocation2 + $0xe58] sm:$0xff]
    %v736 = vld [vmem:[#allocation2 + $0xe60] sm:$0xff]
    %v737 = vld [vmem:[#allocation2 + $0xe68] sm:$0xff]
    %v738 = vld [vmem:[#allocation2 + $0xe70] sm:$0xff]
    %v739 = vld [vmem:[#allocation2 + $0xe78] sm:$0xff]
    %v740 = vld [vmem:[#allocation2 + $0xe80] sm:$0xff]
    %v741 = vld [vmem:[#allocation2 + $0xe88] sm:$0xff]
    %v742 = vld [vmem:[#allocation2 + $0xe90] sm:$0xff]
    %v743 = vld [vmem:[#allocation2 + $0xe98] sm:$0xff]
    %v744 = vld [vmem:[#allocation2 + $0xea0] sm:$0xff]
    %v745 = vld [vmem:[#allocation2 + $0xea8] sm:$0xff]
    %v746 = vld [vmem:[#allocation2 + $0xeb0] sm:$0xff]
    %v747 = vld [vmem:[#allocation2 + $0xeb8] sm:$0xff]
    %v748 = vld [vmem:[#allocation2 + $0xec0] sm:$0xff]
    %v749 = vld [vmem:[#allocation2 + $0xec8] sm:$0xff]
    %v750 = vld [vmem:[#allocation2 + $0xed0] sm:$0xff]
    %v751 = vld [vmem:[#allocation2 + $0xed8] sm:$0xff]
    %v752 = vld [vmem:[#allocation2 + $0xee0] sm:$0xff]
    %v753 = vld [vmem:[#allocation2 + $0xee8] sm:$0xff]
    %v754 = vld [vmem:[#allocation2 + $0xef0] sm:$0xff]
    %v755 = vld [vmem:[#allocation2 + $0xef8] sm:$0xff]
    %v756 = vld [vmem:[#allocation2 + $0xf00] sm:$0xff]
    %v757 = vld [vmem:[#allocation2 + $0xf08] sm:$0xff]
    %v758 = vld [vmem:[#allocation2 + $0xf10] sm:$0xff]
    %v759 = vld [vmem:[#allocation2 + $0xf18] sm:$0xff]
    %v760 = vld [vmem:[#allocation2 + $0xf20] sm:$0xff]
    %v761 = vld [vmem:[#allocation2 + $0xf28] sm:$0xff]
    %v762 = vld [vmem:[#allocation2 + $0xf30] sm:$0xff]
    %v763 = vld [vmem:[#allocation2 + $0xf38] sm:$0xff]
    %v764 = vld [vmem:[#allocation2 + $0xf40] sm:$0xff]
    %v765 = vld [vmem:[#allocation2 + $0xf48] sm:$0xff]
    %v766 = vld [vmem:[#allocation2 + $0xf50] sm:$0xff]
    %v767 = vld [vmem:[#allocation2 + $0xf58] sm:$0xff]
    %v768 = vld [vmem:[#allocation2 + $0xf60] sm:$0xff]
    %v769 = vld [vmem:[#allocation2 + $0xf68] sm:$0xff]
    %v770 = vld [vmem:[#allocation2 + $0xf70] sm:$0xff]
    %v771 = vld [vmem:[#allocation2 + $0xf78] sm:$0xff]
    %v772 = vld [vmem:[#allocation2 + $0xf80] sm:$0xff]
    %v773 = vld [vmem:[#allocation2 + $0xf88] sm:$0xff]
    %v774 = vld [vmem:[#allocation2 + $0xf90] sm:$0xff]
    %v775 = vld [vmem:[#allocation2 + $0xf98] sm:$0xff]
    %v776 = vld [vmem:[#allocation2 + $0xfa0] sm:$0xff]
    %v777 = vld [vmem:[#allocation2 + $0xfa8] sm:$0xff]
    %v778 = vld [vmem:[#allocation2 + $0xfb0] sm:$0xff]
    %v779 = vld [vmem:[#allocation2 + $0xfb8] sm:$0xff]
    %v780 = vld [vmem:[#allocation2 + $0xfc0] sm:$0xff]
    %v781 = vld [vmem:[#allocation2 + $0xfc8] sm:$0xff]
    %v782 = vld [vmem:[#allocation2 + $0xfd0] sm:$0xff]
    %v783 = vld [vmem:[#allocation2 + $0xfd8] sm:$0xff]
    %v784 = vld [vmem:[#allocation2 + $0xfe0] sm:$0xff]
    %v785 = vld [vmem:[#allocation2 + $0xfe8] sm:$0xff]
    %v786 = vld [vmem:[#allocation2 + $0xff0] sm:$0xff]
    %v787 = vld [vmem:[#allocation2 + $0xff8] sm:$0xff]
    %v788 = vld [vmem:[#allocation2 + $0x1000] sm:$0xff]
    %v789 = vld [vmem:[#allocation2 + $0x1008] sm:$0xff]
    %v790 = vld [vmem:[#allocation2 + $0x1010] sm:$0xff]
    %v791 = vld [vmem:[#allocation2 + $0x1018] sm:$0xff]
    %v792 = vld [vmem:[#allocation2 + $0x1020] sm:$0xff]
    %v793 = vld [vmem:[#allocation2 + $0x1028] sm:$0xff]
    %v794 = vld [vmem:[#allocation2 + $0x1030] sm:$0xff]
    %v795 = vld [vmem:[#allocation2 + $0x1038] sm:$0xff]
    %v796 = vld [vmem:[#allocation2 + $0x1040] sm:$0xff]
    %v797 = vld [vmem:[#allocation2 + $0x1048] sm:$0xff]
    %v798 = vld [vmem:[#allocation2 + $0x1050] sm:$0xff]
    %v799 = vld [vmem:[#allocation2 + $0x1058] sm:$0xff]
    %v800 = vld [vmem:[#allocation2 + $0x1060] sm:$0xff]
    %v801 = vld [vmem:[#allocation2 + $0x1068] sm:$0xff]
    %v802 = vld [vmem:[#allocation2 + $0x1070] sm:$0xff]
    %v803 = vld [vmem:[#allocation2 + $0x1078] sm:$0xff]
    %v804 = vld [vmem:[#allocation2 + $0x1080] sm:$0xff]
    %v805 = vld [vmem:[#allocation2 + $0x1088] sm:$0xff]
    %v806 = vld [vmem:[#allocation2 + $0x1090] sm:$0xff]
    %v807 = vld [vmem:[#allocation2 + $0x1098] sm:$0xff]
    %v808 = vld [vmem:[#allocation2 + $0x10a0] sm:$0xff]
    %v809 = vld [vmem:[#allocation2 + $0x10a8] sm:$0xff]
    %v810 = vld [vmem:[#allocation2 + $0x10b0] sm:$0xff]
    %v811 = vld [vmem:[#allocation2 + $0x10b8] sm:$0xff]
    %v812 = vld [vmem:[#allocation2 + $0x10c0] sm:$0xff]
    %v813 = vld [vmem:[#allocation2 + $0x10c8] sm:$0xff]
    %v814 = vld [vmem:[#allocation2 + $0x10d0] sm:$0xff]
    %v815 = vld [vmem:[#allocation2 + $0x10d8] sm:$0xff]
    %v816 = vld [vmem:[#allocation2 + $0x10e0] sm:$0xff]
    %v817 = vld [vmem:[#allocation2 + $0x10e8] sm:$0xff]
    %v818 = vld [vmem:[#allocation2 + $0x10f0] sm:$0xff]
    %v819 = vld [vmem:[#allocation2 + $0x10f8] sm:$0xff]
    %v820 = vld [vmem:[#allocation2 + $0x1100] sm:$0xff]
    %v821 = vld [vmem:[#allocation2 + $0x1108] sm:$0xff]
    %v822 = vld [vmem:[#allocation2 + $0x1110] sm:$0xff]
    %v823 = vld [vmem:[#allocation2 + $0x1118] sm:$0xff]
    %v824 = vld [vmem:[#allocation2 + $0x1120] sm:$0xff]
    %v825 = vld [vmem:[#allocation2 + $0x1128] sm:$0xff]
    %v826 = vld [vmem:[#allocation2 + $0x1130] sm:$0xff]
    %v827 = vld [vmem:[#allocation2 + $0x1138] sm:$0xff]
    %v828 = vld [vmem:[#allocation2 + $0x1140] sm:$0xff]
    %v829 = vld [vmem:[#allocation2 + $0x1148] sm:$0xff]
    %v830 = vld [vmem:[#allocation2 + $0x1150] sm:$0xff]
    %v831 = vld [vmem:[#allocation2 + $0x1158] sm:$0xff]
    %v832 = vld [vmem:[#allocation2 + $0x1160] sm:$0xff]
    %v833 = vld [vmem:[#allocation2 + $0x1168] sm:$0xff]
    %v834 = vld [vmem:[#allocation2 + $0x1170] sm:$0xff]
    %v835 = vld [vmem:[#allocation2 + $0x1178] sm:$0xff]
    %v836 = vld [vmem:[#allocation2 + $0x1180] sm:$0xff]
    %v837 = vld [vmem:[#allocation2 + $0x1188] sm:$0xff]
    %v838 = vld [vmem:[#allocation2 + $0x1190] sm:$0xff]
    %v839 = vld [vmem:[#allocation2 + $0x1198] sm:$0xff]
    %v840 = vld [vmem:[#allocation2 + $0x11a0] sm:$0xff]
    %v841 = vld [vmem:[#allocation2 + $0x11a8] sm:$0xff]
    %v842 = vld [vmem:[#allocation2 + $0x11b0] sm:$0xff]
    %v843 = vld [vmem:[#allocation2 + $0x11b8] sm:$0xff]
    %v844 = vld [vmem:[#allocation2 + $0x11c0] sm:$0xff]
    %v845 = vld [vmem:[#allocation2 + $0x11c8] sm:$0xff]
    %v846 = vld [vmem:[#allocation2 + $0x11d0] sm:$0xff]
    %v847 = vld [vmem:[#allocation2 + $0x11d8] sm:$0xff]
    %v848 = vld [vmem:[#allocation2 + $0x11e0] sm:$0xff]
    %v849 = vld [vmem:[#allocation2 + $0x11e8] sm:$0xff]
    %v850 = vld [vmem:[#allocation2 + $0x11f0] sm:$0xff]
    %v851 = vld [vmem:[#allocation2 + $0x11f8] sm:$0xff]
    %v852 = vld [vmem:[#allocation2 + $0x1200] sm:$0xff]
    %v853 = vld [vmem:[#allocation2 + $0x1208] sm:$0xff]
    %v854 = vld [vmem:[#allocation2 + $0x1210] sm:$0xff]
    %v855 = vld [vmem:[#allocation2 + $0x1218] sm:$0xff]
    %v856 = vld [vmem:[#allocation2 + $0x1220] sm:$0xff]
    %v857 = vld [vmem:[#allocation2 + $0x1228] sm:$0xff]
    %v858 = vld [vmem:[#allocation2 + $0x1230] sm:$0xff]
    %v859 = vld [vmem:[#allocation2 + $0x1238] sm:$0xff]
    %v860 = vld [vmem:[#allocation2 + $0x1240] sm:$0xff]
    %v861 = vld [vmem:[#allocation2 + $0x1248] sm:$0xff]
    %v862 = vld [vmem:[#allocation2 + $0x1250] sm:$0xff]
    %v863 = vld [vmem:[#allocation2 + $0x1258] sm:$0xff]
    %v864 = vld [vmem:[#allocation2 + $0x1260] sm:$0xff]
    %v865 = vld [vmem:[#allocation2 + $0x1268] sm:$0xff]
    %v866 = vld [vmem:[#allocation2 + $0x1270] sm:$0xff]
    %v867 = vld [vmem:[#allocation2 + $0x1278] sm:$0xff]
    %v868 = vld [vmem:[#allocation2 + $0x1280] sm:$0xff]
    %v869 = vld [vmem:[#allocation2 + $0x1288] sm:$0xff]
    %v870 = vld [vmem:[#allocation2 + $0x1290] sm:$0xff]
    %v871 = vld [vmem:[#allocation2 + $0x1298] sm:$0xff]
    %v872 = vld [vmem:[#allocation2 + $0x12a0] sm:$0xff]
    %v873 = vld [vmem:[#allocation2 + $0x12a8] sm:$0xff]
    %v874 = vld [vmem:[#allocation2 + $0x12b0] sm:$0xff]
    %v875 = vld [vmem:[#allocation2 + $0x12b8] sm:$0xff]
    %v876 = vld [vmem:[#allocation2 + $0x12c0] sm:$0xff]
    %v877 = vld [vmem:[#allocation2 + $0x12c8] sm:$0xff]
    %v878 = vld [vmem:[#allocation2 + $0x12d0] sm:$0xff]
    %v879 = vld [vmem:[#allocation2 + $0x12d8] sm:$0xff]
    %v880 = vld [vmem:[#allocation2 + $0x12e0] sm:$0xff]
    %v881 = vld [vmem:[#allocation2 + $0x12e8] sm:$0xff]
    %v882 = vld [vmem:[#allocation2 + $0x12f0] sm:$0xff]
    %v883 = vld [vmem:[#allocation2 + $0x12f8] sm:$0xff]
    %v884 = vld [vmem:[#allocation2 + $0x1300] sm:$0xff]
    %v885 = vld [vmem:[#allocation2 + $0x1308] sm:$0xff]
    %v886 = vld [vmem:[#allocation2 + $0x1310] sm:$0xff]
    %v887 = vld [vmem:[#allocation2 + $0x1318] sm:$0xff]
    %v888 = vld [vmem:[#allocation2 + $0x1320] sm:$0xff]
    %v889 = vld [vmem:[#allocation2 + $0x1328] sm:$0xff]
    %v890 = vld [vmem:[#allocation2 + $0x1330] sm:$0xff]
    %v891 = vld [vmem:[#allocation2 + $0x1338] sm:$0xff]
    %v892 = vld [vmem:[#allocation2 + $0x1340] sm:$0xff]
    %v893 = vld [vmem:[#allocation2 + $0x1348] sm:$0xff]
    %v894 = vld [vmem:[#allocation2 + $0x1350] sm:$0xff]
    %v895 = vld [vmem:[#allocation2 + $0x1358] sm:$0xff]
    %v896 = vld [vmem:[#allocation2 + $0x1360] sm:$0xff]
    %v897 = vld [vmem:[#allocation2 + $0x1368] sm:$0xff]
    %v898 = vld [vmem:[#allocation2 + $0x1370] sm:$0xff]
    %v899 = vld [vmem:[#allocation2 + $0x1378] sm:$0xff]
    %v900 = vld [vmem:[#allocation2 + $0x1380] sm:$0xff]
    %v901 = vld [vmem:[#allocation2 + $0x1388] sm:$0xff]
    %v902 = vld [vmem:[#allocation2 + $0x1390] sm:$0xff]
    %v903 = vld [vmem:[#allocation2 + $0x1398] sm:$0xff]
    %v904 = vld [vmem:[#allocation2 + $0x13a0] sm:$0xff]
    %v905 = vld [vmem:[#allocation2 + $0x13a8] sm:$0xff]
    %v906 = vld [vmem:[#allocation2 + $0x13b0] sm:$0xff]
    %v907 = vld [vmem:[#allocation2 + $0x13b8] sm:$0xff]
    %v908 = vld [vmem:[#allocation2 + $0x13c0] sm:$0xff]
    %v909 = vld [vmem:[#allocation2 + $0x13c8] sm:$0xff]
    %v910 = vld [vmem:[#allocation2 + $0x13d0] sm:$0xff]
    %v911 = vld [vmem:[#allocation2 + $0x13d8] sm:$0xff]
    %v912 = vld [vmem:[#allocation2 + $0x13e0] sm:$0xff]
    %v913 = vld [vmem:[#allocation2 + $0x13e8] sm:$0xff]
    %v914 = vld [vmem:[#allocation2 + $0x13f0] sm:$0xff]
    %v915 = vld [vmem:[#allocation2 + $0x13f8] sm:$0xff]
    %v916 = vld [vmem:[#allocation2 + $0x1400] sm:$0xff]
    %v917 = vld [vmem:[#allocation2 + $0x1408] sm:$0xff]
    %v918 = vld [vmem:[#allocation2 + $0x1410] sm:$0xff]
    %v919 = vld [vmem:[#allocation2 + $0x1418] sm:$0xff]
    %v920 = vld [vmem:[#allocation2 + $0x1420] sm:$0xff]
    %v921 = vld [vmem:[#allocation2 + $0x1428] sm:$0xff]
    %v922 = vld [vmem:[#allocation2 + $0x1430] sm:$0xff]
    %v923 = vld [vmem:[#allocation2 + $0x1438] sm:$0xff]
    %v924 = vld [vmem:[#allocation2 + $0x1440] sm:$0xff]
    %v925 = vld [vmem:[#allocation2 + $0x1448] sm:$0xff]
    %v926 = vld [vmem:[#allocation2 + $0x1450] sm:$0xff]
    %v927 = vld [vmem:[#allocation2 + $0x1458] sm:$0xff]
    %v928 = vld [vmem:[#allocation2 + $0x1460] sm:$0xff]
    %v929 = vld [vmem:[#allocation2 + $0x1468] sm:$0xff]
    %v930 = vld [vmem:[#allocation2 + $0x1470] sm:$0xff]
    %v931 = vld [vmem:[#allocation2 + $0x1478] sm:$0xff]
    %v932 = vld [vmem:[#allocation2 + $0x1480] sm:$0xff]
    %v933 = vld [vmem:[#allocation2 + $0x1488] sm:$0xff]
    %v934 = vld [vmem:[#allocation2 + $0x1490] sm:$0xff]
    %v935 = vld [vmem:[#allocation2 + $0x1498] sm:$0xff]
    %v936 = vld [vmem:[#allocation2 + $0x14a0] sm:$0xff]
    %v937 = vld [vmem:[#allocation2 + $0x14a8] sm:$0xff]
    %v938 = vld [vmem:[#allocation2 + $0x14b0] sm:$0xff]
    %v939 = vld [vmem:[#allocation2 + $0x14b8] sm:$0xff]
    %v940 = vld [vmem:[#allocation2 + $0x14c0] sm:$0xff]
    %v941 = vld [vmem:[#allocation2 + $0x14c8] sm:$0xff]
    %v942 = vld [vmem:[#allocation2 + $0x14d0] sm:$0xff]
    %v943 = vld [vmem:[#allocation2 + $0x14d8] sm:$0xff]
    %v944 = vld [vmem:[#allocation2 + $0x14e0] sm:$0xff]
    %v945 = vld [vmem:[#allocation2 + $0x14e8] sm:$0xff]
    %v946 = vld [vmem:[#allocation2 + $0x14f0] sm:$0xff]
    %v947 = vld [vmem:[#allocation2 + $0x14f8] sm:$0xff]
    %v948 = vld [vmem:[#allocation2 + $0x1500] sm:$0xff]
    %v949 = vld [vmem:[#allocation2 + $0x1508] sm:$0xff]
    %v950 = vld [vmem:[#allocation2 + $0x1510] sm:$0xff]
    %v951 = vld [vmem:[#allocation2 + $0x1518] sm:$0xff]
    %v952 = vld [vmem:[#allocation2 + $0x1520] sm:$0xff]
    %v953 = vld [vmem:[#allocation2 + $0x1528] sm:$0xff]
    %v954 = vld [vmem:[#allocation2 + $0x1530] sm:$0xff]
    %v955 = vld [vmem:[#allocation2 + $0x1538] sm:$0xff]
    %v956 = vld [vmem:[#allocation2 + $0x1540] sm:$0xff]
    %v957 = vld [vmem:[#allocation2 + $0x1548] sm:$0xff]
    %v958 = vld [vmem:[#allocation2 + $0x1550] sm:$0xff]
    %v959 = vld [vmem:[#allocation2 + $0x1558] sm:$0xff]
    %v960 = vld [vmem:[#allocation2 + $0x1560] sm:$0xff]
    %v961 = vld [vmem:[#allocation2 + $0x1568] sm:$0xff]
    %v962 = vld [vmem:[#allocation2 + $0x1570] sm:$0xff]
    %v963 = vld [vmem:[#allocation2 + $0x1578] sm:$0xff]
    %v964 = vld [vmem:[#allocation2 + $0x1580] sm:$0xff]
    %v965 = vld [vmem:[#allocation2 + $0x1588] sm:$0xff]
    %v966 = vld [vmem:[#allocation2 + $0x1590] sm:$0xff]
    %v967 = vld [vmem:[#allocation2 + $0x1598] sm:$0xff]
    %v968 = vld [vmem:[#allocation2 + $0x15a0] sm:$0xff]
    %v969 = vld [vmem:[#allocation2 + $0x15a8] sm:$0xff]
    %v970 = vld [vmem:[#allocation2 + $0x15b0] sm:$0xff]
    %v971 = vld [vmem:[#allocation2 + $0x15b8] sm:$0xff]
    %v972 = vld [vmem:[#allocation2 + $0x15c0] sm:$0xff]
    %v973 = vld [vmem:[#allocation2 + $0x15c8] sm:$0xff]
    %v974 = vld [vmem:[#allocation2 + $0x15d0] sm:$0xff]
    %v975 = vld [vmem:[#allocation2 + $0x15d8] sm:$0xff]
    %v976 = vld [vmem:[#allocation2 + $0x15e0] sm:$0xff]
    %v977 = vld [vmem:[#allocation2 + $0x15e8] sm:$0xff]
    %v978 = vld [vmem:[#allocation2 + $0x15f0] sm:$0xff]
    %v979 = vld [vmem:[#allocation2 + $0x15f8] sm:$0xff]
    %v980 = vld [vmem:[#allocation2 + $0x1600] sm:$0xff]
    %v981 = vld [vmem:[#allocation2 + $0x1608] sm:$0xff]
    %v982 = vld [vmem:[#allocation2 + $0x1610] sm:$0xff]
    %v983 = vld [vmem:[#allocation2 + $0x1618] sm:$0xff]
    %v984 = vld [vmem:[#allocation2 + $0x1620] sm:$0xff]
    %v985 = vld [vmem:[#allocation2 + $0x1628] sm:$0xff]
    %v986 = vld [vmem:[#allocation2 + $0x1630] sm:$0xff]
    %v987 = vld [vmem:[#allocation2 + $0x1638] sm:$0xff]
    %v988 = vld [vmem:[#allocation2 + $0x1640] sm:$0xff]
    %v989 = vld [vmem:[#allocation2 + $0x1648] sm:$0xff]
    %v990 = vld [vmem:[#allocation2 + $0x1650] sm:$0xff]
    %v991 = vld [vmem:[#allocation2 + $0x1658] sm:$0xff]
    %v992 = vld [vmem:[#allocation2 + $0x1660] sm:$0xff]
    %v993 = vld [vmem:[#allocation2 + $0x1668] sm:$0xff]
    %v994 = vld [vmem:[#allocation2 + $0x1670] sm:$0xff]
    %v995 = vld [vmem:[#allocation2 + $0x1678] sm:$0xff]
    %v996 = vld [vmem:[#allocation2 + $0x1680] sm:$0xff]
    %v997 = vld [vmem:[#allocation2 + $0x1688] sm:$0xff]
    %v998 = vld [vmem:[#allocation2 + $0x1690] sm:$0xff]
    %v999 = vld [vmem:[#allocation2 + $0x1698] sm:$0xff]
    %v1000 = vld [vmem:[#allocation2 + $0x16a0] sm:$0xff]
    %v1001 = vld [vmem:[#allocation2 + $0x16a8] sm:$0xff]
    %v1002 = vld [vmem:[#allocation2 + $0x16b0] sm:$0xff]
    %v1003 = vld [vmem:[#allocation2 + $0x16b8] sm:$0xff]
    %v1004 = vld [vmem:[#allocation2 + $0x16c0] sm:$0xff]
    %v1005 = vld [vmem:[#allocation2 + $0x16c8] sm:$0xff]
    %v1006 = vld [vmem:[#allocation2 + $0x16d0] sm:$0xff]
    %v1007 = vld [vmem:[#allocation2 + $0x16d8] sm:$0xff]
    %v1008 = vld [vmem:[#allocation2 + $0x16e0] sm:$0xff]
    %v1009 = vld [vmem:[#allocation2 + $0x16e8] sm:$0xff]
    %v1010 = vld [vmem:[#allocation2 + $0x16f0] sm:$0xff]
    %v1011 = vld [vmem:[#allocation2 + $0x16f8] sm:$0xff]
    %v1012 = vld [vmem:[#allocation2 + $0x1700] sm:$0xff]
    %v1013 = vld [vmem:[#allocation2 + $0x1708] sm:$0xff]
    %v1014 = vld [vmem:[#allocation2 + $0x1710] sm:$0xff]
    %v1015 = vld [vmem:[#allocation2 + $0x1718] sm:$0xff]
    %v1016 = vld [vmem:[#allocation2 + $0x1720] sm:$0xff]
    %v1017 = vld [vmem:[#allocation2 + $0x1728] sm:$0xff]
    %v1018 = vld [vmem:[#allocation2 + $0x1730] sm:$0xff]
    %v1019 = vld [vmem:[#allocation2 + $0x1738] sm:$0xff]
    %v1020 = vld [vmem:[#allocation2 + $0x1740] sm:$0xff]
    %v1021 = vld [vmem:[#allocation2 + $0x1748] sm:$0xff]
    %v1022 = vld [vmem:[#allocation2 + $0x1750] sm:$0xff]
    %v1023 = vld [vmem:[#allocation2 + $0x1758] sm:$0xff]
    %v1024 = vld [vmem:[#allocation2 + $0x1760] sm:$0xff]
    %v1025 = vld [vmem:[#allocation2 + $0x1768] sm:$0xff]
    %v1026 = vld [vmem:[#allocation2 + $0x1770] sm:$0xff]
    %v1027 = vld [vmem:[#allocation2 + $0x1778] sm:$0xff]
    %v1028 = vld [vmem:[#allocation2 + $0x1780] sm:$0xff]
    %v1029 = vld [vmem:[#allocation2 + $0x1788] sm:$0xff]
    %v1030 = vld [vmem:[#allocation2 + $0x1790] sm:$0xff]
    %v1031 = vld [vmem:[#allocation2 + $0x1798] sm:$0xff]
    %v1032 = vld [vmem:[#allocation2 + $0x17a0] sm:$0xff]
    %v1033 = vld [vmem:[#allocation2 + $0x17a8] sm:$0xff]
    %v1034 = vld [vmem:[#allocation2 + $0x17b0] sm:$0xff]
    %v1035 = vld [vmem:[#allocation2 + $0x17b8] sm:$0xff]
    %v1036 = vld [vmem:[#allocation2 + $0x17c0] sm:$0xff]
    %v1037 = vld [vmem:[#allocation2 + $0x17c8] sm:$0xff]
    %v1038 = vld [vmem:[#allocation2 + $0x17d0] sm:$0xff]
    %v1039 = vld [vmem:[#allocation2 + $0x17d8] sm:$0xff]
    %v1040 = vld [vmem:[#allocation2 + $0x17e0] sm:$0xff]
    %v1041 = vld [vmem:[#allocation2 + $0x17e8] sm:$0xff]
    %v1042 = vld [vmem:[#allocation2 + $0x17f0] sm:$0xff]
    %v1043 = vld [vmem:[#allocation2 + $0x17f8] sm:$0xff]
    %v1044 = vld [vmem:[#allocation2 + $0x1800] sm:$0xff]
    %v1045 = vld [vmem:[#allocation2 + $0x1808] sm:$0xff]
    %v1046 = vld [vmem:[#allocation2 + $0x1810] sm:$0xff]
    %v1047 = vld [vmem:[#allocation2 + $0x1818] sm:$0xff]
    %v1048 = vld [vmem:[#allocation2 + $0x1820] sm:$0xff]
    %v1049 = vld [vmem:[#allocation2 + $0x1828] sm:$0xff]
    %v1050 = vld [vmem:[#allocation2 + $0x1830] sm:$0xff]
    %v1051 = vld [vmem:[#allocation2 + $0x1838] sm:$0xff]
    %v1052 = vld [vmem:[#allocation2 + $0x1840] sm:$0xff]
    %v1053 = vld [vmem:[#allocation2 + $0x1848] sm:$0xff]
    %v1054 = vld [vmem:[#allocation2 + $0x1850] sm:$0xff]
    %v1055 = vld [vmem:[#allocation2 + $0x1858] sm:$0xff]
    %v1056 = vld [vmem:[#allocation2 + $0x1860] sm:$0xff]
    %v1057 = vld [vmem:[#allocation2 + $0x1868] sm:$0xff]
    %v1058 = vld [vmem:[#allocation2 + $0x1870] sm:$0xff]
    %v1059 = vld [vmem:[#allocation2 + $0x1878] sm:$0xff]
    %v1060 = vld [vmem:[#allocation2 + $0x1880] sm:$0xff]
    %v1061 = vld [vmem:[#allocation2 + $0x1888] sm:$0xff]
    %v1062 = vld [vmem:[#allocation2 + $0x1890] sm:$0xff]
    %v1063 = vld [vmem:[#allocation2 + $0x1898] sm:$0xff]
    %v1064 = vld [vmem:[#allocation2 + $0x18a0] sm:$0xff]
    %v1065 = vld [vmem:[#allocation2 + $0x18a8] sm:$0xff]
    %v1066 = vld [vmem:[#allocation2 + $0x18b0] sm:$0xff]
    %v1067 = vld [vmem:[#allocation2 + $0x18b8] sm:$0xff]
    %v1068 = vld [vmem:[#allocation2 + $0x18c0] sm:$0xff]
    %v1069 = vld [vmem:[#allocation2 + $0x18c8] sm:$0xff]
    %v1070 = vld [vmem:[#allocation2 + $0x18d0] sm:$0xff]
    %v1071 = vld [vmem:[#allocation2 + $0x18d8] sm:$0xff]
    %v1072 = vld [vmem:[#allocation2 + $0x18e0] sm:$0xff]
    %v1073 = vld [vmem:[#allocation2 + $0x18e8] sm:$0xff]
    %v1074 = vld [vmem:[#allocation2 + $0x18f0] sm:$0xff]
    %v1075 = vld [vmem:[#allocation2 + $0x18f8] sm:$0xff]
    %v1076 = vld [vmem:[#allocation4] sm:$0xf]
    %v1078 = vlaneseq
    %v1079 = vshrl.u32 %v1078, 7
    %v1080 = vsub.s32 0, %v1079
    %v1081 = vrot.slane %v1076, %v1080
    %v1082 = vlaneseq
    %v1083 = vshrl.u32 %v1082, 7
    %v1084 = vsub.s32 1, %v1083
    %v1085 = vrot.slane %v1076, %v1084
    %v1086 = vlaneseq
    %v1087 = vshrl.u32 %v1086, 7
    %v1088 = vsub.s32 2, %v1087
    %v1089 = vrot.slane %v1076, %v1088
    %v1090 = vlaneseq
    %v1091 = vshrl.u32 %v1090, 7
    %v1092 = vsub.s32 3, %v1091
    %v1093 = vrot.slane %v1076, %v1092
    %v1898 = vunpack.c.l.b16 %v276
    %v1899 = vunpack.c.h.b16 %v276
    %v1900 = vunpack.c.l.b16 %v277
    %v1901 = vunpack.c.h.b16 %v277
    %v1902 = vunpack.c.l.b16 %v278
    %v1903 = vunpack.c.h.b16 %v278
    %v1904 = vunpack.c.l.b16 %v279
    %v1905 = vunpack.c.h.b16 %v279
    %v1906 = vunpack.c.l.b16 %v280
    %v1907 = vunpack.c.h.b16 %v280
    %v1908 = vunpack.c.l.b16 %v281
    %v1909 = vunpack.c.h.b16 %v281
    %v1910 = vunpack.c.l.b16 %v282
    %v1911 = vunpack.c.h.b16 %v282
    %v1912 = vunpack.c.l.b16 %v283
    %v1913 = vunpack.c.h.b16 %v283
    %v1914 = vunpack.c.l.b16 %v284
    %v1915 = vunpack.c.h.b16 %v284
    %v1916 = vunpack.c.l.b16 %v285
    %v1917 = vunpack.c.h.b16 %v285
    %v1918 = vunpack.c.l.b16 %v286
    %v1919 = vunpack.c.h.b16 %v286
    %v1920 = vunpack.c.l.b16 %v287
    %v1921 = vunpack.c.h.b16 %v287
    %v1922 = vunpack.c.l.b16 %v288
    %v1923 = vunpack.c.h.b16 %v288
    %v1924 = vunpack.c.l.b16 %v289
    %v1925 = vunpack.c.h.b16 %v289
    %v1926 = vunpack.c.l.b16 %v290
    %v1927 = vunpack.c.h.b16 %v290
    %v1928 = vunpack.c.l.b16 %v291
    %v1929 = vunpack.c.h.b16 %v291
    %v1930 = vunpack.c.l.b16 %v292
    %v1931 = vunpack.c.h.b16 %v292
    %v1932 = vunpack.c.l.b16 %v293
    %v1933 = vunpack.c.h.b16 %v293
    %v1934 = vunpack.c.l.b16 %v294
    %v1935 = vunpack.c.h.b16 %v294
    %v1936 = vunpack.c.l.b16 %v295
    %v1937 = vunpack.c.h.b16 %v295
    %v1938 = vunpack.c.l.b16 %v296
    %v1939 = vunpack.c.h.b16 %v296
    %v1940 = vunpack.c.l.b16 %v297
    %v1941 = vunpack.c.h.b16 %v297
    %v1942 = vunpack.c.l.b16 %v298
    %v1943 = vunpack.c.h.b16 %v298
    %v1944 = vunpack.c.l.b16 %v299
    %v1945 = vunpack.c.h.b16 %v299
    %v1946 = vunpack.c.l.b16 %v300
    %v1947 = vunpack.c.h.b16 %v300
    %v1948 = vunpack.c.l.b16 %v301
    %v1949 = vunpack.c.h.b16 %v301
    %v1950 = vunpack.c.l.b16 %v302
    %v1951 = vunpack.c.h.b16 %v302
    %v1952 = vunpack.c.l.b16 %v303
    %v1953 = vunpack.c.h.b16 %v303
    %v1954 = vunpack.c.l.b16 %v304
    %v1955 = vunpack.c.h.b16 %v304
    %v1956 = vunpack.c.l.b16 %v305
    %v1957 = vunpack.c.h.b16 %v305
    %v1958 = vunpack.c.l.b16 %v306
    %v1959 = vunpack.c.h.b16 %v306
    %v1960 = vunpack.c.l.b16 %v307
    %v1961 = vunpack.c.h.b16 %v307
    %v1962 = vunpack.c.l.b16 %v308
    %v1963 = vunpack.c.h.b16 %v308
    %v1964 = vunpack.c.l.b16 %v309
    %v1965 = vunpack.c.h.b16 %v309
    %v1966 = vunpack.c.l.b16 %v310
    %v1967 = vunpack.c.h.b16 %v310
    %v1968 = vunpack.c.l.b16 %v311
    %v1969 = vunpack.c.h.b16 %v311
    %v1970 = vunpack.c.l.b16 %v312
    %v1971 = vunpack.c.h.b16 %v312
    %v1972 = vunpack.c.l.b16 %v313
    %v1973 = vunpack.c.h.b16 %v313
    %v1974 = vunpack.c.l.b16 %v314
    %v1975 = vunpack.c.h.b16 %v314
    %v1976 = vunpack.c.l.b16 %v315
    %v1977 = vunpack.c.h.b16 %v315
    %v1978 = vunpack.c.l.b16 %v316
    %v1979 = vunpack.c.h.b16 %v316
    %v1980 = vunpack.c.l.b16 %v317
    %v1981 = vunpack.c.h.b16 %v317
    %v1982 = vunpack.c.l.b16 %v318
    %v1983 = vunpack.c.h.b16 %v318
    %v1984 = vunpack.c.l.b16 %v319
    %v1985 = vunpack.c.h.b16 %v319
    %v1986 = vunpack.c.l.b16 %v320
    %v1987 = vunpack.c.h.b16 %v320
    %v1988 = vunpack.c.l.b16 %v321
    %v1989 = vunpack.c.h.b16 %v321
    %v1990 = vunpack.c.l.b16 %v322
    %v1991 = vunpack.c.h.b16 %v322
    %v1992 = vunpack.c.l.b16 %v323
    %v1993 = vunpack.c.h.b16 %v323
    %v1994 = vunpack.c.l.b16 %v324
    %v1995 = vunpack.c.h.b16 %v324
    %v1996 = vunpack.c.l.b16 %v325
    %v1997 = vunpack.c.h.b16 %v325
    %v1998 = vunpack.c.l.b16 %v326
    %v1999 = vunpack.c.h.b16 %v326
    %v2000 = vunpack.c.l.b16 %v327
    %v2001 = vunpack.c.h.b16 %v327
    %v2002 = vunpack.c.l.b16 %v328
    %v2003 = vunpack.c.h.b16 %v328
    %v2004 = vunpack.c.l.b16 %v329
    %v2005 = vunpack.c.h.b16 %v329
    %v2006 = vunpack.c.l.b16 %v330
    %v2007 = vunpack.c.h.b16 %v330
    %v2008 = vunpack.c.l.b16 %v331
    %v2009 = vunpack.c.h.b16 %v331
    %v2010 = vunpack.c.l.b16 %v332
    %v2011 = vunpack.c.h.b16 %v332
    %v2012 = vunpack.c.l.b16 %v333
    %v2013 = vunpack.c.h.b16 %v333
    %v2014 = vunpack.c.l.b16 %v334
    %v2015 = vunpack.c.h.b16 %v334
    %v2016 = vunpack.c.l.b16 %v335
    %v2017 = vunpack.c.h.b16 %v335
    %v2018 = vunpack.c.l.b16 %v336
    %v2019 = vunpack.c.h.b16 %v336
    %v2020 = vunpack.c.l.b16 %v337
    %v2021 = vunpack.c.h.b16 %v337
    %v2022 = vunpack.c.l.b16 %v338
    %v2023 = vunpack.c.h.b16 %v338
    %v2024 = vunpack.c.l.b16 %v339
    %v2025 = vunpack.c.h.b16 %v339
    %v2026 = vunpack.c.l.b16 %v340
    %v2027 = vunpack.c.h.b16 %v340
    %v2028 = vunpack.c.l.b16 %v341
    %v2029 = vunpack.c.h.b16 %v341
    %v2030 = vunpack.c.l.b16 %v342
    %v2031 = vunpack.c.h.b16 %v342
    %v2032 = vunpack.c.l.b16 %v343
    %v2033 = vunpack.c.h.b16 %v343
    %v2034 = vunpack.c.l.b16 %v344
    %v2035 = vunpack.c.h.b16 %v344
    %v2036 = vunpack.c.l.b16 %v345
    %v2037 = vunpack.c.h.b16 %v345
    %v2038 = vunpack.c.l.b16 %v346
    %v2039 = vunpack.c.h.b16 %v346
    %v2040 = vunpack.c.l.b16 %v347
    %v2041 = vunpack.c.h.b16 %v347
    %v2042 = vunpack.c.l.b16 %v348
    %v2043 = vunpack.c.h.b16 %v348
    %v2044 = vunpack.c.l.b16 %v349
    %v2045 = vunpack.c.h.b16 %v349
    %v2046 = vunpack.c.l.b16 %v350
    %v2047 = vunpack.c.h.b16 %v350
    %v2048 = vunpack.c.l.b16 %v351
    %v2049 = vunpack.c.h.b16 %v351
    %v2050 = vunpack.c.l.b16 %v352
    %v2051 = vunpack.c.h.b16 %v352
    %v2052 = vunpack.c.l.b16 %v353
    %v2053 = vunpack.c.h.b16 %v353
    %v2054 = vunpack.c.l.b16 %v354
    %v2055 = vunpack.c.h.b16 %v354
    %v2056 = vunpack.c.l.b16 %v355
    %v2057 = vunpack.c.h.b16 %v355
    %v2058 = vunpack.c.l.b16 %v356
    %v2059 = vunpack.c.h.b16 %v356
    %v2060 = vunpack.c.l.b16 %v357
    %v2061 = vunpack.c.h.b16 %v357
    %v2062 = vunpack.c.l.b16 %v358
    %v2063 = vunpack.c.h.b16 %v358
    %v2064 = vunpack.c.l.b16 %v359
    %v2065 = vunpack.c.h.b16 %v359
    %v2066 = vunpack.c.l.b16 %v360
    %v2067 = vunpack.c.h.b16 %v360
    %v2068 = vunpack.c.l.b16 %v361
    %v2069 = vunpack.c.h.b16 %v361
    %v2070 = vunpack.c.l.b16 %v362
    %v2071 = vunpack.c.h.b16 %v362
    %v2072 = vunpack.c.l.b16 %v363
    %v2073 = vunpack.c.h.b16 %v363
    %v2074 = vunpack.c.l.b16 %v364
    %v2075 = vunpack.c.h.b16 %v364
    %v2076 = vunpack.c.l.b16 %v365
    %v2077 = vunpack.c.h.b16 %v365
    %v2078 = vunpack.c.l.b16 %v366
    %v2079 = vunpack.c.h.b16 %v366
    %v2080 = vunpack.c.l.b16 %v367
    %v2081 = vunpack.c.h.b16 %v367
    %v2082 = vunpack.c.l.b16 %v368
    %v2083 = vunpack.c.h.b16 %v368
    %v2084 = vunpack.c.l.b16 %v369
    %v2085 = vunpack.c.h.b16 %v369
    %v2086 = vunpack.c.l.b16 %v370
    %v2087 = vunpack.c.h.b16 %v370
    %v2088 = vunpack.c.l.b16 %v371
    %v2089 = vunpack.c.h.b16 %v371
    %v2090 = vunpack.c.l.b16 %v372
    %v2091 = vunpack.c.h.b16 %v372
    %v2092 = vunpack.c.l.b16 %v373
    %v2093 = vunpack.c.h.b16 %v373
    %v2094 = vunpack.c.l.b16 %v374
    %v2095 = vunpack.c.h.b16 %v374
    %v2096 = vunpack.c.l.b16 %v375
    %v2097 = vunpack.c.h.b16 %v375
    %v2098 = vunpack.c.l.b16 %v376
    %v2099 = vunpack.c.h.b16 %v376
    %v2100 = vunpack.c.l.b16 %v377
    %v2101 = vunpack.c.h.b16 %v377
    %v2102 = vunpack.c.l.b16 %v378
    %v2103 = vunpack.c.h.b16 %v378
    %v2104 = vunpack.c.l.b16 %v379
    %v2105 = vunpack.c.h.b16 %v379
    %v2106 = vunpack.c.l.b16 %v380
    %v2107 = vunpack.c.h.b16 %v380
    %v2108 = vunpack.c.l.b16 %v381
    %v2109 = vunpack.c.h.b16 %v381
    %v2110 = vunpack.c.l.b16 %v382
    %v2111 = vunpack.c.h.b16 %v382
    %v2112 = vunpack.c.l.b16 %v383
    %v2113 = vunpack.c.h.b16 %v383
    %v2114 = vunpack.c.l.b16 %v384
    %v2115 = vunpack.c.h.b16 %v384
    %v2116 = vunpack.c.l.b16 %v385
    %v2117 = vunpack.c.h.b16 %v385
    %v2118 = vunpack.c.l.b16 %v386
    %v2119 = vunpack.c.h.b16 %v386
    %v2120 = vunpack.c.l.b16 %v387
    %v2121 = vunpack.c.h.b16 %v387
    %v2122 = vunpack.c.l.b16 %v388
    %v2123 = vunpack.c.h.b16 %v388
    %v2124 = vunpack.c.l.b16 %v389
    %v2125 = vunpack.c.h.b16 %v389
    %v2126 = vunpack.c.l.b16 %v390
    %v2127 = vunpack.c.h.b16 %v390
    %v2128 = vunpack.c.l.b16 %v391
    %v2129 = vunpack.c.h.b16 %v391
    %v2130 = vunpack.c.l.b16 %v392
    %v2131 = vunpack.c.h.b16 %v392
    %v2132 = vunpack.c.l.b16 %v393
    %v2133 = vunpack.c.h.b16 %v393
    %v2134 = vunpack.c.l.b16 %v394
    %v2135 = vunpack.c.h.b16 %v394
    %v2136 = vunpack.c.l.b16 %v395
    %v2137 = vunpack.c.h.b16 %v395
    %v2138 = vunpack.c.l.b16 %v396
    %v2139 = vunpack.c.h.b16 %v396
    %v2140 = vunpack.c.l.b16 %v397
    %v2141 = vunpack.c.h.b16 %v397
    %v2142 = vunpack.c.l.b16 %v398
    %v2143 = vunpack.c.h.b16 %v398
    %v2144 = vunpack.c.l.b16 %v399
    %v2145 = vunpack.c.h.b16 %v399
    %v2146 = vunpack.c.l.b16 %v400
    %v2147 = vunpack.c.h.b16 %v400
    %v2148 = vunpack.c.l.b16 %v401
    %v2149 = vunpack.c.h.b16 %v401
    %v2150 = vunpack.c.l.b16 %v402
    %v2151 = vunpack.c.h.b16 %v402
    %v2152 = vunpack.c.l.b16 %v403
    %v2153 = vunpack.c.h.b16 %v403
    %v2154 = vunpack.c.l.b16 %v404
    %v2155 = vunpack.c.h.b16 %v404
    %v2156 = vunpack.c.l.b16 %v405
    %v2157 = vunpack.c.h.b16 %v405
    %v2158 = vunpack.c.l.b16 %v406
    %v2159 = vunpack.c.h.b16 %v406
    %v2160 = vunpack.c.l.b16 %v407
    %v2161 = vunpack.c.h.b16 %v407
    %v2162 = vunpack.c.l.b16 %v408
    %v2163 = vunpack.c.h.b16 %v408
    %v2164 = vunpack.c.l.b16 %v409
    %v2165 = vunpack.c.h.b16 %v409
    %v2166 = vunpack.c.l.b16 %v410
    %v2167 = vunpack.c.h.b16 %v410
    %v2168 = vunpack.c.l.b16 %v411
    %v2169 = vunpack.c.h.b16 %v411
    %v2170 = vunpack.c.l.b16 %v412
    %v2171 = vunpack.c.h.b16 %v412
    %v2172 = vunpack.c.l.b16 %v413
    %v2173 = vunpack.c.h.b16 %v413
    %v2174 = vunpack.c.l.b16 %v414
    %v2175 = vunpack.c.h.b16 %v414
    %v2176 = vunpack.c.l.b16 %v415
    %v2177 = vunpack.c.h.b16 %v415
    %v2178 = vunpack.c.l.b16 %v416
    %v2179 = vunpack.c.h.b16 %v416
    %v2180 = vunpack.c.l.b16 %v417
    %v2181 = vunpack.c.h.b16 %v417
    %v2182 = vunpack.c.l.b16 %v418
    %v2183 = vunpack.c.h.b16 %v418
    %v2184 = vunpack.c.l.b16 %v419
    %v2185 = vunpack.c.h.b16 %v419
    %v2186 = vunpack.c.l.b16 %v420
    %v2187 = vunpack.c.h.b16 %v420
    %v2188 = vunpack.c.l.b16 %v421
    %v2189 = vunpack.c.h.b16 %v421
    %v2190 = vunpack.c.l.b16 %v422
    %v2191 = vunpack.c.h.b16 %v422
    %v2192 = vunpack.c.l.b16 %v423
    %v2193 = vunpack.c.h.b16 %v423
    %v2194 = vunpack.c.l.b16 %v424
    %v2195 = vunpack.c.h.b16 %v424
    %v2196 = vunpack.c.l.b16 %v425
    %v2197 = vunpack.c.h.b16 %v425
    %v2198 = vunpack.c.l.b16 %v426
    %v2199 = vunpack.c.h.b16 %v426
    %v2200 = vunpack.c.l.b16 %v427
    %v2201 = vunpack.c.h.b16 %v427
    %v2202 = vunpack.c.l.b16 %v428
    %v2203 = vunpack.c.h.b16 %v428
    %v2204 = vunpack.c.l.b16 %v429
    %v2205 = vunpack.c.h.b16 %v429
    %v2206 = vunpack.c.l.b16 %v430
    %v2207 = vunpack.c.h.b16 %v430
    %v2208 = vunpack.c.l.b16 %v431
    %v2209 = vunpack.c.h.b16 %v431
    %v2210 = vunpack.c.l.b16 %v432
    %v2211 = vunpack.c.h.b16 %v432
    %v2212 = vunpack.c.l.b16 %v433
    %v2213 = vunpack.c.h.b16 %v433
    %v2214 = vunpack.c.l.b16 %v434
    %v2215 = vunpack.c.h.b16 %v434
    %v2216 = vunpack.c.l.b16 %v435
    %v2217 = vunpack.c.h.b16 %v435
    %v2218 = vunpack.c.l.b16 %v436
    %v2219 = vunpack.c.h.b16 %v436
    %v2220 = vunpack.c.l.b16 %v437
    %v2221 = vunpack.c.h.b16 %v437
    %v2222 = vunpack.c.l.b16 %v438
    %v2223 = vunpack.c.h.b16 %v438
    %v2224 = vunpack.c.l.b16 %v439
    %v2225 = vunpack.c.h.b16 %v439
    %v2226 = vunpack.c.l.b16 %v440
    %v2227 = vunpack.c.h.b16 %v440
    %v2228 = vunpack.c.l.b16 %v441
    %v2229 = vunpack.c.h.b16 %v441
    %v2230 = vunpack.c.l.b16 %v442
    %v2231 = vunpack.c.h.b16 %v442
    %v2232 = vunpack.c.l.b16 %v443
    %v2233 = vunpack.c.h.b16 %v443
    %v2234 = vunpack.c.l.b16 %v444
    %v2235 = vunpack.c.h.b16 %v444
    %v2236 = vunpack.c.l.b16 %v445
    %v2237 = vunpack.c.h.b16 %v445
    %v2238 = vunpack.c.l.b16 %v446
    %v2239 = vunpack.c.h.b16 %v446
    %v2240 = vunpack.c.l.b16 %v447
    %v2241 = vunpack.c.h.b16 %v447
    %v2242 = vunpack.c.l.b16 %v448
    %v2243 = vunpack.c.h.b16 %v448
    %v2244 = vunpack.c.l.b16 %v449
    %v2245 = vunpack.c.h.b16 %v449
    %v2246 = vunpack.c.l.b16 %v450
    %v2247 = vunpack.c.h.b16 %v450
    %v2248 = vunpack.c.l.b16 %v451
    %v2249 = vunpack.c.h.b16 %v451
    %v2250 = vunpack.c.l.b16 %v452
    %v2251 = vunpack.c.h.b16 %v452
    %v2252 = vunpack.c.l.b16 %v453
    %v2253 = vunpack.c.h.b16 %v453
    %v2254 = vunpack.c.l.b16 %v454
    %v2255 = vunpack.c.h.b16 %v454
    %v2256 = vunpack.c.l.b16 %v455
    %v2257 = vunpack.c.h.b16 %v455
    %v2258 = vunpack.c.l.b16 %v456
    %v2259 = vunpack.c.h.b16 %v456
    %v2260 = vunpack.c.l.b16 %v457
    %v2261 = vunpack.c.h.b16 %v457
    %v2262 = vunpack.c.l.b16 %v458
    %v2263 = vunpack.c.h.b16 %v458
    %v2264 = vunpack.c.l.b16 %v459
    %v2265 = vunpack.c.h.b16 %v459
    %v2266 = vunpack.c.l.b16 %v460
    %v2267 = vunpack.c.h.b16 %v460
    %v2268 = vunpack.c.l.b16 %v461
    %v2269 = vunpack.c.h.b16 %v461
    %v2270 = vunpack.c.l.b16 %v462
    %v2271 = vunpack.c.h.b16 %v462
    %v2272 = vunpack.c.l.b16 %v463
    %v2273 = vunpack.c.h.b16 %v463
    %v2274 = vunpack.c.l.b16 %v464
    %v2275 = vunpack.c.h.b16 %v464
    %v2276 = vunpack.c.l.b16 %v465
    %v2277 = vunpack.c.h.b16 %v465
    %v2278 = vunpack.c.l.b16 %v466
    %v2279 = vunpack.c.h.b16 %v466
    %v2280 = vunpack.c.l.b16 %v467
    %v2281 = vunpack.c.h.b16 %v467
    %v2282 = vunpack.c.l.b16 %v468
    %v2283 = vunpack.c.h.b16 %v468
    %v2284 = vunpack.c.l.b16 %v469
    %v2285 = vunpack.c.h.b16 %v469
    %v2286 = vunpack.c.l.b16 %v470
    %v2287 = vunpack.c.h.b16 %v470
    %v2288 = vunpack.c.l.b16 %v471
    %v2289 = vunpack.c.h.b16 %v471
    %v2290 = vunpack.c.l.b16 %v472
    %v2291 = vunpack.c.h.b16 %v472
    %v2292 = vunpack.c.l.b16 %v473
    %v2293 = vunpack.c.h.b16 %v473
    %v2294 = vunpack.c.l.b16 %v474
    %v2295 = vunpack.c.h.b16 %v474
    %v2296 = vunpack.c.l.b16 %v475
    %v2297 = vunpack.c.h.b16 %v475
    %v2298 = vunpack.c.l.b16 %v476
    %v2299 = vunpack.c.h.b16 %v476
    %v2300 = vunpack.c.l.b16 %v477
    %v2301 = vunpack.c.h.b16 %v477
    %v2302 = vunpack.c.l.b16 %v478
    %v2303 = vunpack.c.h.b16 %v478
    %v2304 = vunpack.c.l.b16 %v479
    %v2305 = vunpack.c.h.b16 %v479
    %v2306 = vunpack.c.l.b16 %v480
    %v2307 = vunpack.c.h.b16 %v480
    %v2308 = vunpack.c.l.b16 %v481
    %v2309 = vunpack.c.h.b16 %v481
    %v2310 = vunpack.c.l.b16 %v482
    %v2311 = vunpack.c.h.b16 %v482
    %v2312 = vunpack.c.l.b16 %v483
    %v2313 = vunpack.c.h.b16 %v483
    %v2314 = vunpack.c.l.b16 %v484
    %v2315 = vunpack.c.h.b16 %v484
    %v2316 = vunpack.c.l.b16 %v485
    %v2317 = vunpack.c.h.b16 %v485
    %v2318 = vunpack.c.l.b16 %v486
    %v2319 = vunpack.c.h.b16 %v486
    %v2320 = vunpack.c.l.b16 %v487
    %v2321 = vunpack.c.h.b16 %v487
    %v2322 = vunpack.c.l.b16 %v488
    %v2323 = vunpack.c.h.b16 %v488
    %v2324 = vunpack.c.l.b16 %v489
    %v2325 = vunpack.c.h.b16 %v489
    %v2326 = vunpack.c.l.b16 %v490
    %v2327 = vunpack.c.h.b16 %v490
    %v2328 = vunpack.c.l.b16 %v491
    %v2329 = vunpack.c.h.b16 %v491
    %v2330 = vunpack.c.l.b16 %v492
    %v2331 = vunpack.c.h.b16 %v492
    %v2332 = vunpack.c.l.b16 %v493
    %v2333 = vunpack.c.h.b16 %v493
    %v2334 = vunpack.c.l.b16 %v494
    %v2335 = vunpack.c.h.b16 %v494
    %v2336 = vunpack.c.l.b16 %v495
    %v2337 = vunpack.c.h.b16 %v495
    %v2338 = vunpack.c.l.b16 %v496
    %v2339 = vunpack.c.h.b16 %v496
    %v2340 = vunpack.c.l.b16 %v497
    %v2341 = vunpack.c.h.b16 %v497
    %v2342 = vunpack.c.l.b16 %v498
    %v2343 = vunpack.c.h.b16 %v498
    %v2344 = vunpack.c.l.b16 %v499
    %v2345 = vunpack.c.h.b16 %v499
    %v2346 = vunpack.c.l.b16 %v500
    %v2347 = vunpack.c.h.b16 %v500
    %v2348 = vunpack.c.l.b16 %v501
    %v2349 = vunpack.c.h.b16 %v501
    %v2350 = vunpack.c.l.b16 %v502
    %v2351 = vunpack.c.h.b16 %v502
    %v2352 = vunpack.c.l.b16 %v503
    %v2353 = vunpack.c.h.b16 %v503
    %v2354 = vunpack.c.l.b16 %v504
    %v2355 = vunpack.c.h.b16 %v504
    %v2356 = vunpack.c.l.b16 %v505
    %v2357 = vunpack.c.h.b16 %v505
    %v2358 = vunpack.c.l.b16 %v506
    %v2359 = vunpack.c.h.b16 %v506
    %v2360 = vunpack.c.l.b16 %v507
    %v2361 = vunpack.c.h.b16 %v507
    %v2362 = vunpack.c.l.b16 %v508
    %v2363 = vunpack.c.h.b16 %v508
    %v2364 = vunpack.c.l.b16 %v509
    %v2365 = vunpack.c.h.b16 %v509
    %v2366 = vunpack.c.l.b16 %v510
    %v2367 = vunpack.c.h.b16 %v510
    %v2368 = vunpack.c.l.b16 %v511
    %v2369 = vunpack.c.h.b16 %v511
    %v2370 = vunpack.c.l.b16 %v512
    %v2371 = vunpack.c.h.b16 %v512
    %v2372 = vunpack.c.l.b16 %v513
    %v2373 = vunpack.c.h.b16 %v513
    %v2374 = vunpack.c.l.b16 %v514
    %v2375 = vunpack.c.h.b16 %v514
    %v2376 = vunpack.c.l.b16 %v515
    %v2377 = vunpack.c.h.b16 %v515
    %v2378 = vunpack.c.l.b16 %v516
    %v2379 = vunpack.c.h.b16 %v516
    %v2380 = vunpack.c.l.b16 %v517
    %v2381 = vunpack.c.h.b16 %v517
    %v2382 = vunpack.c.l.b16 %v518
    %v2383 = vunpack.c.h.b16 %v518
    %v2384 = vunpack.c.l.b16 %v519
    %v2385 = vunpack.c.h.b16 %v519
    %v2386 = vunpack.c.l.b16 %v520
    %v2387 = vunpack.c.h.b16 %v520
    %v2388 = vunpack.c.l.b16 %v521
    %v2389 = vunpack.c.h.b16 %v521
    %v2390 = vunpack.c.l.b16 %v522
    %v2391 = vunpack.c.h.b16 %v522
    %v2392 = vunpack.c.l.b16 %v523
    %v2393 = vunpack.c.h.b16 %v523
    %v2394 = vunpack.c.l.b16 %v524
    %v2395 = vunpack.c.h.b16 %v524
    %v2396 = vunpack.c.l.b16 %v525
    %v2397 = vunpack.c.h.b16 %v525
    %v2398 = vunpack.c.l.b16 %v526
    %v2399 = vunpack.c.h.b16 %v526
    %v2400 = vunpack.c.l.b16 %v527
    %v2401 = vunpack.c.h.b16 %v527
    %v2402 = vunpack.c.l.b16 %v528
    %v2403 = vunpack.c.h.b16 %v528
    %v2404 = vunpack.c.l.b16 %v529
    %v2405 = vunpack.c.h.b16 %v529
    %v2406 = vunpack.c.l.b16 %v530
    %v2407 = vunpack.c.h.b16 %v530
    %v2408 = vunpack.c.l.b16 %v531
    %v2409 = vunpack.c.h.b16 %v531
    %v2410 = vunpack.c.l.b16 %v532
    %v2411 = vunpack.c.h.b16 %v532
    %v2412 = vunpack.c.l.b16 %v533
    %v2413 = vunpack.c.h.b16 %v533
    %v2414 = vunpack.c.l.b16 %v534
    %v2415 = vunpack.c.h.b16 %v534
    %v2416 = vunpack.c.l.b16 %v535
    %v2417 = vunpack.c.h.b16 %v535
    %v2418 = vunpack.c.l.b16 %v536
    %v2419 = vunpack.c.h.b16 %v536
    %v2420 = vunpack.c.l.b16 %v537
    %v2421 = vunpack.c.h.b16 %v537
    %v2422 = vunpack.c.l.b16 %v538
    %v2423 = vunpack.c.h.b16 %v538
    %v2424 = vunpack.c.l.b16 %v539
    %v2425 = vunpack.c.h.b16 %v539
    %v2426 = vunpack.c.l.b16 %v540
    %v2427 = vunpack.c.h.b16 %v540
    %v2428 = vunpack.c.l.b16 %v541
    %v2429 = vunpack.c.h.b16 %v541
    %v2430 = vunpack.c.l.b16 %v542
    %v2431 = vunpack.c.h.b16 %v542
    %v2432 = vunpack.c.l.b16 %v543
    %v2433 = vunpack.c.h.b16 %v543
    %v2434 = vunpack.c.l.b16 %v544
    %v2435 = vunpack.c.h.b16 %v544
    %v2436 = vunpack.c.l.b16 %v545
    %v2437 = vunpack.c.h.b16 %v545
    %v2438 = vunpack.c.l.b16 %v546
    %v2439 = vunpack.c.h.b16 %v546
    %v2440 = vunpack.c.l.b16 %v547
    %v2441 = vunpack.c.h.b16 %v547
    %v2442 = vunpack.c.l.b16 %v548
    %v2443 = vunpack.c.h.b16 %v548
    %v2444 = vunpack.c.l.b16 %v549
    %v2445 = vunpack.c.h.b16 %v549
    %v2446 = vunpack.c.l.b16 %v550
    %v2447 = vunpack.c.h.b16 %v550
    %v2448 = vunpack.c.l.b16 %v551
    %v2449 = vunpack.c.h.b16 %v551
    %v2450 = vunpack.c.l.b16 %v552
    %v2451 = vunpack.c.h.b16 %v552
    %v2452 = vunpack.c.l.b16 %v553
    %v2453 = vunpack.c.h.b16 %v553
    %v2454 = vunpack.c.l.b16 %v554
    %v2455 = vunpack.c.h.b16 %v554
    %v2456 = vunpack.c.l.b16 %v555
    %v2457 = vunpack.c.h.b16 %v555
    %v2458 = vunpack.c.l.b16 %v556
    %v2459 = vunpack.c.h.b16 %v556
    %v2460 = vunpack.c.l.b16 %v557
    %v2461 = vunpack.c.h.b16 %v557
    %v2462 = vunpack.c.l.b16 %v558
    %v2463 = vunpack.c.h.b16 %v558
    %v2464 = vunpack.c.l.b16 %v559
    %v2465 = vunpack.c.h.b16 %v559
    %v2466 = vunpack.c.l.b16 %v560
    %v2467 = vunpack.c.h.b16 %v560
    %v2468 = vunpack.c.l.b16 %v561
    %v2469 = vunpack.c.h.b16 %v561
    %v2470 = vunpack.c.l.b16 %v562
    %v2471 = vunpack.c.h.b16 %v562
    %v2472 = vunpack.c.l.b16 %v563
    %v2473 = vunpack.c.h.b16 %v563
    %v2474 = vunpack.c.l.b16 %v564
    %v2475 = vunpack.c.h.b16 %v564
    %v2476 = vunpack.c.l.b16 %v565
    %v2477 = vunpack.c.h.b16 %v565
    %v2478 = vunpack.c.l.b16 %v566
    %v2479 = vunpack.c.h.b16 %v566
    %v2480 = vunpack.c.l.b16 %v567
    %v2481 = vunpack.c.h.b16 %v567
    %v2482 = vunpack.c.l.b16 %v568
    %v2483 = vunpack.c.h.b16 %v568
    %v2484 = vunpack.c.l.b16 %v569
    %v2485 = vunpack.c.h.b16 %v569
    %v2486 = vunpack.c.l.b16 %v570
    %v2487 = vunpack.c.h.b16 %v570
    %v2488 = vunpack.c.l.b16 %v571
    %v2489 = vunpack.c.h.b16 %v571
    %v2490 = vunpack.c.l.b16 %v572
    %v2491 = vunpack.c.h.b16 %v572
    %v2492 = vunpack.c.l.b16 %v573
    %v2493 = vunpack.c.h.b16 %v573
    %v2494 = vunpack.c.l.b16 %v574
    %v2495 = vunpack.c.h.b16 %v574
    %v2496 = vunpack.c.l.b16 %v575
    %v2497 = vunpack.c.h.b16 %v575
    %v2498 = vunpack.c.l.b16 %v576
    %v2499 = vunpack.c.h.b16 %v576
    %v2500 = vunpack.c.l.b16 %v577
    %v2501 = vunpack.c.h.b16 %v577
    %v2502 = vunpack.c.l.b16 %v578
    %v2503 = vunpack.c.h.b16 %v578
    %v2504 = vunpack.c.l.b16 %v579
    %v2505 = vunpack.c.h.b16 %v579
    %v2506 = vunpack.c.l.b16 %v580
    %v2507 = vunpack.c.h.b16 %v580
    %v2508 = vunpack.c.l.b16 %v581
    %v2509 = vunpack.c.h.b16 %v581
    %v2510 = vunpack.c.l.b16 %v582
    %v2511 = vunpack.c.h.b16 %v582
    %v2512 = vunpack.c.l.b16 %v583
    %v2513 = vunpack.c.h.b16 %v583
    %v2514 = vunpack.c.l.b16 %v584
    %v2515 = vunpack.c.h.b16 %v584
    %v2516 = vunpack.c.l.b16 %v585
    %v2517 = vunpack.c.h.b16 %v585
    %v2518 = vunpack.c.l.b16 %v586
    %v2519 = vunpack.c.h.b16 %v586
    %v2520 = vunpack.c.l.b16 %v587
    %v2521 = vunpack.c.h.b16 %v587
    %v2522 = vunpack.c.l.b16 %v588
    %v2523 = vunpack.c.h.b16 %v588
    %v2524 = vunpack.c.l.b16 %v589
    %v2525 = vunpack.c.h.b16 %v589
    %v2526 = vunpack.c.l.b16 %v590
    %v2527 = vunpack.c.h.b16 %v590
    %v2528 = vunpack.c.l.b16 %v591
    %v2529 = vunpack.c.h.b16 %v591
    %v2530 = vunpack.c.l.b16 %v592
    %v2531 = vunpack.c.h.b16 %v592
    %v2532 = vunpack.c.l.b16 %v593
    %v2533 = vunpack.c.h.b16 %v593
    %v2534 = vunpack.c.l.b16 %v594
    %v2535 = vunpack.c.h.b16 %v594
    %v2536 = vunpack.c.l.b16 %v595
    %v2537 = vunpack.c.h.b16 %v595
    %v2538 = vunpack.c.l.b16 %v596
    %v2539 = vunpack.c.h.b16 %v596
    %v2540 = vunpack.c.l.b16 %v597
    %v2541 = vunpack.c.h.b16 %v597
    %v2542 = vunpack.c.l.b16 %v598
    %v2543 = vunpack.c.h.b16 %v598
    %v2544 = vunpack.c.l.b16 %v599
    %v2545 = vunpack.c.h.b16 %v599
    %v2546 = vunpack.c.l.b16 %v600
    %v2547 = vunpack.c.h.b16 %v600
    %v2548 = vunpack.c.l.b16 %v601
    %v2549 = vunpack.c.h.b16 %v601
    %v2550 = vunpack.c.l.b16 %v602
    %v2551 = vunpack.c.h.b16 %v602
    %v2552 = vunpack.c.l.b16 %v603
    %v2553 = vunpack.c.h.b16 %v603
    %v2554 = vunpack.c.l.b16 %v604
    %v2555 = vunpack.c.h.b16 %v604
    %v2556 = vunpack.c.l.b16 %v605
    %v2557 = vunpack.c.h.b16 %v605
    %v2558 = vunpack.c.l.b16 %v606
    %v2559 = vunpack.c.h.b16 %v606
    %v2560 = vunpack.c.l.b16 %v607
    %v2561 = vunpack.c.h.b16 %v607
    %v2562 = vunpack.c.l.b16 %v608
    %v2563 = vunpack.c.h.b16 %v608
    %v2564 = vunpack.c.l.b16 %v609
    %v2565 = vunpack.c.h.b16 %v609
    %v2566 = vunpack.c.l.b16 %v610
    %v2567 = vunpack.c.h.b16 %v610
    %v2568 = vunpack.c.l.b16 %v611
    %v2569 = vunpack.c.h.b16 %v611
    %v2570 = vunpack.c.l.b16 %v612
    %v2571 = vunpack.c.h.b16 %v612
    %v2572 = vunpack.c.l.b16 %v613
    %v2573 = vunpack.c.h.b16 %v613
    %v2574 = vunpack.c.l.b16 %v614
    %v2575 = vunpack.c.h.b16 %v614
    %v2576 = vunpack.c.l.b16 %v615
    %v2577 = vunpack.c.h.b16 %v615
    %v2578 = vunpack.c.l.b16 %v616
    %v2579 = vunpack.c.h.b16 %v616
    %v2580 = vunpack.c.l.b16 %v617
    %v2581 = vunpack.c.h.b16 %v617
    %v2582 = vunpack.c.l.b16 %v618
    %v2583 = vunpack.c.h.b16 %v618
    %v2584 = vunpack.c.l.b16 %v619
    %v2585 = vunpack.c.h.b16 %v619
    %v2586 = vunpack.c.l.b16 %v620
    %v2587 = vunpack.c.h.b16 %v620
    %v2588 = vunpack.c.l.b16 %v621
    %v2589 = vunpack.c.h.b16 %v621
    %v2590 = vunpack.c.l.b16 %v622
    %v2591 = vunpack.c.h.b16 %v622
    %v2592 = vunpack.c.l.b16 %v623
    %v2593 = vunpack.c.h.b16 %v623
    %v2594 = vunpack.c.l.b16 %v624
    %v2595 = vunpack.c.h.b16 %v624
    %v2596 = vunpack.c.l.b16 %v625
    %v2597 = vunpack.c.h.b16 %v625
    %v2598 = vunpack.c.l.b16 %v626
    %v2599 = vunpack.c.h.b16 %v626
    %v2600 = vunpack.c.l.b16 %v627
    %v2601 = vunpack.c.h.b16 %v627
    %v2602 = vunpack.c.l.b16 %v628
    %v2603 = vunpack.c.h.b16 %v628
    %v2604 = vunpack.c.l.b16 %v629
    %v2605 = vunpack.c.h.b16 %v629
    %v2606 = vunpack.c.l.b16 %v630
    %v2607 = vunpack.c.h.b16 %v630
    %v2608 = vunpack.c.l.b16 %v631
    %v2609 = vunpack.c.h.b16 %v631
    %v2610 = vunpack.c.l.b16 %v632
    %v2611 = vunpack.c.h.b16 %v632
    %v2612 = vunpack.c.l.b16 %v633
    %v2613 = vunpack.c.h.b16 %v633
    %v2614 = vunpack.c.l.b16 %v634
    %v2615 = vunpack.c.h.b16 %v634
    %v2616 = vunpack.c.l.b16 %v635
    %v2617 = vunpack.c.h.b16 %v635
    %v2618 = vunpack.c.l.b16 %v636
    %v2619 = vunpack.c.h.b16 %v636
    %v2620 = vunpack.c.l.b16 %v637
    %v2621 = vunpack.c.h.b16 %v637
    %v2622 = vunpack.c.l.b16 %v638
    %v2623 = vunpack.c.h.b16 %v638
    %v2624 = vunpack.c.l.b16 %v639
    %v2625 = vunpack.c.h.b16 %v639
    %v2626 = vunpack.c.l.b16 %v640
    %v2627 = vunpack.c.h.b16 %v640
    %v2628 = vunpack.c.l.b16 %v641
    %v2629 = vunpack.c.h.b16 %v641
    %v2630 = vunpack.c.l.b16 %v642
    %v2631 = vunpack.c.h.b16 %v642
    %v2632 = vunpack.c.l.b16 %v643
    %v2633 = vunpack.c.h.b16 %v643
    %v2634 = vunpack.c.l.b16 %v644
    %v2635 = vunpack.c.h.b16 %v644
    %v2636 = vunpack.c.l.b16 %v645
    %v2637 = vunpack.c.h.b16 %v645
    %v2638 = vunpack.c.l.b16 %v646
    %v2639 = vunpack.c.h.b16 %v646
    %v2640 = vunpack.c.l.b16 %v647
    %v2641 = vunpack.c.h.b16 %v647
    %v2642 = vunpack.c.l.b16 %v648
    %v2643 = vunpack.c.h.b16 %v648
    %v2644 = vunpack.c.l.b16 %v649
    %v2645 = vunpack.c.h.b16 %v649
    %v2646 = vunpack.c.l.b16 %v650
    %v2647 = vunpack.c.h.b16 %v650
    %v2648 = vunpack.c.l.b16 %v651
    %v2649 = vunpack.c.h.b16 %v651
    %v2650 = vunpack.c.l.b16 %v652
    %v2651 = vunpack.c.h.b16 %v652
    %v2652 = vunpack.c.l.b16 %v653
    %v2653 = vunpack.c.h.b16 %v653
    %v2654 = vunpack.c.l.b16 %v654
    %v2655 = vunpack.c.h.b16 %v654
    %v2656 = vunpack.c.l.b16 %v655
    %v2657 = vunpack.c.h.b16 %v655
    %v2658 = vunpack.c.l.b16 %v656
    %v2659 = vunpack.c.h.b16 %v656
    %v2660 = vunpack.c.l.b16 %v657
    %v2661 = vunpack.c.h.b16 %v657
    %v2662 = vunpack.c.l.b16 %v658
    %v2663 = vunpack.c.h.b16 %v658
    %v2664 = vunpack.c.l.b16 %v659
    %v2665 = vunpack.c.h.b16 %v659
    %v2666 = vunpack.c.l.b16 %v660
    %v2667 = vunpack.c.h.b16 %v660
    %v2668 = vunpack.c.l.b16 %v661
    %v2669 = vunpack.c.h.b16 %v661
    %v2670 = vunpack.c.l.b16 %v662
    %v2671 = vunpack.c.h.b16 %v662
    %v2672 = vunpack.c.l.b16 %v663
    %v2673 = vunpack.c.h.b16 %v663
    %v2674 = vunpack.c.l.b16 %v664
    %v2675 = vunpack.c.h.b16 %v664
    %v2676 = vunpack.c.l.b16 %v665
    %v2677 = vunpack.c.h.b16 %v665
    %v2678 = vunpack.c.l.b16 %v666
    %v2679 = vunpack.c.h.b16 %v666
    %v2680 = vunpack.c.l.b16 %v667
    %v2681 = vunpack.c.h.b16 %v667
    %v2682 = vunpack.c.l.b16 %v668
    %v2683 = vunpack.c.h.b16 %v668
    %v2684 = vunpack.c.l.b16 %v669
    %v2685 = vunpack.c.h.b16 %v669
    %v2686 = vunpack.c.l.b16 %v670
    %v2687 = vunpack.c.h.b16 %v670
    %v2688 = vunpack.c.l.b16 %v671
    %v2689 = vunpack.c.h.b16 %v671
    %v2690 = vunpack.c.l.b16 %v672
    %v2691 = vunpack.c.h.b16 %v672
    %v2692 = vunpack.c.l.b16 %v673
    %v2693 = vunpack.c.h.b16 %v673
    %v2694 = vunpack.c.l.b16 %v674
    %v2695 = vunpack.c.h.b16 %v674
    %v2696 = vunpack.c.l.b16 %v675
    %v2697 = vunpack.c.h.b16 %v675
    %v2698 = vunpack.c.l.b16 %v676
    %v2699 = vunpack.c.h.b16 %v676
    %v2700 = vunpack.c.l.b16 %v677
    %v2701 = vunpack.c.h.b16 %v677
    %v2702 = vunpack.c.l.b16 %v678
    %v2703 = vunpack.c.h.b16 %v678
    %v2704 = vunpack.c.l.b16 %v679
    %v2705 = vunpack.c.h.b16 %v679
    %v2706 = vunpack.c.l.b16 %v680
    %v2707 = vunpack.c.h.b16 %v680
    %v2708 = vunpack.c.l.b16 %v681
    %v2709 = vunpack.c.h.b16 %v681
    %v2710 = vunpack.c.l.b16 %v682
    %v2711 = vunpack.c.h.b16 %v682
    %v2712 = vunpack.c.l.b16 %v683
    %v2713 = vunpack.c.h.b16 %v683
    %v2714 = vunpack.c.l.b16 %v684
    %v2715 = vunpack.c.h.b16 %v684
    %v2716 = vunpack.c.l.b16 %v685
    %v2717 = vunpack.c.h.b16 %v685
    %v2718 = vunpack.c.l.b16 %v686
    %v2719 = vunpack.c.h.b16 %v686
    %v2720 = vunpack.c.l.b16 %v687
    %v2721 = vunpack.c.h.b16 %v687
    %v2722 = vunpack.c.l.b16 %v688
    %v2723 = vunpack.c.h.b16 %v688
    %v2724 = vunpack.c.l.b16 %v689
    %v2725 = vunpack.c.h.b16 %v689
    %v2726 = vunpack.c.l.b16 %v690
    %v2727 = vunpack.c.h.b16 %v690
    %v2728 = vunpack.c.l.b16 %v691
    %v2729 = vunpack.c.h.b16 %v691
    %v2730 = vunpack.c.l.b16 %v692
    %v2731 = vunpack.c.h.b16 %v692
    %v2732 = vunpack.c.l.b16 %v693
    %v2733 = vunpack.c.h.b16 %v693
    %v2734 = vunpack.c.l.b16 %v694
    %v2735 = vunpack.c.h.b16 %v694
    %v2736 = vunpack.c.l.b16 %v695
    %v2737 = vunpack.c.h.b16 %v695
    %v2738 = vunpack.c.l.b16 %v696
    %v2739 = vunpack.c.h.b16 %v696
    %v2740 = vunpack.c.l.b16 %v697
    %v2741 = vunpack.c.h.b16 %v697
    %v2742 = vunpack.c.l.b16 %v698
    %v2743 = vunpack.c.h.b16 %v698
    %v2744 = vunpack.c.l.b16 %v699
    %v2745 = vunpack.c.h.b16 %v699
    %v2746 = vunpack.c.l.b16 %v700
    %v2747 = vunpack.c.h.b16 %v700
    %v2748 = vunpack.c.l.b16 %v701
    %v2749 = vunpack.c.h.b16 %v701
    %v2750 = vunpack.c.l.b16 %v702
    %v2751 = vunpack.c.h.b16 %v702
    %v2752 = vunpack.c.l.b16 %v703
    %v2753 = vunpack.c.h.b16 %v703
    %v2754 = vunpack.c.l.b16 %v704
    %v2755 = vunpack.c.h.b16 %v704
    %v2756 = vunpack.c.l.b16 %v705
    %v2757 = vunpack.c.h.b16 %v705
    %v2758 = vunpack.c.l.b16 %v706
    %v2759 = vunpack.c.h.b16 %v706
    %v2760 = vunpack.c.l.b16 %v707
    %v2761 = vunpack.c.h.b16 %v707
    %v2762 = vunpack.c.l.b16 %v708
    %v2763 = vunpack.c.h.b16 %v708
    %v2764 = vunpack.c.l.b16 %v709
    %v2765 = vunpack.c.h.b16 %v709
    %v2766 = vunpack.c.l.b16 %v710
    %v2767 = vunpack.c.h.b16 %v710
    %v2768 = vunpack.c.l.b16 %v711
    %v2769 = vunpack.c.h.b16 %v711
    %v2770 = vunpack.c.l.b16 %v712
    %v2771 = vunpack.c.h.b16 %v712
    %v2772 = vunpack.c.l.b16 %v713
    %v2773 = vunpack.c.h.b16 %v713
    %v2774 = vunpack.c.l.b16 %v714
    %v2775 = vunpack.c.h.b16 %v714
    %v2776 = vunpack.c.l.b16 %v715
    %v2777 = vunpack.c.h.b16 %v715
    %v2778 = vunpack.c.l.b16 %v716
    %v2779 = vunpack.c.h.b16 %v716
    %v2780 = vunpack.c.l.b16 %v717
    %v2781 = vunpack.c.h.b16 %v717
    %v2782 = vunpack.c.l.b16 %v718
    %v2783 = vunpack.c.h.b16 %v718
    %v2784 = vunpack.c.l.b16 %v719
    %v2785 = vunpack.c.h.b16 %v719
    %v2786 = vunpack.c.l.b16 %v720
    %v2787 = vunpack.c.h.b16 %v720
    %v2788 = vunpack.c.l.b16 %v721
    %v2789 = vunpack.c.h.b16 %v721
    %v2790 = vunpack.c.l.b16 %v722
    %v2791 = vunpack.c.h.b16 %v722
    %v2792 = vunpack.c.l.b16 %v723
    %v2793 = vunpack.c.h.b16 %v723
    %v2794 = vunpack.c.l.b16 %v724
    %v2795 = vunpack.c.h.b16 %v724
    %v2796 = vunpack.c.l.b16 %v725
    %v2797 = vunpack.c.h.b16 %v725
    %v2798 = vunpack.c.l.b16 %v726
    %v2799 = vunpack.c.h.b16 %v726
    %v2800 = vunpack.c.l.b16 %v727
    %v2801 = vunpack.c.h.b16 %v727
    %v2802 = vunpack.c.l.b16 %v728
    %v2803 = vunpack.c.h.b16 %v728
    %v2804 = vunpack.c.l.b16 %v729
    %v2805 = vunpack.c.h.b16 %v729
    %v2806 = vunpack.c.l.b16 %v730
    %v2807 = vunpack.c.h.b16 %v730
    %v2808 = vunpack.c.l.b16 %v731
    %v2809 = vunpack.c.h.b16 %v731
    %v2810 = vunpack.c.l.b16 %v732
    %v2811 = vunpack.c.h.b16 %v732
    %v2812 = vunpack.c.l.b16 %v733
    %v2813 = vunpack.c.h.b16 %v733
    %v2814 = vunpack.c.l.b16 %v734
    %v2815 = vunpack.c.h.b16 %v734
    %v2816 = vunpack.c.l.b16 %v735
    %v2817 = vunpack.c.h.b16 %v735
    %v2818 = vunpack.c.l.b16 %v736
    %v2819 = vunpack.c.h.b16 %v736
    %v2820 = vunpack.c.l.b16 %v737
    %v2821 = vunpack.c.h.b16 %v737
    %v2822 = vunpack.c.l.b16 %v738
    %v2823 = vunpack.c.h.b16 %v738
    %v2824 = vunpack.c.l.b16 %v739
    %v2825 = vunpack.c.h.b16 %v739
    %v2826 = vunpack.c.l.b16 %v740
    %v2827 = vunpack.c.h.b16 %v740
    %v2828 = vunpack.c.l.b16 %v741
    %v2829 = vunpack.c.h.b16 %v741
    %v2830 = vunpack.c.l.b16 %v742
    %v2831 = vunpack.c.h.b16 %v742
    %v2832 = vunpack.c.l.b16 %v743
    %v2833 = vunpack.c.h.b16 %v743
    %v2834 = vunpack.c.l.b16 %v744
    %v2835 = vunpack.c.h.b16 %v744
    %v2836 = vunpack.c.l.b16 %v745
    %v2837 = vunpack.c.h.b16 %v745
    %v2838 = vunpack.c.l.b16 %v746
    %v2839 = vunpack.c.h.b16 %v746
    %v2840 = vunpack.c.l.b16 %v747
    %v2841 = vunpack.c.h.b16 %v747
    %v2842 = vunpack.c.l.b16 %v748
    %v2843 = vunpack.c.h.b16 %v748
    %v2844 = vunpack.c.l.b16 %v749
    %v2845 = vunpack.c.h.b16 %v749
    %v2846 = vunpack.c.l.b16 %v750
    %v2847 = vunpack.c.h.b16 %v750
    %v2848 = vunpack.c.l.b16 %v751
    %v2849 = vunpack.c.h.b16 %v751
    %v2850 = vunpack.c.l.b16 %v752
    %v2851 = vunpack.c.h.b16 %v752
    %v2852 = vunpack.c.l.b16 %v753
    %v2853 = vunpack.c.h.b16 %v753
    %v2854 = vunpack.c.l.b16 %v754
    %v2855 = vunpack.c.h.b16 %v754
    %v2856 = vunpack.c.l.b16 %v755
    %v2857 = vunpack.c.h.b16 %v755
    %v2858 = vunpack.c.l.b16 %v756
    %v2859 = vunpack.c.h.b16 %v756
    %v2860 = vunpack.c.l.b16 %v757
    %v2861 = vunpack.c.h.b16 %v757
    %v2862 = vunpack.c.l.b16 %v758
    %v2863 = vunpack.c.h.b16 %v758
    %v2864 = vunpack.c.l.b16 %v759
    %v2865 = vunpack.c.h.b16 %v759
    %v2866 = vunpack.c.l.b16 %v760
    %v2867 = vunpack.c.h.b16 %v760
    %v2868 = vunpack.c.l.b16 %v761
    %v2869 = vunpack.c.h.b16 %v761
    %v2870 = vunpack.c.l.b16 %v762
    %v2871 = vunpack.c.h.b16 %v762
    %v2872 = vunpack.c.l.b16 %v763
    %v2873 = vunpack.c.h.b16 %v763
    %v2874 = vunpack.c.l.b16 %v764
    %v2875 = vunpack.c.h.b16 %v764
    %v2876 = vunpack.c.l.b16 %v765
    %v2877 = vunpack.c.h.b16 %v765
    %v2878 = vunpack.c.l.b16 %v766
    %v2879 = vunpack.c.h.b16 %v766
    %v2880 = vunpack.c.l.b16 %v767
    %v2881 = vunpack.c.h.b16 %v767
    %v2882 = vunpack.c.l.b16 %v768
    %v2883 = vunpack.c.h.b16 %v768
    %v2884 = vunpack.c.l.b16 %v769
    %v2885 = vunpack.c.h.b16 %v769
    %v2886 = vunpack.c.l.b16 %v770
    %v2887 = vunpack.c.h.b16 %v770
    %v2888 = vunpack.c.l.b16 %v771
    %v2889 = vunpack.c.h.b16 %v771
    %v2890 = vunpack.c.l.b16 %v772
    %v2891 = vunpack.c.h.b16 %v772
    %v2892 = vunpack.c.l.b16 %v773
    %v2893 = vunpack.c.h.b16 %v773
    %v2894 = vunpack.c.l.b16 %v774
    %v2895 = vunpack.c.h.b16 %v774
    %v2896 = vunpack.c.l.b16 %v775
    %v2897 = vunpack.c.h.b16 %v775
    %v2898 = vunpack.c.l.b16 %v776
    %v2899 = vunpack.c.h.b16 %v776
    %v2900 = vunpack.c.l.b16 %v777
    %v2901 = vunpack.c.h.b16 %v777
    %v2902 = vunpack.c.l.b16 %v778
    %v2903 = vunpack.c.h.b16 %v778
    %v2904 = vunpack.c.l.b16 %v779
    %v2905 = vunpack.c.h.b16 %v779
    %v2906 = vunpack.c.l.b16 %v780
    %v2907 = vunpack.c.h.b16 %v780
    %v2908 = vunpack.c.l.b16 %v781
    %v2909 = vunpack.c.h.b16 %v781
    %v2910 = vunpack.c.l.b16 %v782
    %v2911 = vunpack.c.h.b16 %v782
    %v2912 = vunpack.c.l.b16 %v783
    %v2913 = vunpack.c.h.b16 %v783
    %v2914 = vunpack.c.l.b16 %v784
    %v2915 = vunpack.c.h.b16 %v784
    %v2916 = vunpack.c.l.b16 %v785
    %v2917 = vunpack.c.h.b16 %v785
    %v2918 = vunpack.c.l.b16 %v786
    %v2919 = vunpack.c.h.b16 %v786
    %v2920 = vunpack.c.l.b16 %v787
    %v2921 = vunpack.c.h.b16 %v787
    %v2922 = vunpack.c.l.b16 %v788
    %v2923 = vunpack.c.h.b16 %v788
    %v2924 = vunpack.c.l.b16 %v789
    %v2925 = vunpack.c.h.b16 %v789
    %v2926 = vunpack.c.l.b16 %v790
    %v2927 = vunpack.c.h.b16 %v790
    %v2928 = vunpack.c.l.b16 %v791
    %v2929 = vunpack.c.h.b16 %v791
    %v2930 = vunpack.c.l.b16 %v792
    %v2931 = vunpack.c.h.b16 %v792
    %v2932 = vunpack.c.l.b16 %v793
    %v2933 = vunpack.c.h.b16 %v793
    %v2934 = vunpack.c.l.b16 %v794
    %v2935 = vunpack.c.h.b16 %v794
    %v2936 = vunpack.c.l.b16 %v795
    %v2937 = vunpack.c.h.b16 %v795
    %v2938 = vunpack.c.l.b16 %v796
    %v2939 = vunpack.c.h.b16 %v796
    %v2940 = vunpack.c.l.b16 %v797
    %v2941 = vunpack.c.h.b16 %v797
    %v2942 = vunpack.c.l.b16 %v798
    %v2943 = vunpack.c.h.b16 %v798
    %v2944 = vunpack.c.l.b16 %v799
    %v2945 = vunpack.c.h.b16 %v799
    %v2946 = vunpack.c.l.b16 %v800
    %v2947 = vunpack.c.h.b16 %v800
    %v2948 = vunpack.c.l.b16 %v801
    %v2949 = vunpack.c.h.b16 %v801
    %v2950 = vunpack.c.l.b16 %v802
    %v2951 = vunpack.c.h.b16 %v802
    %v2952 = vunpack.c.l.b16 %v803
    %v2953 = vunpack.c.h.b16 %v803
    %v2954 = vunpack.c.l.b16 %v804
    %v2955 = vunpack.c.h.b16 %v804
    %v2956 = vunpack.c.l.b16 %v805
    %v2957 = vunpack.c.h.b16 %v805
    %v2958 = vunpack.c.l.b16 %v806
    %v2959 = vunpack.c.h.b16 %v806
    %v2960 = vunpack.c.l.b16 %v807
    %v2961 = vunpack.c.h.b16 %v807
    %v2962 = vunpack.c.l.b16 %v808
    %v2963 = vunpack.c.h.b16 %v808
    %v2964 = vunpack.c.l.b16 %v809
    %v2965 = vunpack.c.h.b16 %v809
    %v2966 = vunpack.c.l.b16 %v810
    %v2967 = vunpack.c.h.b16 %v810
    %v2968 = vunpack.c.l.b16 %v811
    %v2969 = vunpack.c.h.b16 %v811
    %v2970 = vunpack.c.l.b16 %v812
    %v2971 = vunpack.c.h.b16 %v812
    %v2972 = vunpack.c.l.b16 %v813
    %v2973 = vunpack.c.h.b16 %v813
    %v2974 = vunpack.c.l.b16 %v814
    %v2975 = vunpack.c.h.b16 %v814
    %v2976 = vunpack.c.l.b16 %v815
    %v2977 = vunpack.c.h.b16 %v815
    %v2978 = vunpack.c.l.b16 %v816
    %v2979 = vunpack.c.h.b16 %v816
    %v2980 = vunpack.c.l.b16 %v817
    %v2981 = vunpack.c.h.b16 %v817
    %v2982 = vunpack.c.l.b16 %v818
    %v2983 = vunpack.c.h.b16 %v818
    %v2984 = vunpack.c.l.b16 %v819
    %v2985 = vunpack.c.h.b16 %v819
    %v2986 = vunpack.c.l.b16 %v820
    %v2987 = vunpack.c.h.b16 %v820
    %v2988 = vunpack.c.l.b16 %v821
    %v2989 = vunpack.c.h.b16 %v821
    %v2990 = vunpack.c.l.b16 %v822
    %v2991 = vunpack.c.h.b16 %v822
    %v2992 = vunpack.c.l.b16 %v823
    %v2993 = vunpack.c.h.b16 %v823
    %v2994 = vunpack.c.l.b16 %v824
    %v2995 = vunpack.c.h.b16 %v824
    %v2996 = vunpack.c.l.b16 %v825
    %v2997 = vunpack.c.h.b16 %v825
    %v2998 = vunpack.c.l.b16 %v826
    %v2999 = vunpack.c.h.b16 %v826
    %v3000 = vunpack.c.l.b16 %v827
    %v3001 = vunpack.c.h.b16 %v827
    %v3002 = vunpack.c.l.b16 %v828
    %v3003 = vunpack.c.h.b16 %v828
    %v3004 = vunpack.c.l.b16 %v829
    %v3005 = vunpack.c.h.b16 %v829
    %v3006 = vunpack.c.l.b16 %v830
    %v3007 = vunpack.c.h.b16 %v830
    %v3008 = vunpack.c.l.b16 %v831
    %v3009 = vunpack.c.h.b16 %v831
    %v3010 = vunpack.c.l.b16 %v832
    %v3011 = vunpack.c.h.b16 %v832
    %v3012 = vunpack.c.l.b16 %v833
    %v3013 = vunpack.c.h.b16 %v833
    %v3014 = vunpack.c.l.b16 %v834
    %v3015 = vunpack.c.h.b16 %v834
    %v3016 = vunpack.c.l.b16 %v835
    %v3017 = vunpack.c.h.b16 %v835
    %v3018 = vunpack.c.l.b16 %v836
    %v3019 = vunpack.c.h.b16 %v836
    %v3020 = vunpack.c.l.b16 %v837
    %v3021 = vunpack.c.h.b16 %v837
    %v3022 = vunpack.c.l.b16 %v838
    %v3023 = vunpack.c.h.b16 %v838
    %v3024 = vunpack.c.l.b16 %v839
    %v3025 = vunpack.c.h.b16 %v839
    %v3026 = vunpack.c.l.b16 %v840
    %v3027 = vunpack.c.h.b16 %v840
    %v3028 = vunpack.c.l.b16 %v841
    %v3029 = vunpack.c.h.b16 %v841
    %v3030 = vunpack.c.l.b16 %v842
    %v3031 = vunpack.c.h.b16 %v842
    %v3032 = vunpack.c.l.b16 %v843
    %v3033 = vunpack.c.h.b16 %v843
    %v3034 = vunpack.c.l.b16 %v844
    %v3035 = vunpack.c.h.b16 %v844
    %v3036 = vunpack.c.l.b16 %v845
    %v3037 = vunpack.c.h.b16 %v845
    %v3038 = vunpack.c.l.b16 %v846
    %v3039 = vunpack.c.h.b16 %v846
    %v3040 = vunpack.c.l.b16 %v847
    %v3041 = vunpack.c.h.b16 %v847
    %v3042 = vunpack.c.l.b16 %v848
    %v3043 = vunpack.c.h.b16 %v848
    %v3044 = vunpack.c.l.b16 %v849
    %v3045 = vunpack.c.h.b16 %v849
    %v3046 = vunpack.c.l.b16 %v850
    %v3047 = vunpack.c.h.b16 %v850
    %v3048 = vunpack.c.l.b16 %v851
    %v3049 = vunpack.c.h.b16 %v851
    %v3050 = vunpack.c.l.b16 %v852
    %v3051 = vunpack.c.h.b16 %v852
    %v3052 = vunpack.c.l.b16 %v853
    %v3053 = vunpack.c.h.b16 %v853
    %v3054 = vunpack.c.l.b16 %v854
    %v3055 = vunpack.c.h.b16 %v854
    %v3056 = vunpack.c.l.b16 %v855
    %v3057 = vunpack.c.h.b16 %v855
    %v3058 = vunpack.c.l.b16 %v856
    %v3059 = vunpack.c.h.b16 %v856
    %v3060 = vunpack.c.l.b16 %v857
    %v3061 = vunpack.c.h.b16 %v857
    %v3062 = vunpack.c.l.b16 %v858
    %v3063 = vunpack.c.h.b16 %v858
    %v3064 = vunpack.c.l.b16 %v859
    %v3065 = vunpack.c.h.b16 %v859
    %v3066 = vunpack.c.l.b16 %v860
    %v3067 = vunpack.c.h.b16 %v860
    %v3068 = vunpack.c.l.b16 %v861
    %v3069 = vunpack.c.h.b16 %v861
    %v3070 = vunpack.c.l.b16 %v862
    %v3071 = vunpack.c.h.b16 %v862
    %v3072 = vunpack.c.l.b16 %v863
    %v3073 = vunpack.c.h.b16 %v863
    %v3074 = vunpack.c.l.b16 %v864
    %v3075 = vunpack.c.h.b16 %v864
    %v3076 = vunpack.c.l.b16 %v865
    %v3077 = vunpack.c.h.b16 %v865
    %v3078 = vunpack.c.l.b16 %v866
    %v3079 = vunpack.c.h.b16 %v866
    %v3080 = vunpack.c.l.b16 %v867
    %v3081 = vunpack.c.h.b16 %v867
    %v3082 = vunpack.c.l.b16 %v868
    %v3083 = vunpack.c.h.b16 %v868
    %v3084 = vunpack.c.l.b16 %v869
    %v3085 = vunpack.c.h.b16 %v869
    %v3086 = vunpack.c.l.b16 %v870
    %v3087 = vunpack.c.h.b16 %v870
    %v3088 = vunpack.c.l.b16 %v871
    %v3089 = vunpack.c.h.b16 %v871
    %v3090 = vunpack.c.l.b16 %v872
    %v3091 = vunpack.c.h.b16 %v872
    %v3092 = vunpack.c.l.b16 %v873
    %v3093 = vunpack.c.h.b16 %v873
    %v3094 = vunpack.c.l.b16 %v874
    %v3095 = vunpack.c.h.b16 %v874
    %v3096 = vunpack.c.l.b16 %v875
    %v3097 = vunpack.c.h.b16 %v875
    %v3098 = vunpack.c.l.b16 %v876
    %v3099 = vunpack.c.h.b16 %v876
    %v3100 = vunpack.c.l.b16 %v877
    %v3101 = vunpack.c.h.b16 %v877
    %v3102 = vunpack.c.l.b16 %v878
    %v3103 = vunpack.c.h.b16 %v878
    %v3104 = vunpack.c.l.b16 %v879
    %v3105 = vunpack.c.h.b16 %v879
    %v3106 = vunpack.c.l.b16 %v880
    %v3107 = vunpack.c.h.b16 %v880
    %v3108 = vunpack.c.l.b16 %v881
    %v3109 = vunpack.c.h.b16 %v881
    %v3110 = vunpack.c.l.b16 %v882
    %v3111 = vunpack.c.h.b16 %v882
    %v3112 = vunpack.c.l.b16 %v883
    %v3113 = vunpack.c.h.b16 %v883
    %v3114 = vunpack.c.l.b16 %v884
    %v3115 = vunpack.c.h.b16 %v884
    %v3116 = vunpack.c.l.b16 %v885
    %v3117 = vunpack.c.h.b16 %v885
    %v3118 = vunpack.c.l.b16 %v886
    %v3119 = vunpack.c.h.b16 %v886
    %v3120 = vunpack.c.l.b16 %v887
    %v3121 = vunpack.c.h.b16 %v887
    %v3122 = vunpack.c.l.b16 %v888
    %v3123 = vunpack.c.h.b16 %v888
    %v3124 = vunpack.c.l.b16 %v889
    %v3125 = vunpack.c.h.b16 %v889
    %v3126 = vunpack.c.l.b16 %v890
    %v3127 = vunpack.c.h.b16 %v890
    %v3128 = vunpack.c.l.b16 %v891
    %v3129 = vunpack.c.h.b16 %v891
    %v3130 = vunpack.c.l.b16 %v892
    %v3131 = vunpack.c.h.b16 %v892
    %v3132 = vunpack.c.l.b16 %v893
    %v3133 = vunpack.c.h.b16 %v893
    %v3134 = vunpack.c.l.b16 %v894
    %v3135 = vunpack.c.h.b16 %v894
    %v3136 = vunpack.c.l.b16 %v895
    %v3137 = vunpack.c.h.b16 %v895
    %v3138 = vunpack.c.l.b16 %v896
    %v3139 = vunpack.c.h.b16 %v896
    %v3140 = vunpack.c.l.b16 %v897
    %v3141 = vunpack.c.h.b16 %v897
    %v3142 = vunpack.c.l.b16 %v898
    %v3143 = vunpack.c.h.b16 %v898
    %v3144 = vunpack.c.l.b16 %v899
    %v3145 = vunpack.c.h.b16 %v899
    %v3146 = vunpack.c.l.b16 %v900
    %v3147 = vunpack.c.h.b16 %v900
    %v3148 = vunpack.c.l.b16 %v901
    %v3149 = vunpack.c.h.b16 %v901
    %v3150 = vunpack.c.l.b16 %v902
    %v3151 = vunpack.c.h.b16 %v902
    %v3152 = vunpack.c.l.b16 %v903
    %v3153 = vunpack.c.h.b16 %v903
    %v3154 = vunpack.c.l.b16 %v904
    %v3155 = vunpack.c.h.b16 %v904
    %v3156 = vunpack.c.l.b16 %v905
    %v3157 = vunpack.c.h.b16 %v905
    %v3158 = vunpack.c.l.b16 %v906
    %v3159 = vunpack.c.h.b16 %v906
    %v3160 = vunpack.c.l.b16 %v907
    %v3161 = vunpack.c.h.b16 %v907
    %v3162 = vunpack.c.l.b16 %v908
    %v3163 = vunpack.c.h.b16 %v908
    %v3164 = vunpack.c.l.b16 %v909
    %v3165 = vunpack.c.h.b16 %v909
    %v3166 = vunpack.c.l.b16 %v910
    %v3167 = vunpack.c.h.b16 %v910
    %v3168 = vunpack.c.l.b16 %v911
    %v3169 = vunpack.c.h.b16 %v911
    %v3170 = vunpack.c.l.b16 %v912
    %v3171 = vunpack.c.h.b16 %v912
    %v3172 = vunpack.c.l.b16 %v913
    %v3173 = vunpack.c.h.b16 %v913
    %v3174 = vunpack.c.l.b16 %v914
    %v3175 = vunpack.c.h.b16 %v914
    %v3176 = vunpack.c.l.b16 %v915
    %v3177 = vunpack.c.h.b16 %v915
    %v3178 = vunpack.c.l.b16 %v916
    %v3179 = vunpack.c.h.b16 %v916
    %v3180 = vunpack.c.l.b16 %v917
    %v3181 = vunpack.c.h.b16 %v917
    %v3182 = vunpack.c.l.b16 %v918
    %v3183 = vunpack.c.h.b16 %v918
    %v3184 = vunpack.c.l.b16 %v919
    %v3185 = vunpack.c.h.b16 %v919
    %v3186 = vunpack.c.l.b16 %v920
    %v3187 = vunpack.c.h.b16 %v920
    %v3188 = vunpack.c.l.b16 %v921
    %v3189 = vunpack.c.h.b16 %v921
    %v3190 = vunpack.c.l.b16 %v922
    %v3191 = vunpack.c.h.b16 %v922
    %v3192 = vunpack.c.l.b16 %v923
    %v3193 = vunpack.c.h.b16 %v923
    %v3194 = vunpack.c.l.b16 %v924
    %v3195 = vunpack.c.h.b16 %v924
    %v3196 = vunpack.c.l.b16 %v925
    %v3197 = vunpack.c.h.b16 %v925
    %v3198 = vunpack.c.l.b16 %v926
    %v3199 = vunpack.c.h.b16 %v926
    %v3200 = vunpack.c.l.b16 %v927
    %v3201 = vunpack.c.h.b16 %v927
    %v3202 = vunpack.c.l.b16 %v928
    %v3203 = vunpack.c.h.b16 %v928
    %v3204 = vunpack.c.l.b16 %v929
    %v3205 = vunpack.c.h.b16 %v929
    %v3206 = vunpack.c.l.b16 %v930
    %v3207 = vunpack.c.h.b16 %v930
    %v3208 = vunpack.c.l.b16 %v931
    %v3209 = vunpack.c.h.b16 %v931
    %v3210 = vunpack.c.l.b16 %v932
    %v3211 = vunpack.c.h.b16 %v932
    %v3212 = vunpack.c.l.b16 %v933
    %v3213 = vunpack.c.h.b16 %v933
    %v3214 = vunpack.c.l.b16 %v934
    %v3215 = vunpack.c.h.b16 %v934
    %v3216 = vunpack.c.l.b16 %v935
    %v3217 = vunpack.c.h.b16 %v935
    %v3218 = vunpack.c.l.b16 %v936
    %v3219 = vunpack.c.h.b16 %v936
    %v3220 = vunpack.c.l.b16 %v937
    %v3221 = vunpack.c.h.b16 %v937
    %v3222 = vunpack.c.l.b16 %v938
    %v3223 = vunpack.c.h.b16 %v938
    %v3224 = vunpack.c.l.b16 %v939
    %v3225 = vunpack.c.h.b16 %v939
    %v3226 = vunpack.c.l.b16 %v940
    %v3227 = vunpack.c.h.b16 %v940
    %v3228 = vunpack.c.l.b16 %v941
    %v3229 = vunpack.c.h.b16 %v941
    %v3230 = vunpack.c.l.b16 %v942
    %v3231 = vunpack.c.h.b16 %v942
    %v3232 = vunpack.c.l.b16 %v943
    %v3233 = vunpack.c.h.b16 %v943
    %v3234 = vunpack.c.l.b16 %v944
    %v3235 = vunpack.c.h.b16 %v944
    %v3236 = vunpack.c.l.b16 %v945
    %v3237 = vunpack.c.h.b16 %v945
    %v3238 = vunpack.c.l.b16 %v946
    %v3239 = vunpack.c.h.b16 %v946
    %v3240 = vunpack.c.l.b16 %v947
    %v3241 = vunpack.c.h.b16 %v947
    %v3242 = vunpack.c.l.b16 %v948
    %v3243 = vunpack.c.h.b16 %v948
    %v3244 = vunpack.c.l.b16 %v949
    %v3245 = vunpack.c.h.b16 %v949
    %v3246 = vunpack.c.l.b16 %v950
    %v3247 = vunpack.c.h.b16 %v950
    %v3248 = vunpack.c.l.b16 %v951
    %v3249 = vunpack.c.h.b16 %v951
    %v3250 = vunpack.c.l.b16 %v952
    %v3251 = vunpack.c.h.b16 %v952
    %v3252 = vunpack.c.l.b16 %v953
    %v3253 = vunpack.c.h.b16 %v953
    %v3254 = vunpack.c.l.b16 %v954
    %v3255 = vunpack.c.h.b16 %v954
    %v3256 = vunpack.c.l.b16 %v955
    %v3257 = vunpack.c.h.b16 %v955
    %v3258 = vunpack.c.l.b16 %v956
    %v3259 = vunpack.c.h.b16 %v956
    %v3260 = vunpack.c.l.b16 %v957
    %v3261 = vunpack.c.h.b16 %v957
    %v3262 = vunpack.c.l.b16 %v958
    %v3263 = vunpack.c.h.b16 %v958
    %v3264 = vunpack.c.l.b16 %v959
    %v3265 = vunpack.c.h.b16 %v959
    %v3266 = vunpack.c.l.b16 %v960
    %v3267 = vunpack.c.h.b16 %v960
    %v3268 = vunpack.c.l.b16 %v961
    %v3269 = vunpack.c.h.b16 %v961
    %v3270 = vunpack.c.l.b16 %v962
    %v3271 = vunpack.c.h.b16 %v962
    %v3272 = vunpack.c.l.b16 %v963
    %v3273 = vunpack.c.h.b16 %v963
    %v3274 = vunpack.c.l.b16 %v964
    %v3275 = vunpack.c.h.b16 %v964
    %v3276 = vunpack.c.l.b16 %v965
    %v3277 = vunpack.c.h.b16 %v965
    %v3278 = vunpack.c.l.b16 %v966
    %v3279 = vunpack.c.h.b16 %v966
    %v3280 = vunpack.c.l.b16 %v967
    %v3281 = vunpack.c.h.b16 %v967
    %v3282 = vunpack.c.l.b16 %v968
    %v3283 = vunpack.c.h.b16 %v968
    %v3284 = vunpack.c.l.b16 %v969
    %v3285 = vunpack.c.h.b16 %v969
    %v3286 = vunpack.c.l.b16 %v970
    %v3287 = vunpack.c.h.b16 %v970
    %v3288 = vunpack.c.l.b16 %v971
    %v3289 = vunpack.c.h.b16 %v971
    %v3290 = vunpack.c.l.b16 %v972
    %v3291 = vunpack.c.h.b16 %v972
    %v3292 = vunpack.c.l.b16 %v973
    %v3293 = vunpack.c.h.b16 %v973
    %v3294 = vunpack.c.l.b16 %v974
    %v3295 = vunpack.c.h.b16 %v974
    %v3296 = vunpack.c.l.b16 %v975
    %v3297 = vunpack.c.h.b16 %v975
    %v3298 = vunpack.c.l.b16 %v976
    %v3299 = vunpack.c.h.b16 %v976
    %v3300 = vunpack.c.l.b16 %v977
    %v3301 = vunpack.c.h.b16 %v977
    %v3302 = vunpack.c.l.b16 %v978
    %v3303 = vunpack.c.h.b16 %v978
    %v3304 = vunpack.c.l.b16 %v979
    %v3305 = vunpack.c.h.b16 %v979
    %v3306 = vunpack.c.l.b16 %v980
    %v3307 = vunpack.c.h.b16 %v980
    %v3308 = vunpack.c.l.b16 %v981
    %v3309 = vunpack.c.h.b16 %v981
    %v3310 = vunpack.c.l.b16 %v982
    %v3311 = vunpack.c.h.b16 %v982
    %v3312 = vunpack.c.l.b16 %v983
    %v3313 = vunpack.c.h.b16 %v983
    %v3314 = vunpack.c.l.b16 %v984
    %v3315 = vunpack.c.h.b16 %v984
    %v3316 = vunpack.c.l.b16 %v985
    %v3317 = vunpack.c.h.b16 %v985
    %v3318 = vunpack.c.l.b16 %v986
    %v3319 = vunpack.c.h.b16 %v986
    %v3320 = vunpack.c.l.b16 %v987
    %v3321 = vunpack.c.h.b16 %v987
    %v3322 = vunpack.c.l.b16 %v988
    %v3323 = vunpack.c.h.b16 %v988
    %v3324 = vunpack.c.l.b16 %v989
    %v3325 = vunpack.c.h.b16 %v989
    %v3326 = vunpack.c.l.b16 %v990
    %v3327 = vunpack.c.h.b16 %v990
    %v3328 = vunpack.c.l.b16 %v991
    %v3329 = vunpack.c.h.b16 %v991
    %v3330 = vunpack.c.l.b16 %v992
    %v3331 = vunpack.c.h.b16 %v992
    %v3332 = vunpack.c.l.b16 %v993
    %v3333 = vunpack.c.h.b16 %v993
    %v3334 = vunpack.c.l.b16 %v994
    %v3335 = vunpack.c.h.b16 %v994
    %v3336 = vunpack.c.l.b16 %v995
    %v3337 = vunpack.c.h.b16 %v995
    %v3338 = vunpack.c.l.b16 %v996
    %v3339 = vunpack.c.h.b16 %v996
    %v3340 = vunpack.c.l.b16 %v997
    %v3341 = vunpack.c.h.b16 %v997
    %v3342 = vunpack.c.l.b16 %v998
    %v3343 = vunpack.c.h.b16 %v998
    %v3344 = vunpack.c.l.b16 %v999
    %v3345 = vunpack.c.h.b16 %v999
    %v3346 = vunpack.c.l.b16 %v1000
    %v3347 = vunpack.c.h.b16 %v1000
    %v3348 = vunpack.c.l.b16 %v1001
    %v3349 = vunpack.c.h.b16 %v1001
    %v3350 = vunpack.c.l.b16 %v1002
    %v3351 = vunpack.c.h.b16 %v1002
    %v3352 = vunpack.c.l.b16 %v1003
    %v3353 = vunpack.c.h.b16 %v1003
    %v3354 = vunpack.c.l.b16 %v1004
    %v3355 = vunpack.c.h.b16 %v1004
    %v3356 = vunpack.c.l.b16 %v1005
    %v3357 = vunpack.c.h.b16 %v1005
    %v3358 = vunpack.c.l.b16 %v1006
    %v3359 = vunpack.c.h.b16 %v1006
    %v3360 = vunpack.c.l.b16 %v1007
    %v3361 = vunpack.c.h.b16 %v1007
    %v3362 = vunpack.c.l.b16 %v1008
    %v3363 = vunpack.c.h.b16 %v1008
    %v3364 = vunpack.c.l.b16 %v1009
    %v3365 = vunpack.c.h.b16 %v1009
    %v3366 = vunpack.c.l.b16 %v1010
    %v3367 = vunpack.c.h.b16 %v1010
    %v3368 = vunpack.c.l.b16 %v1011
    %v3369 = vunpack.c.h.b16 %v1011
    %v3370 = vunpack.c.l.b16 %v1012
    %v3371 = vunpack.c.h.b16 %v1012
    %v3372 = vunpack.c.l.b16 %v1013
    %v3373 = vunpack.c.h.b16 %v1013
    %v3374 = vunpack.c.l.b16 %v1014
    %v3375 = vunpack.c.h.b16 %v1014
    %v3376 = vunpack.c.l.b16 %v1015
    %v3377 = vunpack.c.h.b16 %v1015
    %v3378 = vunpack.c.l.b16 %v1016
    %v3379 = vunpack.c.h.b16 %v1016
    %v3380 = vunpack.c.l.b16 %v1017
    %v3381 = vunpack.c.h.b16 %v1017
    %v3382 = vunpack.c.l.b16 %v1018
    %v3383 = vunpack.c.h.b16 %v1018
    %v3384 = vunpack.c.l.b16 %v1019
    %v3385 = vunpack.c.h.b16 %v1019
    %v3386 = vunpack.c.l.b16 %v1020
    %v3387 = vunpack.c.h.b16 %v1020
    %v3388 = vunpack.c.l.b16 %v1021
    %v3389 = vunpack.c.h.b16 %v1021
    %v3390 = vunpack.c.l.b16 %v1022
    %v3391 = vunpack.c.h.b16 %v1022
    %v3392 = vunpack.c.l.b16 %v1023
    %v3393 = vunpack.c.h.b16 %v1023
    %v3394 = vunpack.c.l.b16 %v1024
    %v3395 = vunpack.c.h.b16 %v1024
    %v3396 = vunpack.c.l.b16 %v1025
    %v3397 = vunpack.c.h.b16 %v1025
    %v3398 = vunpack.c.l.b16 %v1026
    %v3399 = vunpack.c.h.b16 %v1026
    %v3400 = vunpack.c.l.b16 %v1027
    %v3401 = vunpack.c.h.b16 %v1027
    %v3402 = vunpack.c.l.b16 %v1028
    %v3403 = vunpack.c.h.b16 %v1028
    %v3404 = vunpack.c.l.b16 %v1029
    %v3405 = vunpack.c.h.b16 %v1029
    %v3406 = vunpack.c.l.b16 %v1030
    %v3407 = vunpack.c.h.b16 %v1030
    %v3408 = vunpack.c.l.b16 %v1031
    %v3409 = vunpack.c.h.b16 %v1031
    %v3410 = vunpack.c.l.b16 %v1032
    %v3411 = vunpack.c.h.b16 %v1032
    %v3412 = vunpack.c.l.b16 %v1033
    %v3413 = vunpack.c.h.b16 %v1033
    %v3414 = vunpack.c.l.b16 %v1034
    %v3415 = vunpack.c.h.b16 %v1034
    %v3416 = vunpack.c.l.b16 %v1035
    %v3417 = vunpack.c.h.b16 %v1035
    %v3418 = vunpack.c.l.b16 %v1036
    %v3419 = vunpack.c.h.b16 %v1036
    %v3420 = vunpack.c.l.b16 %v1037
    %v3421 = vunpack.c.h.b16 %v1037
    %v3422 = vunpack.c.l.b16 %v1038
    %v3423 = vunpack.c.h.b16 %v1038
    %v3424 = vunpack.c.l.b16 %v1039
    %v3425 = vunpack.c.h.b16 %v1039
    %v3426 = vunpack.c.l.b16 %v1040
    %v3427 = vunpack.c.h.b16 %v1040
    %v3428 = vunpack.c.l.b16 %v1041
    %v3429 = vunpack.c.h.b16 %v1041
    %v3430 = vunpack.c.l.b16 %v1042
    %v3431 = vunpack.c.h.b16 %v1042
    %v3432 = vunpack.c.l.b16 %v1043
    %v3433 = vunpack.c.h.b16 %v1043
    %v3434 = vunpack.c.l.b16 %v1044
    %v3435 = vunpack.c.h.b16 %v1044
    %v3436 = vunpack.c.l.b16 %v1045
    %v3437 = vunpack.c.h.b16 %v1045
    %v3438 = vunpack.c.l.b16 %v1046
    %v3439 = vunpack.c.h.b16 %v1046
    %v3440 = vunpack.c.l.b16 %v1047
    %v3441 = vunpack.c.h.b16 %v1047
    %v3442 = vunpack.c.l.b16 %v1048
    %v3443 = vunpack.c.h.b16 %v1048
    %v3444 = vunpack.c.l.b16 %v1049
    %v3445 = vunpack.c.h.b16 %v1049
    %v3446 = vunpack.c.l.b16 %v1050
    %v3447 = vunpack.c.h.b16 %v1050
    %v3448 = vunpack.c.l.b16 %v1051
    %v3449 = vunpack.c.h.b16 %v1051
    %v3450 = vunpack.c.l.b16 %v1052
    %v3451 = vunpack.c.h.b16 %v1052
    %v3452 = vunpack.c.l.b16 %v1053
    %v3453 = vunpack.c.h.b16 %v1053
    %v3454 = vunpack.c.l.b16 %v1054
    %v3455 = vunpack.c.h.b16 %v1054
    %v3456 = vunpack.c.l.b16 %v1055
    %v3457 = vunpack.c.h.b16 %v1055
    %v3458 = vunpack.c.l.b16 %v1056
    %v3459 = vunpack.c.h.b16 %v1056
    %v3460 = vunpack.c.l.b16 %v1057
    %v3461 = vunpack.c.h.b16 %v1057
    %v3462 = vunpack.c.l.b16 %v1058
    %v3463 = vunpack.c.h.b16 %v1058
    %v3464 = vunpack.c.l.b16 %v1059
    %v3465 = vunpack.c.h.b16 %v1059
    %v3466 = vunpack.c.l.b16 %v1060
    %v3467 = vunpack.c.h.b16 %v1060
    %v3468 = vunpack.c.l.b16 %v1061
    %v3469 = vunpack.c.h.b16 %v1061
    %v3470 = vunpack.c.l.b16 %v1062
    %v3471 = vunpack.c.h.b16 %v1062
    %v3472 = vunpack.c.l.b16 %v1063
    %v3473 = vunpack.c.h.b16 %v1063
    %v3474 = vunpack.c.l.b16 %v1064
    %v3475 = vunpack.c.h.b16 %v1064
    %v3476 = vunpack.c.l.b16 %v1065
    %v3477 = vunpack.c.h.b16 %v1065
    %v3478 = vunpack.c.l.b16 %v1066
    %v3479 = vunpack.c.h.b16 %v1066
    %v3480 = vunpack.c.l.b16 %v1067
    %v3481 = vunpack.c.h.b16 %v1067
    %v3482 = vunpack.c.l.b16 %v1068
    %v3483 = vunpack.c.h.b16 %v1068
    %v3484 = vunpack.c.l.b16 %v1069
    %v3485 = vunpack.c.h.b16 %v1069
    %v3486 = vunpack.c.l.b16 %v1070
    %v3487 = vunpack.c.h.b16 %v1070
    %v3488 = vunpack.c.l.b16 %v1071
    %v3489 = vunpack.c.h.b16 %v1071
    %v3490 = vunpack.c.l.b16 %v1072
    %v3491 = vunpack.c.h.b16 %v1072
    %v3492 = vunpack.c.l.b16 %v1073
    %v3493 = vunpack.c.h.b16 %v1073
    %v3494 = vunpack.c.l.b16 %v1074
    %v3495 = vunpack.c.h.b16 %v1074
    %v3496 = vunpack.c.l.b16 %v1075
    %v3497 = vunpack.c.h.b16 %v1075
    %v3498 = vpack.c.b16 %v1902, %v1898
    %v3499 = vpack.c.b16 %v1903, %v1899
    %v3500 = vpack.c.b16 %v1904, %v1900
    %v3501 = vpack.c.b16 %v1905, %v1901
    %v3502 = vpack.c.b16 %v1910, %v1906
    %v3503 = vpack.c.b16 %v1911, %v1907
    %v3504 = vpack.c.b16 %v1912, %v1908
    %v3505 = vpack.c.b16 %v1913, %v1909
    %v3506 = vpack.c.b16 %v1918, %v1914
    %v3507 = vpack.c.b16 %v1919, %v1915
    %v3508 = vpack.c.b16 %v1920, %v1916
    %v3509 = vpack.c.b16 %v1921, %v1917
    %v3510 = vpack.c.b16 %v1926, %v1922
    %v3511 = vpack.c.b16 %v1927, %v1923
    %v3512 = vpack.c.b16 %v1928, %v1924
    %v3513 = vpack.c.b16 %v1929, %v1925
    %v3514 = vpack.c.b16 %v1934, %v1930
    %v3515 = vpack.c.b16 %v1935, %v1931
    %v3516 = vpack.c.b16 %v1936, %v1932
    %v3517 = vpack.c.b16 %v1937, %v1933
    %v3518 = vpack.c.b16 %v1942, %v1938
    %v3519 = vpack.c.b16 %v1943, %v1939
    %v3520 = vpack.c.b16 %v1944, %v1940
    %v3521 = vpack.c.b16 %v1945, %v1941
    %v3522 = vpack.c.b16 %v1950, %v1946
    %v3523 = vpack.c.b16 %v1951, %v1947
    %v3524 = vpack.c.b16 %v1952, %v1948
    %v3525 = vpack.c.b16 %v1953, %v1949
    %v3526 = vpack.c.b16 %v1958, %v1954
    %v3527 = vpack.c.b16 %v1959, %v1955
    %v3528 = vpack.c.b16 %v1960, %v1956
    %v3529 = vpack.c.b16 %v1961, %v1957
    %v3530 = vpack.c.b16 %v1966, %v1962
    %v3531 = vpack.c.b16 %v1967, %v1963
    %v3532 = vpack.c.b16 %v1968, %v1964
    %v3533 = vpack.c.b16 %v1969, %v1965
    %v3534 = vpack.c.b16 %v1974, %v1970
    %v3535 = vpack.c.b16 %v1975, %v1971
    %v3536 = vpack.c.b16 %v1976, %v1972
    %v3537 = vpack.c.b16 %v1977, %v1973
    %v3538 = vpack.c.b16 %v1982, %v1978
    %v3539 = vpack.c.b16 %v1983, %v1979
    %v3540 = vpack.c.b16 %v1984, %v1980
    %v3541 = vpack.c.b16 %v1985, %v1981
    %v3542 = vpack.c.b16 %v1990, %v1986
    %v3543 = vpack.c.b16 %v1991, %v1987
    %v3544 = vpack.c.b16 %v1992, %v1988
    %v3545 = vpack.c.b16 %v1993, %v1989
    %v3546 = vpack.c.b16 %v1998, %v1994
    %v3547 = vpack.c.b16 %v1999, %v1995
    %v3548 = vpack.c.b16 %v2000, %v1996
    %v3549 = vpack.c.b16 %v2001, %v1997
    %v3550 = vpack.c.b16 %v2006, %v2002
    %v3551 = vpack.c.b16 %v2007, %v2003
    %v3552 = vpack.c.b16 %v2008, %v2004
    %v3553 = vpack.c.b16 %v2009, %v2005
    %v3554 = vpack.c.b16 %v2014, %v2010
    %v3555 = vpack.c.b16 %v2015, %v2011
    %v3556 = vpack.c.b16 %v2016, %v2012
    %v3557 = vpack.c.b16 %v2017, %v2013
    %v3558 = vpack.c.b16 %v2022, %v2018
    %v3559 = vpack.c.b16 %v2023, %v2019
    %v3560 = vpack.c.b16 %v2024, %v2020
    %v3561 = vpack.c.b16 %v2025, %v2021
    %v3562 = vpack.c.b16 %v2030, %v2026
    %v3563 = vpack.c.b16 %v2031, %v2027
    %v3564 = vpack.c.b16 %v2032, %v2028
    %v3565 = vpack.c.b16 %v2033, %v2029
    %v3566 = vpack.c.b16 %v2038, %v2034
    %v3567 = vpack.c.b16 %v2039, %v2035
    %v3568 = vpack.c.b16 %v2040, %v2036
    %v3569 = vpack.c.b16 %v2041, %v2037
    %v3570 = vpack.c.b16 %v2046, %v2042
    %v3571 = vpack.c.b16 %v2047, %v2043
    %v3572 = vpack.c.b16 %v2048, %v2044
    %v3573 = vpack.c.b16 %v2049, %v2045
    %v3574 = vpack.c.b16 %v2054, %v2050
    %v3575 = vpack.c.b16 %v2055, %v2051
    %v3576 = vpack.c.b16 %v2056, %v2052
    %v3577 = vpack.c.b16 %v2057, %v2053
    %v3578 = vpack.c.b16 %v2062, %v2058
    %v3579 = vpack.c.b16 %v2063, %v2059
    %v3580 = vpack.c.b16 %v2064, %v2060
    %v3581 = vpack.c.b16 %v2065, %v2061
    %v3582 = vpack.c.b16 %v2070, %v2066
    %v3583 = vpack.c.b16 %v2071, %v2067
    %v3584 = vpack.c.b16 %v2072, %v2068
    %v3585 = vpack.c.b16 %v2073, %v2069
    %v3586 = vpack.c.b16 %v2078, %v2074
    %v3587 = vpack.c.b16 %v2079, %v2075
    %v3588 = vpack.c.b16 %v2080, %v2076
    %v3589 = vpack.c.b16 %v2081, %v2077
    %v3590 = vpack.c.b16 %v2086, %v2082
    %v3591 = vpack.c.b16 %v2087, %v2083
    %v3592 = vpack.c.b16 %v2088, %v2084
    %v3593 = vpack.c.b16 %v2089, %v2085
    %v3594 = vpack.c.b16 %v2094, %v2090
    %v3595 = vpack.c.b16 %v2095, %v2091
    %v3596 = vpack.c.b16 %v2096, %v2092
    %v3597 = vpack.c.b16 %v2097, %v2093
    %v3598 = vpack.c.b16 %v2102, %v2098
    %v3599 = vpack.c.b16 %v2103, %v2099
    %v3600 = vpack.c.b16 %v2104, %v2100
    %v3601 = vpack.c.b16 %v2105, %v2101
    %v3602 = vpack.c.b16 %v2110, %v2106
    %v3603 = vpack.c.b16 %v2111, %v2107
    %v3604 = vpack.c.b16 %v2112, %v2108
    %v3605 = vpack.c.b16 %v2113, %v2109
    %v3606 = vpack.c.b16 %v2118, %v2114
    %v3607 = vpack.c.b16 %v2119, %v2115
    %v3608 = vpack.c.b16 %v2120, %v2116
    %v3609 = vpack.c.b16 %v2121, %v2117
    %v3610 = vpack.c.b16 %v2126, %v2122
    %v3611 = vpack.c.b16 %v2127, %v2123
    %v3612 = vpack.c.b16 %v2128, %v2124
    %v3613 = vpack.c.b16 %v2129, %v2125
    %v3614 = vpack.c.b16 %v2134, %v2130
    %v3615 = vpack.c.b16 %v2135, %v2131
    %v3616 = vpack.c.b16 %v2136, %v2132
    %v3617 = vpack.c.b16 %v2137, %v2133
    %v3618 = vpack.c.b16 %v2142, %v2138
    %v3619 = vpack.c.b16 %v2143, %v2139
    %v3620 = vpack.c.b16 %v2144, %v2140
    %v3621 = vpack.c.b16 %v2145, %v2141
    %v3622 = vpack.c.b16 %v2150, %v2146
    %v3623 = vpack.c.b16 %v2151, %v2147
    %v3624 = vpack.c.b16 %v2152, %v2148
    %v3625 = vpack.c.b16 %v2153, %v2149
    %v3626 = vpack.c.b16 %v2158, %v2154
    %v3627 = vpack.c.b16 %v2159, %v2155
    %v3628 = vpack.c.b16 %v2160, %v2156
    %v3629 = vpack.c.b16 %v2161, %v2157
    %v3630 = vpack.c.b16 %v2166, %v2162
    %v3631 = vpack.c.b16 %v2167, %v2163
    %v3632 = vpack.c.b16 %v2168, %v2164
    %v3633 = vpack.c.b16 %v2169, %v2165
    %v3634 = vpack.c.b16 %v2174, %v2170
    %v3635 = vpack.c.b16 %v2175, %v2171
    %v3636 = vpack.c.b16 %v2176, %v2172
    %v3637 = vpack.c.b16 %v2177, %v2173
    %v3638 = vpack.c.b16 %v2182, %v2178
    %v3639 = vpack.c.b16 %v2183, %v2179
    %v3640 = vpack.c.b16 %v2184, %v2180
    %v3641 = vpack.c.b16 %v2185, %v2181
    %v3642 = vpack.c.b16 %v2190, %v2186
    %v3643 = vpack.c.b16 %v2191, %v2187
    %v3644 = vpack.c.b16 %v2192, %v2188
    %v3645 = vpack.c.b16 %v2193, %v2189
    %v3646 = vpack.c.b16 %v2198, %v2194
    %v3647 = vpack.c.b16 %v2199, %v2195
    %v3648 = vpack.c.b16 %v2200, %v2196
    %v3649 = vpack.c.b16 %v2201, %v2197
    %v3650 = vpack.c.b16 %v2206, %v2202
    %v3651 = vpack.c.b16 %v2207, %v2203
    %v3652 = vpack.c.b16 %v2208, %v2204
    %v3653 = vpack.c.b16 %v2209, %v2205
    %v3654 = vpack.c.b16 %v2214, %v2210
    %v3655 = vpack.c.b16 %v2215, %v2211
    %v3656 = vpack.c.b16 %v2216, %v2212
    %v3657 = vpack.c.b16 %v2217, %v2213
    %v3658 = vpack.c.b16 %v2222, %v2218
    %v3659 = vpack.c.b16 %v2223, %v2219
    %v3660 = vpack.c.b16 %v2224, %v2220
    %v3661 = vpack.c.b16 %v2225, %v2221
    %v3662 = vpack.c.b16 %v2230, %v2226
    %v3663 = vpack.c.b16 %v2231, %v2227
    %v3664 = vpack.c.b16 %v2232, %v2228
    %v3665 = vpack.c.b16 %v2233, %v2229
    %v3666 = vpack.c.b16 %v2238, %v2234
    %v3667 = vpack.c.b16 %v2239, %v2235
    %v3668 = vpack.c.b16 %v2240, %v2236
    %v3669 = vpack.c.b16 %v2241, %v2237
    %v3670 = vpack.c.b16 %v2246, %v2242
    %v3671 = vpack.c.b16 %v2247, %v2243
    %v3672 = vpack.c.b16 %v2248, %v2244
    %v3673 = vpack.c.b16 %v2249, %v2245
    %v3674 = vpack.c.b16 %v2254, %v2250
    %v3675 = vpack.c.b16 %v2255, %v2251
    %v3676 = vpack.c.b16 %v2256, %v2252
    %v3677 = vpack.c.b16 %v2257, %v2253
    %v3678 = vpack.c.b16 %v2262, %v2258
    %v3679 = vpack.c.b16 %v2263, %v2259
    %v3680 = vpack.c.b16 %v2264, %v2260
    %v3681 = vpack.c.b16 %v2265, %v2261
    %v3682 = vpack.c.b16 %v2270, %v2266
    %v3683 = vpack.c.b16 %v2271, %v2267
    %v3684 = vpack.c.b16 %v2272, %v2268
    %v3685 = vpack.c.b16 %v2273, %v2269
    %v3686 = vpack.c.b16 %v2278, %v2274
    %v3687 = vpack.c.b16 %v2279, %v2275
    %v3688 = vpack.c.b16 %v2280, %v2276
    %v3689 = vpack.c.b16 %v2281, %v2277
    %v3690 = vpack.c.b16 %v2286, %v2282
    %v3691 = vpack.c.b16 %v2287, %v2283
    %v3692 = vpack.c.b16 %v2288, %v2284
    %v3693 = vpack.c.b16 %v2289, %v2285
    %v3694 = vpack.c.b16 %v2294, %v2290
    %v3695 = vpack.c.b16 %v2295, %v2291
    %v3696 = vpack.c.b16 %v2296, %v2292
    %v3697 = vpack.c.b16 %v2297, %v2293
    %v3698 = vpack.c.b16 %v2302, %v2298
    %v3699 = vpack.c.b16 %v2303, %v2299
    %v3700 = vpack.c.b16 %v2304, %v2300
    %v3701 = vpack.c.b16 %v2305, %v2301
    %v3702 = vpack.c.b16 %v2310, %v2306
    %v3703 = vpack.c.b16 %v2311, %v2307
    %v3704 = vpack.c.b16 %v2312, %v2308
    %v3705 = vpack.c.b16 %v2313, %v2309
    %v3706 = vpack.c.b16 %v2318, %v2314
    %v3707 = vpack.c.b16 %v2319, %v2315
    %v3708 = vpack.c.b16 %v2320, %v2316
    %v3709 = vpack.c.b16 %v2321, %v2317
    %v3710 = vpack.c.b16 %v2326, %v2322
    %v3711 = vpack.c.b16 %v2327, %v2323
    %v3712 = vpack.c.b16 %v2328, %v2324
    %v3713 = vpack.c.b16 %v2329, %v2325
    %v3714 = vpack.c.b16 %v2334, %v2330
    %v3715 = vpack.c.b16 %v2335, %v2331
    %v3716 = vpack.c.b16 %v2336, %v2332
    %v3717 = vpack.c.b16 %v2337, %v2333
    %v3718 = vpack.c.b16 %v2342, %v2338
    %v3719 = vpack.c.b16 %v2343, %v2339
    %v3720 = vpack.c.b16 %v2344, %v2340
    %v3721 = vpack.c.b16 %v2345, %v2341
    %v3722 = vpack.c.b16 %v2350, %v2346
    %v3723 = vpack.c.b16 %v2351, %v2347
    %v3724 = vpack.c.b16 %v2352, %v2348
    %v3725 = vpack.c.b16 %v2353, %v2349
    %v3726 = vpack.c.b16 %v2358, %v2354
    %v3727 = vpack.c.b16 %v2359, %v2355
    %v3728 = vpack.c.b16 %v2360, %v2356
    %v3729 = vpack.c.b16 %v2361, %v2357
    %v3730 = vpack.c.b16 %v2366, %v2362
    %v3731 = vpack.c.b16 %v2367, %v2363
    %v3732 = vpack.c.b16 %v2368, %v2364
    %v3733 = vpack.c.b16 %v2369, %v2365
    %v3734 = vpack.c.b16 %v2374, %v2370
    %v3735 = vpack.c.b16 %v2375, %v2371
    %v3736 = vpack.c.b16 %v2376, %v2372
    %v3737 = vpack.c.b16 %v2377, %v2373
    %v3738 = vpack.c.b16 %v2382, %v2378
    %v3739 = vpack.c.b16 %v2383, %v2379
    %v3740 = vpack.c.b16 %v2384, %v2380
    %v3741 = vpack.c.b16 %v2385, %v2381
    %v3742 = vpack.c.b16 %v2390, %v2386
    %v3743 = vpack.c.b16 %v2391, %v2387
    %v3744 = vpack.c.b16 %v2392, %v2388
    %v3745 = vpack.c.b16 %v2393, %v2389
    %v3746 = vpack.c.b16 %v2398, %v2394
    %v3747 = vpack.c.b16 %v2399, %v2395
    %v3748 = vpack.c.b16 %v2400, %v2396
    %v3749 = vpack.c.b16 %v2401, %v2397
    %v3750 = vpack.c.b16 %v2406, %v2402
    %v3751 = vpack.c.b16 %v2407, %v2403
    %v3752 = vpack.c.b16 %v2408, %v2404
    %v3753 = vpack.c.b16 %v2409, %v2405
    %v3754 = vpack.c.b16 %v2414, %v2410
    %v3755 = vpack.c.b16 %v2415, %v2411
    %v3756 = vpack.c.b16 %v2416, %v2412
    %v3757 = vpack.c.b16 %v2417, %v2413
    %v3758 = vpack.c.b16 %v2422, %v2418
    %v3759 = vpack.c.b16 %v2423, %v2419
    %v3760 = vpack.c.b16 %v2424, %v2420
    %v3761 = vpack.c.b16 %v2425, %v2421
    %v3762 = vpack.c.b16 %v2430, %v2426
    %v3763 = vpack.c.b16 %v2431, %v2427
    %v3764 = vpack.c.b16 %v2432, %v2428
    %v3765 = vpack.c.b16 %v2433, %v2429
    %v3766 = vpack.c.b16 %v2438, %v2434
    %v3767 = vpack.c.b16 %v2439, %v2435
    %v3768 = vpack.c.b16 %v2440, %v2436
    %v3769 = vpack.c.b16 %v2441, %v2437
    %v3770 = vpack.c.b16 %v2446, %v2442
    %v3771 = vpack.c.b16 %v2447, %v2443
    %v3772 = vpack.c.b16 %v2448, %v2444
    %v3773 = vpack.c.b16 %v2449, %v2445
    %v3774 = vpack.c.b16 %v2454, %v2450
    %v3775 = vpack.c.b16 %v2455, %v2451
    %v3776 = vpack.c.b16 %v2456, %v2452
    %v3777 = vpack.c.b16 %v2457, %v2453
    %v3778 = vpack.c.b16 %v2462, %v2458
    %v3779 = vpack.c.b16 %v2463, %v2459
    %v3780 = vpack.c.b16 %v2464, %v2460
    %v3781 = vpack.c.b16 %v2465, %v2461
    %v3782 = vpack.c.b16 %v2470, %v2466
    %v3783 = vpack.c.b16 %v2471, %v2467
    %v3784 = vpack.c.b16 %v2472, %v2468
    %v3785 = vpack.c.b16 %v2473, %v2469
    %v3786 = vpack.c.b16 %v2478, %v2474
    %v3787 = vpack.c.b16 %v2479, %v2475
    %v3788 = vpack.c.b16 %v2480, %v2476
    %v3789 = vpack.c.b16 %v2481, %v2477
    %v3790 = vpack.c.b16 %v2486, %v2482
    %v3791 = vpack.c.b16 %v2487, %v2483
    %v3792 = vpack.c.b16 %v2488, %v2484
    %v3793 = vpack.c.b16 %v2489, %v2485
    %v3794 = vpack.c.b16 %v2494, %v2490
    %v3795 = vpack.c.b16 %v2495, %v2491
    %v3796 = vpack.c.b16 %v2496, %v2492
    %v3797 = vpack.c.b16 %v2497, %v2493
    %v3798 = vpack.c.b16 %v2502, %v2498
    %v3799 = vpack.c.b16 %v2503, %v2499
    %v3800 = vpack.c.b16 %v2504, %v2500
    %v3801 = vpack.c.b16 %v2505, %v2501
    %v3802 = vpack.c.b16 %v2510, %v2506
    %v3803 = vpack.c.b16 %v2511, %v2507
    %v3804 = vpack.c.b16 %v2512, %v2508
    %v3805 = vpack.c.b16 %v2513, %v2509
    %v3806 = vpack.c.b16 %v2518, %v2514
    %v3807 = vpack.c.b16 %v2519, %v2515
    %v3808 = vpack.c.b16 %v2520, %v2516
    %v3809 = vpack.c.b16 %v2521, %v2517
    %v3810 = vpack.c.b16 %v2526, %v2522
    %v3811 = vpack.c.b16 %v2527, %v2523
    %v3812 = vpack.c.b16 %v2528, %v2524
    %v3813 = vpack.c.b16 %v2529, %v2525
    %v3814 = vpack.c.b16 %v2534, %v2530
    %v3815 = vpack.c.b16 %v2535, %v2531
    %v3816 = vpack.c.b16 %v2536, %v2532
    %v3817 = vpack.c.b16 %v2537, %v2533
    %v3818 = vpack.c.b16 %v2542, %v2538
    %v3819 = vpack.c.b16 %v2543, %v2539
    %v3820 = vpack.c.b16 %v2544, %v2540
    %v3821 = vpack.c.b16 %v2545, %v2541
    %v3822 = vpack.c.b16 %v2550, %v2546
    %v3823 = vpack.c.b16 %v2551, %v2547
    %v3824 = vpack.c.b16 %v2552, %v2548
    %v3825 = vpack.c.b16 %v2553, %v2549
    %v3826 = vpack.c.b16 %v2558, %v2554
    %v3827 = vpack.c.b16 %v2559, %v2555
    %v3828 = vpack.c.b16 %v2560, %v2556
    %v3829 = vpack.c.b16 %v2561, %v2557
    %v3830 = vpack.c.b16 %v2566, %v2562
    %v3831 = vpack.c.b16 %v2567, %v2563
    %v3832 = vpack.c.b16 %v2568, %v2564
    %v3833 = vpack.c.b16 %v2569, %v2565
    %v3834 = vpack.c.b16 %v2574, %v2570
    %v3835 = vpack.c.b16 %v2575, %v2571
    %v3836 = vpack.c.b16 %v2576, %v2572
    %v3837 = vpack.c.b16 %v2577, %v2573
    %v3838 = vpack.c.b16 %v2582, %v2578
    %v3839 = vpack.c.b16 %v2583, %v2579
    %v3840 = vpack.c.b16 %v2584, %v2580
    %v3841 = vpack.c.b16 %v2585, %v2581
    %v3842 = vpack.c.b16 %v2590, %v2586
    %v3843 = vpack.c.b16 %v2591, %v2587
    %v3844 = vpack.c.b16 %v2592, %v2588
    %v3845 = vpack.c.b16 %v2593, %v2589
    %v3846 = vpack.c.b16 %v2598, %v2594
    %v3847 = vpack.c.b16 %v2599, %v2595
    %v3848 = vpack.c.b16 %v2600, %v2596
    %v3849 = vpack.c.b16 %v2601, %v2597
    %v3850 = vpack.c.b16 %v2606, %v2602
    %v3851 = vpack.c.b16 %v2607, %v2603
    %v3852 = vpack.c.b16 %v2608, %v2604
    %v3853 = vpack.c.b16 %v2609, %v2605
    %v3854 = vpack.c.b16 %v2614, %v2610
    %v3855 = vpack.c.b16 %v2615, %v2611
    %v3856 = vpack.c.b16 %v2616, %v2612
    %v3857 = vpack.c.b16 %v2617, %v2613
    %v3858 = vpack.c.b16 %v2622, %v2618
    %v3859 = vpack.c.b16 %v2623, %v2619
    %v3860 = vpack.c.b16 %v2624, %v2620
    %v3861 = vpack.c.b16 %v2625, %v2621
    %v3862 = vpack.c.b16 %v2630, %v2626
    %v3863 = vpack.c.b16 %v2631, %v2627
    %v3864 = vpack.c.b16 %v2632, %v2628
    %v3865 = vpack.c.b16 %v2633, %v2629
    %v3866 = vpack.c.b16 %v2638, %v2634
    %v3867 = vpack.c.b16 %v2639, %v2635
    %v3868 = vpack.c.b16 %v2640, %v2636
    %v3869 = vpack.c.b16 %v2641, %v2637
    %v3870 = vpack.c.b16 %v2646, %v2642
    %v3871 = vpack.c.b16 %v2647, %v2643
    %v3872 = vpack.c.b16 %v2648, %v2644
    %v3873 = vpack.c.b16 %v2649, %v2645
    %v3874 = vpack.c.b16 %v2654, %v2650
    %v3875 = vpack.c.b16 %v2655, %v2651
    %v3876 = vpack.c.b16 %v2656, %v2652
    %v3877 = vpack.c.b16 %v2657, %v2653
    %v3878 = vpack.c.b16 %v2662, %v2658
    %v3879 = vpack.c.b16 %v2663, %v2659
    %v3880 = vpack.c.b16 %v2664, %v2660
    %v3881 = vpack.c.b16 %v2665, %v2661
    %v3882 = vpack.c.b16 %v2670, %v2666
    %v3883 = vpack.c.b16 %v2671, %v2667
    %v3884 = vpack.c.b16 %v2672, %v2668
    %v3885 = vpack.c.b16 %v2673, %v2669
    %v3886 = vpack.c.b16 %v2678, %v2674
    %v3887 = vpack.c.b16 %v2679, %v2675
    %v3888 = vpack.c.b16 %v2680, %v2676
    %v3889 = vpack.c.b16 %v2681, %v2677
    %v3890 = vpack.c.b16 %v2686, %v2682
    %v3891 = vpack.c.b16 %v2687, %v2683
    %v3892 = vpack.c.b16 %v2688, %v2684
    %v3893 = vpack.c.b16 %v2689, %v2685
    %v3894 = vpack.c.b16 %v2694, %v2690
    %v3895 = vpack.c.b16 %v2695, %v2691
    %v3896 = vpack.c.b16 %v2696, %v2692
    %v3897 = vpack.c.b16 %v2697, %v2693
    %v3898 = vpack.c.b16 %v2702, %v2698
    %v3899 = vpack.c.b16 %v2703, %v2699
    %v3900 = vpack.c.b16 %v2704, %v2700
    %v3901 = vpack.c.b16 %v2705, %v2701
    %v3902 = vpack.c.b16 %v2710, %v2706
    %v3903 = vpack.c.b16 %v2711, %v2707
    %v3904 = vpack.c.b16 %v2712, %v2708
    %v3905 = vpack.c.b16 %v2713, %v2709
    %v3906 = vpack.c.b16 %v2718, %v2714
    %v3907 = vpack.c.b16 %v2719, %v2715
    %v3908 = vpack.c.b16 %v2720, %v2716
    %v3909 = vpack.c.b16 %v2721, %v2717
    %v3910 = vpack.c.b16 %v2726, %v2722
    %v3911 = vpack.c.b16 %v2727, %v2723
    %v3912 = vpack.c.b16 %v2728, %v2724
    %v3913 = vpack.c.b16 %v2729, %v2725
    %v3914 = vpack.c.b16 %v2734, %v2730
    %v3915 = vpack.c.b16 %v2735, %v2731
    %v3916 = vpack.c.b16 %v2736, %v2732
    %v3917 = vpack.c.b16 %v2737, %v2733
    %v3918 = vpack.c.b16 %v2742, %v2738
    %v3919 = vpack.c.b16 %v2743, %v2739
    %v3920 = vpack.c.b16 %v2744, %v2740
    %v3921 = vpack.c.b16 %v2745, %v2741
    %v3922 = vpack.c.b16 %v2750, %v2746
    %v3923 = vpack.c.b16 %v2751, %v2747
    %v3924 = vpack.c.b16 %v2752, %v2748
    %v3925 = vpack.c.b16 %v2753, %v2749
    %v3926 = vpack.c.b16 %v2758, %v2754
    %v3927 = vpack.c.b16 %v2759, %v2755
    %v3928 = vpack.c.b16 %v2760, %v2756
    %v3929 = vpack.c.b16 %v2761, %v2757
    %v3930 = vpack.c.b16 %v2766, %v2762
    %v3931 = vpack.c.b16 %v2767, %v2763
    %v3932 = vpack.c.b16 %v2768, %v2764
    %v3933 = vpack.c.b16 %v2769, %v2765
    %v3934 = vpack.c.b16 %v2774, %v2770
    %v3935 = vpack.c.b16 %v2775, %v2771
    %v3936 = vpack.c.b16 %v2776, %v2772
    %v3937 = vpack.c.b16 %v2777, %v2773
    %v3938 = vpack.c.b16 %v2782, %v2778
    %v3939 = vpack.c.b16 %v2783, %v2779
    %v3940 = vpack.c.b16 %v2784, %v2780
    %v3941 = vpack.c.b16 %v2785, %v2781
    %v3942 = vpack.c.b16 %v2790, %v2786
    %v3943 = vpack.c.b16 %v2791, %v2787
    %v3944 = vpack.c.b16 %v2792, %v2788
    %v3945 = vpack.c.b16 %v2793, %v2789
    %v3946 = vpack.c.b16 %v2798, %v2794
    %v3947 = vpack.c.b16 %v2799, %v2795
    %v3948 = vpack.c.b16 %v2800, %v2796
    %v3949 = vpack.c.b16 %v2801, %v2797
    %v3950 = vpack.c.b16 %v2806, %v2802
    %v3951 = vpack.c.b16 %v2807, %v2803
    %v3952 = vpack.c.b16 %v2808, %v2804
    %v3953 = vpack.c.b16 %v2809, %v2805
    %v3954 = vpack.c.b16 %v2814, %v2810
    %v3955 = vpack.c.b16 %v2815, %v2811
    %v3956 = vpack.c.b16 %v2816, %v2812
    %v3957 = vpack.c.b16 %v2817, %v2813
    %v3958 = vpack.c.b16 %v2822, %v2818
    %v3959 = vpack.c.b16 %v2823, %v2819
    %v3960 = vpack.c.b16 %v2824, %v2820
    %v3961 = vpack.c.b16 %v2825, %v2821
    %v3962 = vpack.c.b16 %v2830, %v2826
    %v3963 = vpack.c.b16 %v2831, %v2827
    %v3964 = vpack.c.b16 %v2832, %v2828
    %v3965 = vpack.c.b16 %v2833, %v2829
    %v3966 = vpack.c.b16 %v2838, %v2834
    %v3967 = vpack.c.b16 %v2839, %v2835
    %v3968 = vpack.c.b16 %v2840, %v2836
    %v3969 = vpack.c.b16 %v2841, %v2837
    %v3970 = vpack.c.b16 %v2846, %v2842
    %v3971 = vpack.c.b16 %v2847, %v2843
    %v3972 = vpack.c.b16 %v2848, %v2844
    %v3973 = vpack.c.b16 %v2849, %v2845
    %v3974 = vpack.c.b16 %v2854, %v2850
    %v3975 = vpack.c.b16 %v2855, %v2851
    %v3976 = vpack.c.b16 %v2856, %v2852
    %v3977 = vpack.c.b16 %v2857, %v2853
    %v3978 = vpack.c.b16 %v2862, %v2858
    %v3979 = vpack.c.b16 %v2863, %v2859
    %v3980 = vpack.c.b16 %v2864, %v2860
    %v3981 = vpack.c.b16 %v2865, %v2861
    %v3982 = vpack.c.b16 %v2870, %v2866
    %v3983 = vpack.c.b16 %v2871, %v2867
    %v3984 = vpack.c.b16 %v2872, %v2868
    %v3985 = vpack.c.b16 %v2873, %v2869
    %v3986 = vpack.c.b16 %v2878, %v2874
    %v3987 = vpack.c.b16 %v2879, %v2875
    %v3988 = vpack.c.b16 %v2880, %v2876
    %v3989 = vpack.c.b16 %v2881, %v2877
    %v3990 = vpack.c.b16 %v2886, %v2882
    %v3991 = vpack.c.b16 %v2887, %v2883
    %v3992 = vpack.c.b16 %v2888, %v2884
    %v3993 = vpack.c.b16 %v2889, %v2885
    %v3994 = vpack.c.b16 %v2894, %v2890
    %v3995 = vpack.c.b16 %v2895, %v2891
    %v3996 = vpack.c.b16 %v2896, %v2892
    %v3997 = vpack.c.b16 %v2897, %v2893
    %v3998 = vpack.c.b16 %v2902, %v2898
    %v3999 = vpack.c.b16 %v2903, %v2899
    %v4000 = vpack.c.b16 %v2904, %v2900
    %v4001 = vpack.c.b16 %v2905, %v2901
    %v4002 = vpack.c.b16 %v2910, %v2906
    %v4003 = vpack.c.b16 %v2911, %v2907
    %v4004 = vpack.c.b16 %v2912, %v2908
    %v4005 = vpack.c.b16 %v2913, %v2909
    %v4006 = vpack.c.b16 %v2918, %v2914
    %v4007 = vpack.c.b16 %v2919, %v2915
    %v4008 = vpack.c.b16 %v2920, %v2916
    %v4009 = vpack.c.b16 %v2921, %v2917
    %v4010 = vpack.c.b16 %v2926, %v2922
    %v4011 = vpack.c.b16 %v2927, %v2923
    %v4012 = vpack.c.b16 %v2928, %v2924
    %v4013 = vpack.c.b16 %v2929, %v2925
    %v4014 = vpack.c.b16 %v2934, %v2930
    %v4015 = vpack.c.b16 %v2935, %v2931
    %v4016 = vpack.c.b16 %v2936, %v2932
    %v4017 = vpack.c.b16 %v2937, %v2933
    %v4018 = vpack.c.b16 %v2942, %v2938
    %v4019 = vpack.c.b16 %v2943, %v2939
    %v4020 = vpack.c.b16 %v2944, %v2940
    %v4021 = vpack.c.b16 %v2945, %v2941
    %v4022 = vpack.c.b16 %v2950, %v2946
    %v4023 = vpack.c.b16 %v2951, %v2947
    %v4024 = vpack.c.b16 %v2952, %v2948
    %v4025 = vpack.c.b16 %v2953, %v2949
    %v4026 = vpack.c.b16 %v2958, %v2954
    %v4027 = vpack.c.b16 %v2959, %v2955
    %v4028 = vpack.c.b16 %v2960, %v2956
    %v4029 = vpack.c.b16 %v2961, %v2957
    %v4030 = vpack.c.b16 %v2966, %v2962
    %v4031 = vpack.c.b16 %v2967, %v2963
    %v4032 = vpack.c.b16 %v2968, %v2964
    %v4033 = vpack.c.b16 %v2969, %v2965
    %v4034 = vpack.c.b16 %v2974, %v2970
    %v4035 = vpack.c.b16 %v2975, %v2971
    %v4036 = vpack.c.b16 %v2976, %v2972
    %v4037 = vpack.c.b16 %v2977, %v2973
    %v4038 = vpack.c.b16 %v2982, %v2978
    %v4039 = vpack.c.b16 %v2983, %v2979
    %v4040 = vpack.c.b16 %v2984, %v2980
    %v4041 = vpack.c.b16 %v2985, %v2981
    %v4042 = vpack.c.b16 %v2990, %v2986
    %v4043 = vpack.c.b16 %v2991, %v2987
    %v4044 = vpack.c.b16 %v2992, %v2988
    %v4045 = vpack.c.b16 %v2993, %v2989
    %v4046 = vpack.c.b16 %v2998, %v2994
    %v4047 = vpack.c.b16 %v2999, %v2995
    %v4048 = vpack.c.b16 %v3000, %v2996
    %v4049 = vpack.c.b16 %v3001, %v2997
    %v4050 = vpack.c.b16 %v3006, %v3002
    %v4051 = vpack.c.b16 %v3007, %v3003
    %v4052 = vpack.c.b16 %v3008, %v3004
    %v4053 = vpack.c.b16 %v3009, %v3005
    %v4054 = vpack.c.b16 %v3014, %v3010
    %v4055 = vpack.c.b16 %v3015, %v3011
    %v4056 = vpack.c.b16 %v3016, %v3012
    %v4057 = vpack.c.b16 %v3017, %v3013
    %v4058 = vpack.c.b16 %v3022, %v3018
    %v4059 = vpack.c.b16 %v3023, %v3019
    %v4060 = vpack.c.b16 %v3024, %v3020
    %v4061 = vpack.c.b16 %v3025, %v3021
    %v4062 = vpack.c.b16 %v3030, %v3026
    %v4063 = vpack.c.b16 %v3031, %v3027
    %v4064 = vpack.c.b16 %v3032, %v3028
    %v4065 = vpack.c.b16 %v3033, %v3029
    %v4066 = vpack.c.b16 %v3038, %v3034
    %v4067 = vpack.c.b16 %v3039, %v3035
    %v4068 = vpack.c.b16 %v3040, %v3036
    %v4069 = vpack.c.b16 %v3041, %v3037
    %v4070 = vpack.c.b16 %v3046, %v3042
    %v4071 = vpack.c.b16 %v3047, %v3043
    %v4072 = vpack.c.b16 %v3048, %v3044
    %v4073 = vpack.c.b16 %v3049, %v3045
    %v4074 = vpack.c.b16 %v3054, %v3050
    %v4075 = vpack.c.b16 %v3055, %v3051
    %v4076 = vpack.c.b16 %v3056, %v3052
    %v4077 = vpack.c.b16 %v3057, %v3053
    %v4078 = vpack.c.b16 %v3062, %v3058
    %v4079 = vpack.c.b16 %v3063, %v3059
    %v4080 = vpack.c.b16 %v3064, %v3060
    %v4081 = vpack.c.b16 %v3065, %v3061
    %v4082 = vpack.c.b16 %v3070, %v3066
    %v4083 = vpack.c.b16 %v3071, %v3067
    %v4084 = vpack.c.b16 %v3072, %v3068
    %v4085 = vpack.c.b16 %v3073, %v3069
    %v4086 = vpack.c.b16 %v3078, %v3074
    %v4087 = vpack.c.b16 %v3079, %v3075
    %v4088 = vpack.c.b16 %v3080, %v3076
    %v4089 = vpack.c.b16 %v3081, %v3077
    %v4090 = vpack.c.b16 %v3086, %v3082
    %v4091 = vpack.c.b16 %v3087, %v3083
    %v4092 = vpack.c.b16 %v3088, %v3084
    %v4093 = vpack.c.b16 %v3089, %v3085
    %v4094 = vpack.c.b16 %v3094, %v3090
    %v4095 = vpack.c.b16 %v3095, %v3091
    %v4096 = vpack.c.b16 %v3096, %v3092
    %v4097 = vpack.c.b16 %v3097, %v3093
    %v4098 = vpack.c.b16 %v3102, %v3098
    %v4099 = vpack.c.b16 %v3103, %v3099
    %v4100 = vpack.c.b16 %v3104, %v3100
    %v4101 = vpack.c.b16 %v3105, %v3101
    %v4102 = vpack.c.b16 %v3110, %v3106
    %v4103 = vpack.c.b16 %v3111, %v3107
    %v4104 = vpack.c.b16 %v3112, %v3108
    %v4105 = vpack.c.b16 %v3113, %v3109
    %v4106 = vpack.c.b16 %v3118, %v3114
    %v4107 = vpack.c.b16 %v3119, %v3115
    %v4108 = vpack.c.b16 %v3120, %v3116
    %v4109 = vpack.c.b16 %v3121, %v3117
    %v4110 = vpack.c.b16 %v3126, %v3122
    %v4111 = vpack.c.b16 %v3127, %v3123
    %v4112 = vpack.c.b16 %v3128, %v3124
    %v4113 = vpack.c.b16 %v3129, %v3125
    %v4114 = vpack.c.b16 %v3134, %v3130
    %v4115 = vpack.c.b16 %v3135, %v3131
    %v4116 = vpack.c.b16 %v3136, %v3132
    %v4117 = vpack.c.b16 %v3137, %v3133
    %v4118 = vpack.c.b16 %v3142, %v3138
    %v4119 = vpack.c.b16 %v3143, %v3139
    %v4120 = vpack.c.b16 %v3144, %v3140
    %v4121 = vpack.c.b16 %v3145, %v3141
    %v4122 = vpack.c.b16 %v3150, %v3146
    %v4123 = vpack.c.b16 %v3151, %v3147
    %v4124 = vpack.c.b16 %v3152, %v3148
    %v4125 = vpack.c.b16 %v3153, %v3149
    %v4126 = vpack.c.b16 %v3158, %v3154
    %v4127 = vpack.c.b16 %v3159, %v3155
    %v4128 = vpack.c.b16 %v3160, %v3156
    %v4129 = vpack.c.b16 %v3161, %v3157
    %v4130 = vpack.c.b16 %v3166, %v3162
    %v4131 = vpack.c.b16 %v3167, %v3163
    %v4132 = vpack.c.b16 %v3168, %v3164
    %v4133 = vpack.c.b16 %v3169, %v3165
    %v4134 = vpack.c.b16 %v3174, %v3170
    %v4135 = vpack.c.b16 %v3175, %v3171
    %v4136 = vpack.c.b16 %v3176, %v3172
    %v4137 = vpack.c.b16 %v3177, %v3173
    %v4138 = vpack.c.b16 %v3182, %v3178
    %v4139 = vpack.c.b16 %v3183, %v3179
    %v4140 = vpack.c.b16 %v3184, %v3180
    %v4141 = vpack.c.b16 %v3185, %v3181
    %v4142 = vpack.c.b16 %v3190, %v3186
    %v4143 = vpack.c.b16 %v3191, %v3187
    %v4144 = vpack.c.b16 %v3192, %v3188
    %v4145 = vpack.c.b16 %v3193, %v3189
    %v4146 = vpack.c.b16 %v3198, %v3194
    %v4147 = vpack.c.b16 %v3199, %v3195
    %v4148 = vpack.c.b16 %v3200, %v3196
    %v4149 = vpack.c.b16 %v3201, %v3197
    %v4150 = vpack.c.b16 %v3206, %v3202
    %v4151 = vpack.c.b16 %v3207, %v3203
    %v4152 = vpack.c.b16 %v3208, %v3204
    %v4153 = vpack.c.b16 %v3209, %v3205
    %v4154 = vpack.c.b16 %v3214, %v3210
    %v4155 = vpack.c.b16 %v3215, %v3211
    %v4156 = vpack.c.b16 %v3216, %v3212
    %v4157 = vpack.c.b16 %v3217, %v3213
    %v4158 = vpack.c.b16 %v3222, %v3218
    %v4159 = vpack.c.b16 %v3223, %v3219
    %v4160 = vpack.c.b16 %v3224, %v3220
    %v4161 = vpack.c.b16 %v3225, %v3221
    %v4162 = vpack.c.b16 %v3230, %v3226
    %v4163 = vpack.c.b16 %v3231, %v3227
    %v4164 = vpack.c.b16 %v3232, %v3228
    %v4165 = vpack.c.b16 %v3233, %v3229
    %v4166 = vpack.c.b16 %v3238, %v3234
    %v4167 = vpack.c.b16 %v3239, %v3235
    %v4168 = vpack.c.b16 %v3240, %v3236
    %v4169 = vpack.c.b16 %v3241, %v3237
    %v4170 = vpack.c.b16 %v3246, %v3242
    %v4171 = vpack.c.b16 %v3247, %v3243
    %v4172 = vpack.c.b16 %v3248, %v3244
    %v4173 = vpack.c.b16 %v3249, %v3245
    %v4174 = vpack.c.b16 %v3254, %v3250
    %v4175 = vpack.c.b16 %v3255, %v3251
    %v4176 = vpack.c.b16 %v3256, %v3252
    %v4177 = vpack.c.b16 %v3257, %v3253
    %v4178 = vpack.c.b16 %v3262, %v3258
    %v4179 = vpack.c.b16 %v3263, %v3259
    %v4180 = vpack.c.b16 %v3264, %v3260
    %v4181 = vpack.c.b16 %v3265, %v3261
    %v4182 = vpack.c.b16 %v3270, %v3266
    %v4183 = vpack.c.b16 %v3271, %v3267
    %v4184 = vpack.c.b16 %v3272, %v3268
    %v4185 = vpack.c.b16 %v3273, %v3269
    %v4186 = vpack.c.b16 %v3278, %v3274
    %v4187 = vpack.c.b16 %v3279, %v3275
    %v4188 = vpack.c.b16 %v3280, %v3276
    %v4189 = vpack.c.b16 %v3281, %v3277
    %v4190 = vpack.c.b16 %v3286, %v3282
    %v4191 = vpack.c.b16 %v3287, %v3283
    %v4192 = vpack.c.b16 %v3288, %v3284
    %v4193 = vpack.c.b16 %v3289, %v3285
    %v4194 = vpack.c.b16 %v3294, %v3290
    %v4195 = vpack.c.b16 %v3295, %v3291
    %v4196 = vpack.c.b16 %v3296, %v3292
    %v4197 = vpack.c.b16 %v3297, %v3293
    %v4198 = vpack.c.b16 %v3302, %v3298
    %v4199 = vpack.c.b16 %v3303, %v3299
    %v4200 = vpack.c.b16 %v3304, %v3300
    %v4201 = vpack.c.b16 %v3305, %v3301
    %v4202 = vpack.c.b16 %v3310, %v3306
    %v4203 = vpack.c.b16 %v3311, %v3307
    %v4204 = vpack.c.b16 %v3312, %v3308
    %v4205 = vpack.c.b16 %v3313, %v3309
    %v4206 = vpack.c.b16 %v3318, %v3314
    %v4207 = vpack.c.b16 %v3319, %v3315
    %v4208 = vpack.c.b16 %v3320, %v3316
    %v4209 = vpack.c.b16 %v3321, %v3317
    %v4210 = vpack.c.b16 %v3326, %v3322
    %v4211 = vpack.c.b16 %v3327, %v3323
    %v4212 = vpack.c.b16 %v3328, %v3324
    %v4213 = vpack.c.b16 %v3329, %v3325
    %v4214 = vpack.c.b16 %v3334, %v3330
    %v4215 = vpack.c.b16 %v3335, %v3331
    %v4216 = vpack.c.b16 %v3336, %v3332
    %v4217 = vpack.c.b16 %v3337, %v3333
    %v4218 = vpack.c.b16 %v3342, %v3338
    %v4219 = vpack.c.b16 %v3343, %v3339
    %v4220 = vpack.c.b16 %v3344, %v3340
    %v4221 = vpack.c.b16 %v3345, %v3341
    %v4222 = vpack.c.b16 %v3350, %v3346
    %v4223 = vpack.c.b16 %v3351, %v3347
    %v4224 = vpack.c.b16 %v3352, %v3348
    %v4225 = vpack.c.b16 %v3353, %v3349
    %v4226 = vpack.c.b16 %v3358, %v3354
    %v4227 = vpack.c.b16 %v3359, %v3355
    %v4228 = vpack.c.b16 %v3360, %v3356
    %v4229 = vpack.c.b16 %v3361, %v3357
    %v4230 = vpack.c.b16 %v3366, %v3362
    %v4231 = vpack.c.b16 %v3367, %v3363
    %v4232 = vpack.c.b16 %v3368, %v3364
    %v4233 = vpack.c.b16 %v3369, %v3365
    %v4234 = vpack.c.b16 %v3374, %v3370
    %v4235 = vpack.c.b16 %v3375, %v3371
    %v4236 = vpack.c.b16 %v3376, %v3372
    %v4237 = vpack.c.b16 %v3377, %v3373
    %v4238 = vpack.c.b16 %v3382, %v3378
    %v4239 = vpack.c.b16 %v3383, %v3379
    %v4240 = vpack.c.b16 %v3384, %v3380
    %v4241 = vpack.c.b16 %v3385, %v3381
    %v4242 = vpack.c.b16 %v3390, %v3386
    %v4243 = vpack.c.b16 %v3391, %v3387
    %v4244 = vpack.c.b16 %v3392, %v3388
    %v4245 = vpack.c.b16 %v3393, %v3389
    %v4246 = vpack.c.b16 %v3398, %v3394
    %v4247 = vpack.c.b16 %v3399, %v3395
    %v4248 = vpack.c.b16 %v3400, %v3396
    %v4249 = vpack.c.b16 %v3401, %v3397
    %v4250 = vpack.c.b16 %v3406, %v3402
    %v4251 = vpack.c.b16 %v3407, %v3403
    %v4252 = vpack.c.b16 %v3408, %v3404
    %v4253 = vpack.c.b16 %v3409, %v3405
    %v4254 = vpack.c.b16 %v3414, %v3410
    %v4255 = vpack.c.b16 %v3415, %v3411
    %v4256 = vpack.c.b16 %v3416, %v3412
    %v4257 = vpack.c.b16 %v3417, %v3413
    %v4258 = vpack.c.b16 %v3422, %v3418
    %v4259 = vpack.c.b16 %v3423, %v3419
    %v4260 = vpack.c.b16 %v3424, %v3420
    %v4261 = vpack.c.b16 %v3425, %v3421
    %v4262 = vpack.c.b16 %v3430, %v3426
    %v4263 = vpack.c.b16 %v3431, %v3427
    %v4264 = vpack.c.b16 %v3432, %v3428
    %v4265 = vpack.c.b16 %v3433, %v3429
    %v4266 = vpack.c.b16 %v3438, %v3434
    %v4267 = vpack.c.b16 %v3439, %v3435
    %v4268 = vpack.c.b16 %v3440, %v3436
    %v4269 = vpack.c.b16 %v3441, %v3437
    %v4270 = vpack.c.b16 %v3446, %v3442
    %v4271 = vpack.c.b16 %v3447, %v3443
    %v4272 = vpack.c.b16 %v3448, %v3444
    %v4273 = vpack.c.b16 %v3449, %v3445
    %v4274 = vpack.c.b16 %v3454, %v3450
    %v4275 = vpack.c.b16 %v3455, %v3451
    %v4276 = vpack.c.b16 %v3456, %v3452
    %v4277 = vpack.c.b16 %v3457, %v3453
    %v4278 = vpack.c.b16 %v3462, %v3458
    %v4279 = vpack.c.b16 %v3463, %v3459
    %v4280 = vpack.c.b16 %v3464, %v3460
    %v4281 = vpack.c.b16 %v3465, %v3461
    %v4282 = vpack.c.b16 %v3470, %v3466
    %v4283 = vpack.c.b16 %v3471, %v3467
    %v4284 = vpack.c.b16 %v3472, %v3468
    %v4285 = vpack.c.b16 %v3473, %v3469
    %v4286 = vpack.c.b16 %v3478, %v3474
    %v4287 = vpack.c.b16 %v3479, %v3475
    %v4288 = vpack.c.b16 %v3480, %v3476
    %v4289 = vpack.c.b16 %v3481, %v3477
    %v4290 = vpack.c.b16 %v3486, %v3482
    %v4291 = vpack.c.b16 %v3487, %v3483
    %v4292 = vpack.c.b16 %v3488, %v3484
    %v4293 = vpack.c.b16 %v3489, %v3485
    %v4294 = vpack.c.b16 %v3494, %v3490
    %v4295 = vpack.c.b16 %v3495, %v3491
    %v4296 = vpack.c.b16 %v3496, %v3492
    %v4297 = vpack.c.b16 %v3497, %v3493
    %5098 = vmatprep.subr.bf16.mxu0 %v3499
    %5099 = vmatpush1.bf16.msra.mxu0 %v3498
    %5100 = vmatprep.subr.bf16.mxu0 %v3503
    %5101 = vmatpush1.bf16.msra.mxu0 %v3502
    %5102 = vmatprep.subr.bf16.mxu0 %v3507
    %5103 = vmatpush1.bf16.msra.mxu0 %v3506
    %5104 = vmatprep.subr.bf16.mxu0 %v3511
    %5105 = vmatpush1.bf16.msra.mxu0 %v3510
    %5106 = vmatprep.subr.bf16.mxu0 %v3515
    %5107 = vmatpush1.bf16.msra.mxu0 %v3514
    %5108 = vmatprep.subr.bf16.mxu0 %v3519
    %5109 = vmatpush1.bf16.msra.mxu0 %v3518
    %5110 = vmatprep.subr.bf16.mxu0 %v3523
    %5111 = vmatpush1.bf16.msra.mxu0 %v3522
    %5112 = vmatprep.subr.bf16.mxu0 %v3527
    %5113 = vmatpush1.bf16.msra.mxu0 %v3526
    %5114 = vmatprep.subr.bf16.mxu0 %v3531
    %5115 = vmatpush1.bf16.msra.mxu0 %v3530
    %5116 = vmatprep.subr.bf16.mxu0 %v3535
    %5117 = vmatpush1.bf16.msra.mxu0 %v3534
    %5118 = vmatprep.subr.bf16.mxu0 %v3539
    %5119 = vmatpush1.bf16.msra.mxu0 %v3538
    %5120 = vmatprep.subr.bf16.mxu0 %v3543
    %5121 = vmatpush1.bf16.msra.mxu0 %v3542
    %5122 = vmatprep.subr.bf16.mxu0 %v3547
    %5123 = vmatpush1.bf16.msra.mxu0 %v3546
    %5124 = vmatprep.subr.bf16.mxu0 %v3551
    %5125 = vmatpush1.bf16.msra.mxu0 %v3550
    %5126 = vmatprep.subr.bf16.mxu0 %v3555
    %5127 = vmatpush1.bf16.msra.mxu0 %v3554
    %5128 = vmatprep.subr.bf16.mxu0 %v3559
    %5129 = vmatpush1.bf16.msra.mxu0 %v3558
    %5130 = vmatprep.mubr.bf16.mxu0 %v252
    %5131 = vmatmul.mubr.bf16.gmra.mrb[0].mxu0 %v251
    %v5132 = vpop.f32.mrb[0].mxu0
    %v5133 = vadd.f32 %v1081, %v5132
    %v5134 = vpop.f32.mrb[0].mxu0
    %v5135 = vadd.f32 %v1085, %v5134
    %v5136 = vpop.f32.mrb[0].mxu0
    %v5137 = vpop.f32.mrb[0].mxu0
    %5138 = vdwg.mxu0
    %5139 = vmatprep.subr.bf16.mxu0 %v3563
    %5140 = vmatpush1.bf16.msra.mxu0 %v3562
    %5141 = vmatprep.subr.bf16.mxu0 %v3567
    %5142 = vmatpush1.bf16.msra.mxu0 %v3566
    %5143 = vmatprep.subr.bf16.mxu0 %v3571
    %5144 = vmatpush1.bf16.msra.mxu0 %v3570
    %5145 = vmatprep.subr.bf16.mxu0 %v3575
    %5146 = vmatpush1.bf16.msra.mxu0 %v3574
    %5147 = vmatprep.subr.bf16.mxu0 %v3579
    %5148 = vmatpush1.bf16.msra.mxu0 %v3578
    %5149 = vmatprep.subr.bf16.mxu0 %v3583
    %5150 = vmatpush1.bf16.msra.mxu0 %v3582
    %5151 = vmatprep.subr.bf16.mxu0 %v3587
    %5152 = vmatpush1.bf16.msra.mxu0 %v3586
    %5153 = vmatprep.subr.bf16.mxu0 %v3591
    %5154 = vmatpush1.bf16.msra.mxu0 %v3590
    %5155 = vmatprep.subr.bf16.mxu0 %v3595
    %5156 = vmatpush1.bf16.msra.mxu0 %v3594
    %5157 = vmatprep.subr.bf16.mxu0 %v3599
    %5158 = vmatpush1.bf16.msra.mxu0 %v3598
    %5159 = vmatprep.subr.bf16.mxu0 %v3603
    %5160 = vmatpush1.bf16.msra.mxu0 %v3602
    %5161 = vmatprep.subr.bf16.mxu0 %v3607
    %5162 = vmatpush1.bf16.msra.mxu0 %v3606
    %5163 = vmatprep.subr.bf16.mxu0 %v3611
    %5164 = vmatpush1.bf16.msra.mxu0 %v3610
    %5165 = vmatprep.subr.bf16.mxu0 %v3615
    %5166 = vmatpush1.bf16.msra.mxu0 %v3614
    %5167 = vmatprep.subr.bf16.mxu0 %v3619
    %5168 = vmatpush1.bf16.msra.mxu0 %v3618
    %5169 = vmatprep.subr.bf16.mxu0 %v3623
    %5170 = vmatpush1.bf16.msra.mxu0 %v3622
    %5171 = vmatprep.mubr.bf16.mxu0 %v254
    %5172 = vmatmul.mubr.bf16.gmra.mrb[0].mxu0 %v253
    %v5173 = vpop.f32.mrb[0].mxu0
    %v5174 = vadd.f32 %v5133, %v5173
    %v5175 = vpop.f32.mrb[0].mxu0
    %v5176 = vadd.f32 %v5135, %v5175
    %v5177 = vpop.f32.mrb[0].mxu0
    %v5178 = vpop.f32.mrb[0].mxu0
    %5179 = vdwg.mxu0
    %5180 = vmatprep.subr.bf16.mxu0 %v3627
    %5181 = vmatpush1.bf16.msra.mxu0 %v3626
    %5182 = vmatprep.subr.bf16.mxu0 %v3631
    %5183 = vmatpush1.bf16.msra.mxu0 %v3630
    %5184 = vmatprep.subr.bf16.mxu0 %v3635
    %5185 = vmatpush1.bf16.msra.mxu0 %v3634
    %5186 = vmatprep.subr.bf16.mxu0 %v3639
    %5187 = vmatpush1.bf16.msra.mxu0 %v3638
    %5188 = vmatprep.subr.bf16.mxu0 %v3643
    %5189 = vmatpush1.bf16.msra.mxu0 %v3642
    %5190 = vmatprep.subr.bf16.mxu0 %v3647
    %5191 = vmatpush1.bf16.msra.mxu0 %v3646
    %5192 = vmatprep.subr.bf16.mxu0 %v3651
    %5193 = vmatpush1.bf16.msra.mxu0 %v3650
    %5194 = vmatprep.subr.bf16.mxu0 %v3655
    %5195 = vmatpush1.bf16.msra.mxu0 %v3654
    %5196 = vmatprep.subr.bf16.mxu0 %v3659
    %5197 = vmatpush1.bf16.msra.mxu0 %v3658
    %5198 = vmatprep.subr.bf16.mxu0 %v3663
    %5199 = vmatpush1.bf16.msra.mxu0 %v3662
    %5200 = vmatprep.subr.bf16.mxu0 %v3667
    %5201 = vmatpush1.bf16.msra.mxu0 %v3666
    %5202 = vmatprep.subr.bf16.mxu0 %v3671
    %5203 = vmatpush1.bf16.msra.mxu0 %v3670
    %5204 = vmatprep.subr.bf16.mxu0 %v3675
    %5205 = vmatpush1.bf16.msra.mxu0 %v3674
    %5206 = vmatprep.subr.bf16.mxu0 %v3679
    %5207 = vmatpush1.bf16.msra.mxu0 %v3678
    %5208 = vmatprep.subr.bf16.mxu0 %v3683
    %5209 = vmatpush1.bf16.msra.mxu0 %v3682
    %5210 = vmatprep.subr.bf16.mxu0 %v3687
    %5211 = vmatpush1.bf16.msra.mxu0 %v3686
    %5212 = vmatprep.mubr.bf16.mxu0 %v256
    %5213 = vmatmul.mubr.bf16.gmra.mrb[0].mxu0 %v255
    %v5214 = vpop.f32.mrb[0].mxu0
    %v5215 = vadd.f32 %v5174, %v5214
    %v5216 = vpop.f32.mrb[0].mxu0
    %v5217 = vadd.f32 %v5176, %v5216
    %v5218 = vpop.f32.mrb[0].mxu0
    %v5219 = vpop.f32.mrb[0].mxu0
    %5220 = vdwg.mxu0
    %5221 = vmatprep.subr.bf16.mxu0 %v3691
    %5222 = vmatpush1.bf16.msra.mxu0 %v3690
    %5223 = vmatprep.subr.bf16.mxu0 %v3695
    %5224 = vmatpush1.bf16.msra.mxu0 %v3694
    %5225 = vmatprep.subr.bf16.mxu0 %v3699
    %5226 = vmatpush1.bf16.msra.mxu0 %v3698
    %5227 = vmatprep.subr.bf16.mxu0 %v3703
    %5228 = vmatpush1.bf16.msra.mxu0 %v3702
    %5229 = vmatprep.subr.bf16.mxu0 %v3707
    %5230 = vmatpush1.bf16.msra.mxu0 %v3706
    %5231 = vmatprep.subr.bf16.mxu0 %v3711
    %5232 = vmatpush1.bf16.msra.mxu0 %v3710
    %5233 = vmatprep.subr.bf16.mxu0 %v3715
    %5234 = vmatpush1.bf16.msra.mxu0 %v3714
    %5235 = vmatprep.subr.bf16.mxu0 %v3719
    %5236 = vmatpush1.bf16.msra.mxu0 %v3718
    %5237 = vmatprep.subr.bf16.mxu0 %v3723
    %5238 = vmatpush1.bf16.msra.mxu0 %v3722
    %5239 = vmatprep.subr.bf16.mxu0 %v3727
    %5240 = vmatpush1.bf16.msra.mxu0 %v3726
    %5241 = vmatprep.subr.bf16.mxu0 %v3731
    %5242 = vmatpush1.bf16.msra.mxu0 %v3730
    %5243 = vmatprep.subr.bf16.mxu0 %v3735
    %5244 = vmatpush1.bf16.msra.mxu0 %v3734
    %5245 = vmatprep.subr.bf16.mxu0 %v3739
    %5246 = vmatpush1.bf16.msra.mxu0 %v3738
    %5247 = vmatprep.subr.bf16.mxu0 %v3743
    %5248 = vmatpush1.bf16.msra.mxu0 %v3742
    %5249 = vmatprep.subr.bf16.mxu0 %v3747
    %5250 = vmatpush1.bf16.msra.mxu0 %v3746
    %5251 = vmatprep.subr.bf16.mxu0 %v3751
    %5252 = vmatpush1.bf16.msra.mxu0 %v3750
    %5253 = vmatprep.mubr.bf16.mxu0 %v258
    %5254 = vmatmul.mubr.bf16.gmra.mrb[0].mxu0 %v257
    %v5255 = vpop.f32.mrb[0].mxu0
    %v5256 = vadd.f32 %v5215, %v5255
    %v5257 = vpop.f32.mrb[0].mxu0
    %v5258 = vadd.f32 %v5217, %v5257
    %v5259 = vpop.f32.mrb[0].mxu0
    %v5260 = vpop.f32.mrb[0].mxu0
    %5261 = vdwg.mxu0
    %5262 = vmatprep.subr.bf16.mxu0 %v3755
    %5263 = vmatpush1.bf16.msra.mxu0 %v3754
    %5264 = vmatprep.subr.bf16.mxu0 %v3759
    %5265 = vmatpush1.bf16.msra.mxu0 %v3758
    %5266 = vmatprep.subr.bf16.mxu0 %v3763
    %5267 = vmatpush1.bf16.msra.mxu0 %v3762
    %5268 = vmatprep.subr.bf16.mxu0 %v3767
    %5269 = vmatpush1.bf16.msra.mxu0 %v3766
    %5270 = vmatprep.subr.bf16.mxu0 %v3771
    %5271 = vmatpush1.bf16.msra.mxu0 %v3770
    %5272 = vmatprep.subr.bf16.mxu0 %v3775
    %5273 = vmatpush1.bf16.msra.mxu0 %v3774
    %5274 = vmatprep.subr.bf16.mxu0 %v3779
    %5275 = vmatpush1.bf16.msra.mxu0 %v3778
    %5276 = vmatprep.subr.bf16.mxu0 %v3783
    %5277 = vmatpush1.bf16.msra.mxu0 %v3782
    %5278 = vmatprep.subr.bf16.mxu0 %v3787
    %5279 = vmatpush1.bf16.msra.mxu0 %v3786
    %5280 = vmatprep.subr.bf16.mxu0 %v3791
    %5281 = vmatpush1.bf16.msra.mxu0 %v3790
    %5282 = vmatprep.subr.bf16.mxu0 %v3795
    %5283 = vmatpush1.bf16.msra.mxu0 %v3794
    %5284 = vmatprep.subr.bf16.mxu0 %v3799
    %5285 = vmatpush1.bf16.msra.mxu0 %v3798
    %5286 = vmatprep.subr.bf16.mxu0 %v3803
    %5287 = vmatpush1.bf16.msra.mxu0 %v3802
    %5288 = vmatprep.subr.bf16.mxu0 %v3807
    %5289 = vmatpush1.bf16.msra.mxu0 %v3806
    %5290 = vmatprep.subr.bf16.mxu0 %v3811
    %5291 = vmatpush1.bf16.msra.mxu0 %v3810
    %5292 = vmatprep.subr.bf16.mxu0 %v3815
    %5293 = vmatpush1.bf16.msra.mxu0 %v3814
    %5294 = vmatprep.mubr.bf16.mxu0 %v260
    %5295 = vmatmul.mubr.bf16.gmra.mrb[0].mxu0 %v259
    %v5296 = vpop.f32.mrb[0].mxu0
    %v5297 = vadd.f32 %v5256, %v5296
    %v5298 = vpop.f32.mrb[0].mxu0
    %v5299 = vadd.f32 %v5258, %v5298
    %v5300 = vpop.f32.mrb[0].mxu0
    %v5301 = vpop.f32.mrb[0].mxu0
    %5302 = vdwg.mxu0
    %5303 = vmatprep.subr.bf16.mxu0 %v3819
    %5304 = vmatpush1.bf16.msra.mxu0 %v3818
    %5305 = vmatprep.subr.bf16.mxu0 %v3823
    %5306 = vmatpush1.bf16.msra.mxu0 %v3822
    %5307 = vmatprep.subr.bf16.mxu0 %v3827
    %5308 = vmatpush1.bf16.msra.mxu0 %v3826
    %5309 = vmatprep.subr.bf16.mxu0 %v3831
    %5310 = vmatpush1.bf16.msra.mxu0 %v3830
    %5311 = vmatprep.subr.bf16.mxu0 %v3835
    %5312 = vmatpush1.bf16.msra.mxu0 %v3834
    %5313 = vmatprep.subr.bf16.mxu0 %v3839
    %5314 = vmatpush1.bf16.msra.mxu0 %v3838
    %5315 = vmatprep.subr.bf16.mxu0 %v3843
    %5316 = vmatpush1.bf16.msra.mxu0 %v3842
    %5317 = vmatprep.subr.bf16.mxu0 %v3847
    %5318 = vmatpush1.bf16.msra.mxu0 %v3846
    %5319 = vmatprep.subr.bf16.mxu0 %v3851
    %5320 = vmatpush1.bf16.msra.mxu0 %v3850
    %5321 = vmatprep.subr.bf16.mxu0 %v3855
    %5322 = vmatpush1.bf16.msra.mxu0 %v3854
    %5323 = vmatprep.subr.bf16.mxu0 %v3859
    %5324 = vmatpush1.bf16.msra.mxu0 %v3858
    %5325 = vmatprep.subr.bf16.mxu0 %v3863
    %5326 = vmatpush1.bf16.msra.mxu0 %v3862
    %5327 = vmatprep.subr.bf16.mxu0 %v3867
    %5328 = vmatpush1.bf16.msra.mxu0 %v3866
    %5329 = vmatprep.subr.bf16.mxu0 %v3871
    %5330 = vmatpush1.bf16.msra.mxu0 %v3870
    %5331 = vmatprep.subr.bf16.mxu0 %v3875
    %5332 = vmatpush1.bf16.msra.mxu0 %v3874
    %5333 = vmatprep.subr.bf16.mxu0 %v3879
    %5334 = vmatpush1.bf16.msra.mxu0 %v3878
    %5335 = vmatprep.mubr.bf16.mxu0 %v262
    %5336 = vmatmul.mubr.bf16.gmra.mrb[0].mxu0 %v261
    %v5337 = vpop.f32.mrb[0].mxu0
    %v5338 = vadd.f32 %v5297, %v5337
    %v5339 = vpop.f32.mrb[0].mxu0
    %v5340 = vadd.f32 %v5299, %v5339
    %v5341 = vpop.f32.mrb[0].mxu0
    %v5342 = vpop.f32.mrb[0].mxu0
    %5343 = vdwg.mxu0
    %5344 = vmatprep.subr.bf16.mxu0 %v3883
    %5345 = vmatpush1.bf16.msra.mxu0 %v3882
    %5346 = vmatprep.subr.bf16.mxu0 %v3887
    %5347 = vmatpush1.bf16.msra.mxu0 %v3886
    %5348 = vmatprep.subr.bf16.mxu0 %v3891
    %5349 = vmatpush1.bf16.msra.mxu0 %v3890
    %5350 = vmatprep.subr.bf16.mxu0 %v3895
    %5351 = vmatpush1.bf16.msra.mxu0 %v3894
    %5352 = vmatprep.subr.bf16.mxu0 %v3899
    %5353 = vmatpush1.bf16.msra.mxu0 %v3898
    %5354 = vmatprep.subr.bf16.mxu0 %v3903
    %5355 = vmatpush1.bf16.msra.mxu0 %v3902
    %5356 = vmatprep.subr.bf16.mxu0 %v3907
    %5357 = vmatpush1.bf16.msra.mxu0 %v3906
    %5358 = vmatprep.subr.bf16.mxu0 %v3911
    %5359 = vmatpush1.bf16.msra.mxu0 %v3910
    %5360 = vmatprep.subr.bf16.mxu0 %v3915
    %5361 = vmatpush1.bf16.msra.mxu0 %v3914
    %5362 = vmatprep.subr.bf16.mxu0 %v3919
    %5363 = vmatpush1.bf16.msra.mxu0 %v3918
    %5364 = vmatprep.subr.bf16.mxu0 %v3923
    %5365 = vmatpush1.bf16.msra.mxu0 %v3922
    %5366 = vmatprep.subr.bf16.mxu0 %v3927
    %5367 = vmatpush1.bf16.msra.mxu0 %v3926
    %5368 = vmatprep.subr.bf16.mxu0 %v3931
    %5369 = vmatpush1.bf16.msra.mxu0 %v3930
    %5370 = vmatprep.subr.bf16.mxu0 %v3935
    %5371 = vmatpush1.bf16.msra.mxu0 %v3934
    %5372 = vmatprep.subr.bf16.mxu0 %v3939
    %5373 = vmatpush1.bf16.msra.mxu0 %v3938
    %5374 = vmatprep.subr.bf16.mxu0 %v3943
    %5375 = vmatpush1.bf16.msra.mxu0 %v3942
    %5376 = vmatprep.mubr.bf16.mxu0 %v264
    %5377 = vmatmul.mubr.bf16.gmra.mrb[0].mxu0 %v263
    %v5378 = vpop.f32.mrb[0].mxu0
    %v5379 = vadd.f32 %v5338, %v5378
    %v5380 = vpop.f32.mrb[0].mxu0
    %v5381 = vadd.f32 %v5340, %v5380
    %v5382 = vpop.f32.mrb[0].mxu0
    %v5383 = vpop.f32.mrb[0].mxu0
    %5384 = vdwg.mxu0
    %5385 = vmatprep.subr.bf16.mxu0 %v3947
    %5386 = vmatpush1.bf16.msra.mxu0 %v3946
    %5387 = vmatprep.subr.bf16.mxu0 %v3951
    %5388 = vmatpush1.bf16.msra.mxu0 %v3950
    %5389 = vmatprep.subr.bf16.mxu0 %v3955
    %5390 = vmatpush1.bf16.msra.mxu0 %v3954
    %5391 = vmatprep.subr.bf16.mxu0 %v3959
    %5392 = vmatpush1.bf16.msra.mxu0 %v3958
    %5393 = vmatprep.subr.bf16.mxu0 %v3963
    %5394 = vmatpush1.bf16.msra.mxu0 %v3962
    %5395 = vmatprep.subr.bf16.mxu0 %v3967
    %5396 = vmatpush1.bf16.msra.mxu0 %v3966
    %5397 = vmatprep.subr.bf16.mxu0 %v3971
    %5398 = vmatpush1.bf16.msra.mxu0 %v3970
    %5399 = vmatprep.subr.bf16.mxu0 %v3975
    %5400 = vmatpush1.bf16.msra.mxu0 %v3974
    %5401 = vmatprep.subr.bf16.mxu0 %v3979
    %5402 = vmatpush1.bf16.msra.mxu0 %v3978
    %5403 = vmatprep.subr.bf16.mxu0 %v3983
    %5404 = vmatpush1.bf16.msra.mxu0 %v3982
    %5405 = vmatprep.subr.bf16.mxu0 %v3987
    %5406 = vmatpush1.bf16.msra.mxu0 %v3986
    %5407 = vmatprep.subr.bf16.mxu0 %v3991
    %5408 = vmatpush1.bf16.msra.mxu0 %v3990
    %5409 = vmatprep.subr.bf16.mxu0 %v3995
    %5410 = vmatpush1.bf16.msra.mxu0 %v3994
    %5411 = vmatprep.subr.bf16.mxu0 %v3999
    %5412 = vmatpush1.bf16.msra.mxu0 %v3998
    %5413 = vmatprep.subr.bf16.mxu0 %v4003
    %5414 = vmatpush1.bf16.msra.mxu0 %v4002
    %5415 = vmatprep.subr.bf16.mxu0 %v4007
    %5416 = vmatpush1.bf16.msra.mxu0 %v4006
    %5417 = vmatprep.mubr.bf16.mxu0 %v266
    %5418 = vmatmul.mubr.bf16.gmra.mrb[0].mxu0 %v265
    %v5419 = vpop.f32.mrb[0].mxu0
    %v5420 = vadd.f32 %v5379, %v5419
    %v5421 = vpop.f32.mrb[0].mxu0
    %v5422 = vadd.f32 %v5381, %v5421
    %v5423 = vpop.f32.mrb[0].mxu0
    %v5424 = vpop.f32.mrb[0].mxu0
    %5425 = vdwg.mxu0
    %5426 = vmatprep.subr.bf16.mxu0 %v4011
    %5427 = vmatpush1.bf16.msra.mxu0 %v4010
    %5428 = vmatprep.subr.bf16.mxu0 %v4015
    %5429 = vmatpush1.bf16.msra.mxu0 %v4014
    %5430 = vmatprep.subr.bf16.mxu0 %v4019
    %5431 = vmatpush1.bf16.msra.mxu0 %v4018
    %5432 = vmatprep.subr.bf16.mxu0 %v4023
    %5433 = vmatpush1.bf16.msra.mxu0 %v4022
    %5434 = vmatprep.subr.bf16.mxu0 %v4027
    %5435 = vmatpush1.bf16.msra.mxu0 %v4026
    %5436 = vmatprep.subr.bf16.mxu0 %v4031
    %5437 = vmatpush1.bf16.msra.mxu0 %v4030
    %5438 = vmatprep.subr.bf16.mxu0 %v4035
    %5439 = vmatpush1.bf16.msra.mxu0 %v4034
    %5440 = vmatprep.subr.bf16.mxu0 %v4039
    %5441 = vmatpush1.bf16.msra.mxu0 %v4038
    %5442 = vmatprep.subr.bf16.mxu0 %v4043
    %5443 = vmatpush1.bf16.msra.mxu0 %v4042
    %5444 = vmatprep.subr.bf16.mxu0 %v4047
    %5445 = vmatpush1.bf16.msra.mxu0 %v4046
    %5446 = vmatprep.subr.bf16.mxu0 %v4051
    %5447 = vmatpush1.bf16.msra.mxu0 %v4050
    %5448 = vmatprep.subr.bf16.mxu0 %v4055
    %5449 = vmatpush1.bf16.msra.mxu0 %v4054
    %5450 = vmatprep.subr.bf16.mxu0 %v4059
    %5451 = vmatpush1.bf16.msra.mxu0 %v4058
    %5452 = vmatprep.subr.bf16.mxu0 %v4063
    %5453 = vmatpush1.bf16.msra.mxu0 %v4062
    %5454 = vmatprep.subr.bf16.mxu0 %v4067
    %5455 = vmatpush1.bf16.msra.mxu0 %v4066
    %5456 = vmatprep.subr.bf16.mxu0 %v4071
    %5457 = vmatpush1.bf16.msra.mxu0 %v4070
    %5458 = vmatprep.mubr.bf16.mxu0 %v268
    %5459 = vmatmul.mubr.bf16.gmra.mrb[0].mxu0 %v267
    %v5460 = vpop.f32.mrb[0].mxu0
    %v5461 = vadd.f32 %v5420, %v5460
    %v5462 = vpop.f32.mrb[0].mxu0
    %v5463 = vadd.f32 %v5422, %v5462
    %v5464 = vpop.f32.mrb[0].mxu0
    %v5465 = vpop.f32.mrb[0].mxu0
    %5466 = vdwg.mxu0
    %5467 = vmatprep.subr.bf16.mxu0 %v4075
    %5468 = vmatpush1.bf16.msra.mxu0 %v4074
    %5469 = vmatprep.subr.bf16.mxu0 %v4079
    %5470 = vmatpush1.bf16.msra.mxu0 %v4078
    %5471 = vmatprep.subr.bf16.mxu0 %v4083
    %5472 = vmatpush1.bf16.msra.mxu0 %v4082
    %5473 = vmatprep.subr.bf16.mxu0 %v4087
    %5474 = vmatpush1.bf16.msra.mxu0 %v4086
    %5475 = vmatprep.subr.bf16.mxu0 %v4091
    %5476 = vmatpush1.bf16.msra.mxu0 %v4090
    %5477 = vmatprep.subr.bf16.mxu0 %v4095
    %5478 = vmatpush1.bf16.msra.mxu0 %v4094
    %5479 = vmatprep.subr.bf16.mxu0 %v4099
    %5480 = vmatpush1.bf16.msra.mxu0 %v4098
    %5481 = vmatprep.subr.bf16.mxu0 %v4103
    %5482 = vmatpush1.bf16.msra.mxu0 %v4102
    %5483 = vmatprep.subr.bf16.mxu0 %v4107
    %5484 = vmatpush1.bf16.msra.mxu0 %v4106
    %5485 = vmatprep.subr.bf16.mxu0 %v4111
    %5486 = vmatpush1.bf16.msra.mxu0 %v4110
    %5487 = vmatprep.subr.bf16.mxu0 %v4115
    %5488 = vmatpush1.bf16.msra.mxu0 %v4114
    %5489 = vmatprep.subr.bf16.mxu0 %v4119
    %5490 = vmatpush1.bf16.msra.mxu0 %v4118
    %5491 = vmatprep.subr.bf16.mxu0 %v4123
    %5492 = vmatpush1.bf16.msra.mxu0 %v4122
    %5493 = vmatprep.subr.bf16.mxu0 %v4127
    %5494 = vmatpush1.bf16.msra.mxu0 %v4126
    %5495 = vmatprep.subr.bf16.mxu0 %v4131
    %5496 = vmatpush1.bf16.msra.mxu0 %v4130
    %5497 = vmatprep.subr.bf16.mxu0 %v4135
    %5498 = vmatpush1.bf16.msra.mxu0 %v4134
    %5499 = vmatprep.mubr.bf16.mxu0 %v270
    %5500 = vmatmul.mubr.bf16.gmra.mrb[0].mxu0 %v269
    %v5501 = vpop.f32.mrb[0].mxu0
    %v5502 = vadd.f32 %v5461, %v5501
    %v5503 = vpop.f32.mrb[0].mxu0
    %v5504 = vadd.f32 %v5463, %v5503
    %v5505 = vpop.f32.mrb[0].mxu0
    %v5506 = vpop.f32.mrb[0].mxu0
    %5507 = vdwg.mxu0
    %5508 = vmatprep.subr.bf16.mxu0 %v4139
    %5509 = vmatpush1.bf16.msra.mxu0 %v4138
    %5510 = vmatprep.subr.bf16.mxu0 %v4143
    %5511 = vmatpush1.bf16.msra.mxu0 %v4142
    %5512 = vmatprep.subr.bf16.mxu0 %v4147
    %5513 = vmatpush1.bf16.msra.mxu0 %v4146
    %5514 = vmatprep.subr.bf16.mxu0 %v4151
    %5515 = vmatpush1.bf16.msra.mxu0 %v4150
    %5516 = vmatprep.subr.bf16.mxu0 %v4155
    %5517 = vmatpush1.bf16.msra.mxu0 %v4154
    %5518 = vmatprep.subr.bf16.mxu0 %v4159
    %5519 = vmatpush1.bf16.msra.mxu0 %v4158
    %5520 = vmatprep.subr.bf16.mxu0 %v4163
    %5521 = vmatpush1.bf16.msra.mxu0 %v4162
    %5522 = vmatprep.subr.bf16.mxu0 %v4167
    %5523 = vmatpush1.bf16.msra.mxu0 %v4166
    %5524 = vmatprep.subr.bf16.mxu0 %v4171
    %5525 = vmatpush1.bf16.msra.mxu0 %v4170
    %5526 = vmatprep.subr.bf16.mxu0 %v4175
    %5527 = vmatpush1.bf16.msra.mxu0 %v4174
    %5528 = vmatprep.subr.bf16.mxu0 %v4179
    %5529 = vmatpush1.bf16.msra.mxu0 %v4178
    %5530 = vmatprep.subr.bf16.mxu0 %v4183
    %5531 = vmatpush1.bf16.msra.mxu0 %v4182
    %5532 = vmatprep.subr.bf16.mxu0 %v4187
    %5533 = vmatpush1.bf16.msra.mxu0 %v4186
    %5534 = vmatprep.subr.bf16.mxu0 %v4191
    %5535 = vmatpush1.bf16.msra.mxu0 %v4190
    %5536 = vmatprep.subr.bf16.mxu0 %v4195
    %5537 = vmatpush1.bf16.msra.mxu0 %v4194
    %5538 = vmatprep.subr.bf16.mxu0 %v4199
    %5539 = vmatpush1.bf16.msra.mxu0 %v4198
    %5540 = vmatprep.mubr.bf16.mxu0 %v272
    %5541 = vmatmul.mubr.bf16.gmra.mrb[0].mxu0 %v271
    %v5542 = vpop.f32.mrb[0].mxu0
    %v5543 = vadd.f32 %v5502, %v5542
    %v5544 = vpop.f32.mrb[0].mxu0
    %v5545 = vadd.f32 %v5504, %v5544
    %v5546 = vpop.f32.mrb[0].mxu0
    %v5547 = vpop.f32.mrb[0].mxu0
    %5548 = vdwg.mxu0
    %5549 = vmatprep.subr.bf16.mxu0 %v4203
    %5550 = vmatpush1.bf16.msra.mxu0 %v4202
    %5551 = vmatprep.subr.bf16.mxu0 %v4207
    %5552 = vmatpush1.bf16.msra.mxu0 %v4206
    %5553 = vmatprep.subr.bf16.mxu0 %v4211
    %5554 = vmatpush1.bf16.msra.mxu0 %v4210
    %5555 = vmatprep.subr.bf16.mxu0 %v4215
    %5556 = vmatpush1.bf16.msra.mxu0 %v4214
    %5557 = vmatprep.subr.bf16.mxu0 %v4219
    %5558 = vmatpush1.bf16.msra.mxu0 %v4218
    %5559 = vmatprep.subr.bf16.mxu0 %v4223
    %5560 = vmatpush1.bf16.msra.mxu0 %v4222
    %5561 = vmatprep.subr.bf16.mxu0 %v4227
    %5562 = vmatpush1.bf16.msra.mxu0 %v4226
    %5563 = vmatprep.subr.bf16.mxu0 %v4231
    %5564 = vmatpush1.bf16.msra.mxu0 %v4230
    %5565 = vmatprep.subr.bf16.mxu0 %v4235
    %5566 = vmatpush1.bf16.msra.mxu0 %v4234
    %5567 = vmatprep.subr.bf16.mxu0 %v4239
    %5568 = vmatpush1.bf16.msra.mxu0 %v4238
    %5569 = vmatprep.subr.bf16.mxu0 %v4243
    %5570 = vmatpush1.bf16.msra.mxu0 %v4242
    %5571 = vmatprep.subr.bf16.mxu0 %v4247
    %5572 = vmatpush1.bf16.msra.mxu0 %v4246
    %5573 = vmatprep.subr.bf16.mxu0 %v4251
    %5574 = vmatpush1.bf16.msra.mxu0 %v4250
    %5575 = vmatprep.subr.bf16.mxu0 %v4255
    %5576 = vmatpush1.bf16.msra.mxu0 %v4254
    %5577 = vmatprep.subr.bf16.mxu0 %v4259
    %5578 = vmatpush1.bf16.msra.mxu0 %v4258
    %5579 = vmatprep.subr.bf16.mxu0 %v4263
    %5580 = vmatpush1.bf16.msra.mxu0 %v4262
    %5581 = vmatprep.mubr.bf16.mxu0 %v274
    %5582 = vmatmul.mubr.bf16.gmra.mrb[0].mxu0 %v273
    %v5583 = vpop.f32.mrb[0].mxu0
    %v5584 = vadd.f32 %v5543, %v5583
    %v5585 = vpop.f32.mrb[0].mxu0
    %v5586 = vadd.f32 %v5545, %v5585
    %v5587 = vpop.f32.mrb[0].mxu0
    %v5588 = vpop.f32.mrb[0].mxu0
    %5589 = vdwg.mxu0
    %5590 = vmatprep.subr.bf16.mxu0 %v4267
    %5591 = vmatpush1.bf16.msra.mxu0 %v4266
    %5592 = vmatprep.subr.bf16.mxu0 %v4271
    %5593 = vmatpush1.bf16.msra.mxu0 %v4270
    %5594 = vmatprep.subr.bf16.mxu0 %v4275
    %5595 = vmatpush1.bf16.msra.mxu0 %v4274
    %5596 = vmatprep.subr.bf16.mxu0 %v4279
    %5597 = vmatpush1.bf16.msra.mxu0 %v4278
    %5598 = vmatprep.subr.bf16.mxu0 %v4283
    %5599 = vmatpush1.bf16.msra.mxu0 %v4282
    %5600 = vmatprep.subr.bf16.mxu0 %v4287
    %5601 = vmatpush1.bf16.msra.mxu0 %v4286
    %5602 = vmatprep.subr.bf16.mxu0 %v4291
    %5603 = vmatpush1.bf16.msra.mxu0 %v4290
    %5604 = vmatprep.subr.bf16.mxu0 %v4295
    %5605 = vmatpush1.bf16.msra.mxu0 %v4294
    %5606 = vmatprep.subr.bf16.mxu0 0
    %5607 = vmatpush1.bf16.msra.mxu0 0
    %5608 = vmatprep.subr.bf16.mxu0 0
    %5609 = vmatpush1.bf16.msra.mxu0 0
    %5610 = vmatprep.subr.bf16.mxu0 0
    %5611 = vmatpush1.bf16.msra.mxu0 0
    %5612 = vmatprep.subr.bf16.mxu0 0
    %5613 = vmatpush1.bf16.msra.mxu0 0
    %5614 = vmatprep.subr.bf16.mxu0 0
    %5615 = vmatpush1.bf16.msra.mxu0 0
    %5616 = vmatprep.subr.bf16.mxu0 0
    %5617 = vmatpush1.bf16.msra.mxu0 0
    %5618 = vmatprep.subr.bf16.mxu0 0
    %5619 = vmatpush1.bf16.msra.mxu0 0
    %5620 = vmatprep.subr.bf16.mxu0 0
    %5621 = vmatpush1.bf16.msra.mxu0 0
    %5622 = vmatprep.mubr.bf16.mxu0 0
    %5623 = vmatmul.mubr.bf16.gmra.mrb[0].mxu0 %v275
    %v5624 = vpop.f32.mrb[0].mxu0
    %v5625 = vadd.f32 %v5584, %v5624
    %v5626 = vpop.f32.mrb[0].mxu0
    %v5627 = vadd.f32 %v5586, %v5626
    %v5628 = vpop.f32.mrb[0].mxu0
    %v5629 = vpop.f32.mrb[0].mxu0
    %5630 = vdwg.mxu0
    %5631 = vmatprep.subr.bf16.mxu0 %v3501
    %5632 = vmatpush1.bf16.msra.mxu0 %v3500
    %5633 = vmatprep.subr.bf16.mxu0 %v3505
    %5634 = vmatpush1.bf16.msra.mxu0 %v3504
    %5635 = vmatprep.subr.bf16.mxu0 %v3509
    %5636 = vmatpush1.bf16.msra.mxu0 %v3508
    %5637 = vmatprep.subr.bf16.mxu0 %v3513
    %5638 = vmatpush1.bf16.msra.mxu0 %v3512
    %5639 = vmatprep.subr.bf16.mxu0 %v3517
    %5640 = vmatpush1.bf16.msra.mxu0 %v3516
    %5641 = vmatprep.subr.bf16.mxu0 %v3521
    %5642 = vmatpush1.bf16.msra.mxu0 %v3520
    %5643 = vmatprep.subr.bf16.mxu0 %v3525
    %5644 = vmatpush1.bf16.msra.mxu0 %v3524
    %5645 = vmatprep.subr.bf16.mxu0 %v3529
    %5646 = vmatpush1.bf16.msra.mxu0 %v3528
    %5647 = vmatprep.subr.bf16.mxu0 %v3533
    %5648 = vmatpush1.bf16.msra.mxu0 %v3532
    %5649 = vmatprep.subr.bf16.mxu0 %v3537
    %5650 = vmatpush1.bf16.msra.mxu0 %v3536
    %5651 = vmatprep.subr.bf16.mxu0 %v3541
    %5652 = vmatpush1.bf16.msra.mxu0 %v3540
    %5653 = vmatprep.subr.bf16.mxu0 %v3545
    %5654 = vmatpush1.bf16.msra.mxu0 %v3544
    %5655 = vmatprep.subr.bf16.mxu0 %v3549
    %5656 = vmatpush1.bf16.msra.mxu0 %v3548
    %5657 = vmatprep.subr.bf16.mxu0 %v3553
    %5658 = vmatpush1.bf16.msra.mxu0 %v3552
    %5659 = vmatprep.subr.bf16.mxu0 %v3557
    %5660 = vmatpush1.bf16.msra.mxu0 %v3556
    %5661 = vmatprep.subr.bf16.mxu0 %v3561
    %5662 = vmatpush1.bf16.msra.mxu0 %v3560
    %5663 = vmatprep.mubr.bf16.mxu0 %v252
    %5664 = vmatmul.mubr.bf16.gmra.mrb[0].mxu0 %v251
    %v5665 = vpop.f32.mrb[0].mxu0
    %v5666 = vadd.f32 %v1089, %v5665
    %v5667 = vpop.f32.mrb[0].mxu0
    %v5668 = vadd.f32 %v1093, %v5667
    %v5669 = vpop.f32.mrb[0].mxu0
    %v5670 = vpop.f32.mrb[0].mxu0
    %5671 = vdwg.mxu0
    %5672 = vmatprep.subr.bf16.mxu0 %v3565
    %5673 = vmatpush1.bf16.msra.mxu0 %v3564
    %5674 = vmatprep.subr.bf16.mxu0 %v3569
    %5675 = vmatpush1.bf16.msra.mxu0 %v3568
    %5676 = vmatprep.subr.bf16.mxu0 %v3573
    %5677 = vmatpush1.bf16.msra.mxu0 %v3572
    %5678 = vmatprep.subr.bf16.mxu0 %v3577
    %5679 = vmatpush1.bf16.msra.mxu0 %v3576
    %5680 = vmatprep.subr.bf16.mxu0 %v3581
    %5681 = vmatpush1.bf16.msra.mxu0 %v3580
    %5682 = vmatprep.subr.bf16.mxu0 %v3585
    %5683 = vmatpush1.bf16.msra.mxu0 %v3584
    %5684 = vmatprep.subr.bf16.mxu0 %v3589
    %5685 = vmatpush1.bf16.msra.mxu0 %v3588
    %5686 = vmatprep.subr.bf16.mxu0 %v3593
    %5687 = vmatpush1.bf16.msra.mxu0 %v3592
    %5688 = vmatprep.subr.bf16.mxu0 %v3597
    %5689 = vmatpush1.bf16.msra.mxu0 %v3596
    %5690 = vmatprep.subr.bf16.mxu0 %v3601
    %5691 = vmatpush1.bf16.msra.mxu0 %v3600
    %5692 = vmatprep.subr.bf16.mxu0 %v3605
    %5693 = vmatpush1.bf16.msra.mxu0 %v3604
    %5694 = vmatprep.subr.bf16.mxu0 %v3609
    %5695 = vmatpush1.bf16.msra.mxu0 %v3608
    %5696 = vmatprep.subr.bf16.mxu0 %v3613
    %5697 = vmatpush1.bf16.msra.mxu0 %v3612
    %5698 = vmatprep.subr.bf16.mxu0 %v3617
    %5699 = vmatpush1.bf16.msra.mxu0 %v3616
    %5700 = vmatprep.subr.bf16.mxu0 %v3621
    %5701 = vmatpush1.bf16.msra.mxu0 %v3620
    %5702 = vmatprep.subr.bf16.mxu0 %v3625
    %5703 = vmatpush1.bf16.msra.mxu0 %v3624
    %5704 = vmatprep.mubr.bf16.mxu0 %v254
    %5705 = vmatmul.mubr.bf16.gmra.mrb[0].mxu0 %v253
    %v5706 = vpop.f32.mrb[0].mxu0
    %v5707 = vadd.f32 %v5666, %v5706
    %v5708 = vpop.f32.mrb[0].mxu0
    %v5709 = vadd.f32 %v5668, %v5708
    %v5710 = vpop.f32.mrb[0].mxu0
    %v5711 = vpop.f32.mrb[0].mxu0
    %5712 = vdwg.mxu0
    %5713 = vmatprep.subr.bf16.mxu0 %v3629
    %5714 = vmatpush1.bf16.msra.mxu0 %v3628
    %5715 = vmatprep.subr.bf16.mxu0 %v3633
    %5716 = vmatpush1.bf16.msra.mxu0 %v3632
    %5717 = vmatprep.subr.bf16.mxu0 %v3637
    %5718 = vmatpush1.bf16.msra.mxu0 %v3636
    %5719 = vmatprep.subr.bf16.mxu0 %v3641
    %5720 = vmatpush1.bf16.msra.mxu0 %v3640
    %5721 = vmatprep.subr.bf16.mxu0 %v3645
    %5722 = vmatpush1.bf16.msra.mxu0 %v3644
    %5723 = vmatprep.subr.bf16.mxu0 %v3649
    %5724 = vmatpush1.bf16.msra.mxu0 %v3648
    %5725 = vmatprep.subr.bf16.mxu0 %v3653
    %5726 = vmatpush1.bf16.msra.mxu0 %v3652
    %5727 = vmatprep.subr.bf16.mxu0 %v3657
    %5728 = vmatpush1.bf16.msra.mxu0 %v3656
    %5729 = vmatprep.subr.bf16.mxu0 %v3661
    %5730 = vmatpush1.bf16.msra.mxu0 %v3660
    %5731 = vmatprep.subr.bf16.mxu0 %v3665
    %5732 = vmatpush1.bf16.msra.mxu0 %v3664
    %5733 = vmatprep.subr.bf16.mxu0 %v3669
    %5734 = vmatpush1.bf16.msra.mxu0 %v3668
    %5735 = vmatprep.subr.bf16.mxu0 %v3673
    %5736 = vmatpush1.bf16.msra.mxu0 %v3672
    %5737 = vmatprep.subr.bf16.mxu0 %v3677
    %5738 = vmatpush1.bf16.msra.mxu0 %v3676
    %5739 = vmatprep.subr.bf16.mxu0 %v3681
    %5740 = vmatpush1.bf16.msra.mxu0 %v3680
    %5741 = vmatprep.subr.bf16.mxu0 %v3685
    %5742 = vmatpush1.bf16.msra.mxu0 %v3684
    %5743 = vmatprep.subr.bf16.mxu0 %v3689
    %5744 = vmatpush1.bf16.msra.mxu0 %v3688
    %5745 = vmatprep.mubr.bf16.mxu0 %v256
    %5746 = vmatmul.mubr.bf16.gmra.mrb[0].mxu0 %v255
    %v5747 = vpop.f32.mrb[0].mxu0
    %v5748 = vadd.f32 %v5707, %v5747
    %v5749 = vpop.f32.mrb[0].mxu0
    %v5750 = vadd.f32 %v5709, %v5749
    %v5751 = vpop.f32.mrb[0].mxu0
    %v5752 = vpop.f32.mrb[0].mxu0
    %5753 = vdwg.mxu0
    %5754 = vmatprep.subr.bf16.mxu0 %v3693
    %5755 = vmatpush1.bf16.msra.mxu0 %v3692
    %5756 = vmatprep.subr.bf16.mxu0 %v3697
    %5757 = vmatpush1.bf16.msra.mxu0 %v3696
    %5758 = vmatprep.subr.bf16.mxu0 %v3701
    %5759 = vmatpush1.bf16.msra.mxu0 %v3700
    %5760 = vmatprep.subr.bf16.mxu0 %v3705
    %5761 = vmatpush1.bf16.msra.mxu0 %v3704
    %5762 = vmatprep.subr.bf16.mxu0 %v3709
    %5763 = vmatpush1.bf16.msra.mxu0 %v3708
    %5764 = vmatprep.subr.bf16.mxu0 %v3713
    %5765 = vmatpush1.bf16.msra.mxu0 %v3712
    %5766 = vmatprep.subr.bf16.mxu0 %v3717
    %5767 = vmatpush1.bf16.msra.mxu0 %v3716
    %5768 = vmatprep.subr.bf16.mxu0 %v3721
    %5769 = vmatpush1.bf16.msra.mxu0 %v3720
    %5770 = vmatprep.subr.bf16.mxu0 %v3725
    %5771 = vmatpush1.bf16.msra.mxu0 %v3724
    %5772 = vmatprep.subr.bf16.mxu0 %v3729
    %5773 = vmatpush1.bf16.msra.mxu0 %v3728
    %5774 = vmatprep.subr.bf16.mxu0 %v3733
    %5775 = vmatpush1.bf16.msra.mxu0 %v3732
    %5776 = vmatprep.subr.bf16.mxu0 %v3737
    %5777 = vmatpush1.bf16.msra.mxu0 %v3736
    %5778 = vmatprep.subr.bf16.mxu0 %v3741
    %5779 = vmatpush1.bf16.msra.mxu0 %v3740
    %5780 = vmatprep.subr.bf16.mxu0 %v3745
    %5781 = vmatpush1.bf16.msra.mxu0 %v3744
    %5782 = vmatprep.subr.bf16.mxu0 %v3749
    %5783 = vmatpush1.bf16.msra.mxu0 %v3748
    %5784 = vmatprep.subr.bf16.mxu0 %v3753
    %5785 = vmatpush1.bf16.msra.mxu0 %v3752
    %5786 = vmatprep.mubr.bf16.mxu0 %v258
    %5787 = vmatmul.mubr.bf16.gmra.mrb[0].mxu0 %v257
    %v5788 = vpop.f32.mrb[0].mxu0
    %v5789 = vadd.f32 %v5748, %v5788
    %v5790 = vpop.f32.mrb[0].mxu0
    %v5791 = vadd.f32 %v5750, %v5790
    %v5792 = vpop.f32.mrb[0].mxu0
    %v5793 = vpop.f32.mrb[0].mxu0
    %5794 = vdwg.mxu0
    %5795 = vmatprep.subr.bf16.mxu0 %v3757
    %5796 = vmatpush1.bf16.msra.mxu0 %v3756
    %5797 = vmatprep.subr.bf16.mxu0 %v3761
    %5798 = vmatpush1.bf16.msra.mxu0 %v3760
    %5799 = vmatprep.subr.bf16.mxu0 %v3765
    %5800 = vmatpush1.bf16.msra.mxu0 %v3764
    %5801 = vmatprep.subr.bf16.mxu0 %v3769
    %5802 = vmatpush1.bf16.msra.mxu0 %v3768
    %5803 = vmatprep.subr.bf16.mxu0 %v3773
    %5804 = vmatpush1.bf16.msra.mxu0 %v3772
    %5805 = vmatprep.subr.bf16.mxu0 %v3777
    %5806 = vmatpush1.bf16.msra.mxu0 %v3776
    %5807 = vmatprep.subr.bf16.mxu0 %v3781
    %5808 = vmatpush1.bf16.msra.mxu0 %v3780
    %5809 = vmatprep.subr.bf16.mxu0 %v3785
    %5810 = vmatpush1.bf16.msra.mxu0 %v3784
    %5811 = vmatprep.subr.bf16.mxu0 %v3789
    %5812 = vmatpush1.bf16.msra.mxu0 %v3788
    %5813 = vmatprep.subr.bf16.mxu0 %v3793
    %5814 = vmatpush1.bf16.msra.mxu0 %v3792
    %5815 = vmatprep.subr.bf16.mxu0 %v3797
    %5816 = vmatpush1.bf16.msra.mxu0 %v3796
    %5817 = vmatprep.subr.bf16.mxu0 %v3801
    %5818 = vmatpush1.bf16.msra.mxu0 %v3800
    %5819 = vmatprep.subr.bf16.mxu0 %v3805
    %5820 = vmatpush1.bf16.msra.mxu0 %v3804
    %5821 = vmatprep.subr.bf16.mxu0 %v3809
    %5822 = vmatpush1.bf16.msra.mxu0 %v3808
    %5823 = vmatprep.subr.bf16.mxu0 %v3813
    %5824 = vmatpush1.bf16.msra.mxu0 %v3812
    %5825 = vmatprep.subr.bf16.mxu0 %v3817
    %5826 = vmatpush1.bf16.msra.mxu0 %v3816
    %5827 = vmatprep.mubr.bf16.mxu0 %v260
    %5828 = vmatmul.mubr.bf16.gmra.mrb[0].mxu0 %v259
    %v5829 = vpop.f32.mrb[0].mxu0
    %v5830 = vadd.f32 %v5789, %v5829
    %v5831 = vpop.f32.mrb[0].mxu0
    %v5832 = vadd.f32 %v5791, %v5831
    %v5833 = vpop.f32.mrb[0].mxu0
    %v5834 = vpop.f32.mrb[0].mxu0
    %5835 = vdwg.mxu0
    %5836 = vmatprep.subr.bf16.mxu0 %v3821
    %5837 = vmatpush1.bf16.msra.mxu0 %v3820
    %5838 = vmatprep.subr.bf16.mxu0 %v3825
    %5839 = vmatpush1.bf16.msra.mxu0 %v3824
    %5840 = vmatprep.subr.bf16.mxu0 %v3829
    %5841 = vmatpush1.bf16.msra.mxu0 %v3828
    %5842 = vmatprep.subr.bf16.mxu0 %v3833
    %5843 = vmatpush1.bf16.msra.mxu0 %v3832
    %5844 = vmatprep.subr.bf16.mxu0 %v3837
    %5845 = vmatpush1.bf16.msra.mxu0 %v3836
    %5846 = vmatprep.subr.bf16.mxu0 %v3841
    %5847 = vmatpush1.bf16.msra.mxu0 %v3840
    %5848 = vmatprep.subr.bf16.mxu0 %v3845
    %5849 = vmatpush1.bf16.msra.mxu0 %v3844
    %5850 = vmatprep.subr.bf16.mxu0 %v3849
    %5851 = vmatpush1.bf16.msra.mxu0 %v3848
    %5852 = vmatprep.subr.bf16.mxu0 %v3853
    %5853 = vmatpush1.bf16.msra.mxu0 %v3852
    %5854 = vmatprep.subr.bf16.mxu0 %v3857
    %5855 = vmatpush1.bf16.msra.mxu0 %v3856
    %5856 = vmatprep.subr.bf16.mxu0 %v3861
    %5857 = vmatpush1.bf16.msra.mxu0 %v3860
    %5858 = vmatprep.subr.bf16.mxu0 %v3865
    %5859 = vmatpush1.bf16.msra.mxu0 %v3864
    %5860 = vmatprep.subr.bf16.mxu0 %v3869
    %5861 = vmatpush1.bf16.msra.mxu0 %v3868
    %5862 = vmatprep.subr.bf16.mxu0 %v3873
    %5863 = vmatpush1.bf16.msra.mxu0 %v3872
    %5864 = vmatprep.subr.bf16.mxu0 %v3877
    %5865 = vmatpush1.bf16.msra.mxu0 %v3876
    %5866 = vmatprep.subr.bf16.mxu0 %v3881
    %5867 = vmatpush1.bf16.msra.mxu0 %v3880
    %5868 = vmatprep.mubr.bf16.mxu0 %v262
    %5869 = vmatmul.mubr.bf16.gmra.mrb[0].mxu0 %v261
    %v5870 = vpop.f32.mrb[0].mxu0
    %v5871 = vadd.f32 %v5830, %v5870
    %v5872 = vpop.f32.mrb[0].mxu0
    %v5873 = vadd.f32 %v5832, %v5872
    %v5874 = vpop.f32.mrb[0].mxu0
    %v5875 = vpop.f32.mrb[0].mxu0
    %5876 = vdwg.mxu0
    %5877 = vmatprep.subr.bf16.mxu0 %v3885
    %5878 = vmatpush1.bf16.msra.mxu0 %v3884
    %5879 = vmatprep.subr.bf16.mxu0 %v3889
    %5880 = vmatpush1.bf16.msra.mxu0 %v3888
    %5881 = vmatprep.subr.bf16.mxu0 %v3893
    %5882 = vmatpush1.bf16.msra.mxu0 %v3892
    %5883 = vmatprep.subr.bf16.mxu0 %v3897
    %5884 = vmatpush1.bf16.msra.mxu0 %v3896
    %5885 = vmatprep.subr.bf16.mxu0 %v3901
    %5886 = vmatpush1.bf16.msra.mxu0 %v3900
    %5887 = vmatprep.subr.bf16.mxu0 %v3905
    %5888 = vmatpush1.bf16.msra.mxu0 %v3904
    %5889 = vmatprep.subr.bf16.mxu0 %v3909
    %5890 = vmatpush1.bf16.msra.mxu0 %v3908
    %5891 = vmatprep.subr.bf16.mxu0 %v3913
    %5892 = vmatpush1.bf16.msra.mxu0 %v3912
    %5893 = vmatprep.subr.bf16.mxu0 %v3917
    %5894 = vmatpush1.bf16.msra.mxu0 %v3916
    %5895 = vmatprep.subr.bf16.mxu0 %v3921
    %5896 = vmatpush1.bf16.msra.mxu0 %v3920
    %5897 = vmatprep.subr.bf16.mxu0 %v3925
    %5898 = vmatpush1.bf16.msra.mxu0 %v3924
    %5899 = vmatprep.subr.bf16.mxu0 %v3929
    %5900 = vmatpush1.bf16.msra.mxu0 %v3928
    %5901 = vmatprep.subr.bf16.mxu0 %v3933
    %5902 = vmatpush1.bf16.msra.mxu0 %v3932
    %5903 = vmatprep.subr.bf16.mxu0 %v3937
    %5904 = vmatpush1.bf16.msra.mxu0 %v3936
    %5905 = vmatprep.subr.bf16.mxu0 %v3941
    %5906 = vmatpush1.bf16.msra.mxu0 %v3940
    %5907 = vmatprep.subr.bf16.mxu0 %v3945
    %5908 = vmatpush1.bf16.msra.mxu0 %v3944
    %5909 = vmatprep.mubr.bf16.mxu0 %v264
    %5910 = vmatmul.mubr.bf16.gmra.mrb[0].mxu0 %v263
    %v5911 = vpop.f32.mrb[0].mxu0
    %v5912 = vadd.f32 %v5871, %v5911
    %v5913 = vpop.f32.mrb[0].mxu0
    %v5914 = vadd.f32 %v5873, %v5913
    %v5915 = vpop.f32.mrb[0].mxu0
    %v5916 = vpop.f32.mrb[0].mxu0
    %5917 = vdwg.mxu0
    %5918 = vmatprep.subr.bf16.mxu0 %v3949
    %5919 = vmatpush1.bf16.msra.mxu0 %v3948
    %5920 = vmatprep.subr.bf16.mxu0 %v3953
    %5921 = vmatpush1.bf16.msra.mxu0 %v3952
    %5922 = vmatprep.subr.bf16.mxu0 %v3957
    %5923 = vmatpush1.bf16.msra.mxu0 %v3956
    %5924 = vmatprep.subr.bf16.mxu0 %v3961
    %5925 = vmatpush1.bf16.msra.mxu0 %v3960
    %5926 = vmatprep.subr.bf16.mxu0 %v3965
    %5927 = vmatpush1.bf16.msra.mxu0 %v3964
    %5928 = vmatprep.subr.bf16.mxu0 %v3969
    %5929 = vmatpush1.bf16.msra.mxu0 %v3968
    %5930 = vmatprep.subr.bf16.mxu0 %v3973
    %5931 = vmatpush1.bf16.msra.mxu0 %v3972
    %5932 = vmatprep.subr.bf16.mxu0 %v3977
    %5933 = vmatpush1.bf16.msra.mxu0 %v3976
    %5934 = vmatprep.subr.bf16.mxu0 %v3981
    %5935 = vmatpush1.bf16.msra.mxu0 %v3980
    %5936 = vmatprep.subr.bf16.mxu0 %v3985
    %5937 = vmatpush1.bf16.msra.mxu0 %v3984
    %5938 = vmatprep.subr.bf16.mxu0 %v3989
    %5939 = vmatpush1.bf16.msra.mxu0 %v3988
    %5940 = vmatprep.subr.bf16.mxu0 %v3993
    %5941 = vmatpush1.bf16.msra.mxu0 %v3992
    %5942 = vmatprep.subr.bf16.mxu0 %v3997
    %5943 = vmatpush1.bf16.msra.mxu0 %v3996
    %5944 = vmatprep.subr.bf16.mxu0 %v4001
    %5945 = vmatpush1.bf16.msra.mxu0 %v4000
    %5946 = vmatprep.subr.bf16.mxu0 %v4005
    %5947 = vmatpush1.bf16.msra.mxu0 %v4004
    %5948 = vmatprep.subr.bf16.mxu0 %v4009
    %5949 = vmatpush1.bf16.msra.mxu0 %v4008
    %5950 = vmatprep.mubr.bf16.mxu0 %v266
    %5951 = vmatmul.mubr.bf16.gmra.mrb[0].mxu0 %v265
    %v5952 = vpop.f32.mrb[0].mxu0
    %v5953 = vadd.f32 %v5912, %v5952
    %v5954 = vpop.f32.mrb[0].mxu0
    %v5955 = vadd.f32 %v5914, %v5954
    %v5956 = vpop.f32.mrb[0].mxu0
    %v5957 = vpop.f32.mrb[0].mxu0
    %5958 = vdwg.mxu0
    %5959 = vmatprep.subr.bf16.mxu0 %v4013
    %5960 = vmatpush1.bf16.msra.mxu0 %v4012
    %5961 = vmatprep.subr.bf16.mxu0 %v4017
    %5962 = vmatpush1.bf16.msra.mxu0 %v4016
    %5963 = vmatprep.subr.bf16.mxu0 %v4021
    %5964 = vmatpush1.bf16.msra.mxu0 %v4020
    %5965 = vmatprep.subr.bf16.mxu0 %v4025
    %5966 = vmatpush1.bf16.msra.mxu0 %v4024
    %5967 = vmatprep.subr.bf16.mxu0 %v4029
    %5968 = vmatpush1.bf16.msra.mxu0 %v4028
    %5969 = vmatprep.subr.bf16.mxu0 %v4033
    %5970 = vmatpush1.bf16.msra.mxu0 %v4032
    %5971 = vmatprep.subr.bf16.mxu0 %v4037
    %5972 = vmatpush1.bf16.msra.mxu0 %v4036
    %5973 = vmatprep.subr.bf16.mxu0 %v4041
    %5974 = vmatpush1.bf16.msra.mxu0 %v4040
    %5975 = vmatprep.subr.bf16.mxu0 %v4045
    %5976 = vmatpush1.bf16.msra.mxu0 %v4044
    %5977 = vmatprep.subr.bf16.mxu0 %v4049
    %5978 = vmatpush1.bf16.msra.mxu0 %v4048
    %5979 = vmatprep.subr.bf16.mxu0 %v4053
    %5980 = vmatpush1.bf16.msra.mxu0 %v4052
    %5981 = vmatprep.subr.bf16.mxu0 %v4057
    %5982 = vmatpush1.bf16.msra.mxu0 %v4056
    %5983 = vmatprep.subr.bf16.mxu0 %v4061
    %5984 = vmatpush1.bf16.msra.mxu0 %v4060
    %5985 = vmatprep.subr.bf16.mxu0 %v4065
    %5986 = vmatpush1.bf16.msra.mxu0 %v4064
    %5987 = vmatprep.subr.bf16.mxu0 %v4069
    %5988 = vmatpush1.bf16.msra.mxu0 %v4068
    %5989 = vmatprep.subr.bf16.mxu0 %v4073
    %5990 = vmatpush1.bf16.msra.mxu0 %v4072
    %5991 = vmatprep.mubr.bf16.mxu0 %v268
    %5992 = vmatmul.mubr.bf16.gmra.mrb[0].mxu0 %v267
    %v5993 = vpop.f32.mrb[0].mxu0
    %v5994 = vadd.f32 %v5953, %v5993
    %v5995 = vpop.f32.mrb[0].mxu0
    %v5996 = vadd.f32 %v5955, %v5995
    %v5997 = vpop.f32.mrb[0].mxu0
    %v5998 = vpop.f32.mrb[0].mxu0
    %5999 = vdwg.mxu0
    %6000 = vmatprep.subr.bf16.mxu0 %v4077
    %6001 = vmatpush1.bf16.msra.mxu0 %v4076
    %6002 = vmatprep.subr.bf16.mxu0 %v4081
    %6003 = vmatpush1.bf16.msra.mxu0 %v4080
    %6004 = vmatprep.subr.bf16.mxu0 %v4085
    %6005 = vmatpush1.bf16.msra.mxu0 %v4084
    %6006 = vmatprep.subr.bf16.mxu0 %v4089
    %6007 = vmatpush1.bf16.msra.mxu0 %v4088
    %6008 = vmatprep.subr.bf16.mxu0 %v4093
    %6009 = vmatpush1.bf16.msra.mxu0 %v4092
    %6010 = vmatprep.subr.bf16.mxu0 %v4097
    %6011 = vmatpush1.bf16.msra.mxu0 %v4096
    %6012 = vmatprep.subr.bf16.mxu0 %v4101
    %6013 = vmatpush1.bf16.msra.mxu0 %v4100
    %6014 = vmatprep.subr.bf16.mxu0 %v4105
    %6015 = vmatpush1.bf16.msra.mxu0 %v4104
    %6016 = vmatprep.subr.bf16.mxu0 %v4109
    %6017 = vmatpush1.bf16.msra.mxu0 %v4108
    %6018 = vmatprep.subr.bf16.mxu0 %v4113
    %6019 = vmatpush1.bf16.msra.mxu0 %v4112
    %6020 = vmatprep.subr.bf16.mxu0 %v4117
    %6021 = vmatpush1.bf16.msra.mxu0 %v4116
    %6022 = vmatprep.subr.bf16.mxu0 %v4121
    %6023 = vmatpush1.bf16.msra.mxu0 %v4120
    %6024 = vmatprep.subr.bf16.mxu0 %v4125
    %6025 = vmatpush1.bf16.msra.mxu0 %v4124
    %6026 = vmatprep.subr.bf16.mxu0 %v4129
    %6027 = vmatpush1.bf16.msra.mxu0 %v4128
    %6028 = vmatprep.subr.bf16.mxu0 %v4133
    %6029 = vmatpush1.bf16.msra.mxu0 %v4132
    %6030 = vmatprep.subr.bf16.mxu0 %v4137
    %6031 = vmatpush1.bf16.msra.mxu0 %v4136
    %6032 = vmatprep.mubr.bf16.mxu0 %v270
    %6033 = vmatmul.mubr.bf16.gmra.mrb[0].mxu0 %v269
    %v6034 = vpop.f32.mrb[0].mxu0
    %v6035 = vadd.f32 %v5994, %v6034
    %v6036 = vpop.f32.mrb[0].mxu0
    %v6037 = vadd.f32 %v5996, %v6036
    %v6038 = vpop.f32.mrb[0].mxu0
    %v6039 = vpop.f32.mrb[0].mxu0
    %6040 = vdwg.mxu0
    %6041 = vmatprep.subr.bf16.mxu0 %v4141
    %6042 = vmatpush1.bf16.msra.mxu0 %v4140
    %6043 = vmatprep.subr.bf16.mxu0 %v4145
    %6044 = vmatpush1.bf16.msra.mxu0 %v4144
    %6045 = vmatprep.subr.bf16.mxu0 %v4149
    %6046 = vmatpush1.bf16.msra.mxu0 %v4148
    %6047 = vmatprep.subr.bf16.mxu0 %v4153
    %6048 = vmatpush1.bf16.msra.mxu0 %v4152
    %6049 = vmatprep.subr.bf16.mxu0 %v4157
    %6050 = vmatpush1.bf16.msra.mxu0 %v4156
    %6051 = vmatprep.subr.bf16.mxu0 %v4161
    %6052 = vmatpush1.bf16.msra.mxu0 %v4160
    %6053 = vmatprep.subr.bf16.mxu0 %v4165
    %6054 = vmatpush1.bf16.msra.mxu0 %v4164
    %6055 = vmatprep.subr.bf16.mxu0 %v4169
    %6056 = vmatpush1.bf16.msra.mxu0 %v4168
    %6057 = vmatprep.subr.bf16.mxu0 %v4173
    %6058 = vmatpush1.bf16.msra.mxu0 %v4172
    %6059 = vmatprep.subr.bf16.mxu0 %v4177
    %6060 = vmatpush1.bf16.msra.mxu0 %v4176
    %6061 = vmatprep.subr.bf16.mxu0 %v4181
    %6062 = vmatpush1.bf16.msra.mxu0 %v4180
    %6063 = vmatprep.subr.bf16.mxu0 %v4185
    %6064 = vmatpush1.bf16.msra.mxu0 %v4184
    %6065 = vmatprep.subr.bf16.mxu0 %v4189
    %6066 = vmatpush1.bf16.msra.mxu0 %v4188
    %6067 = vmatprep.subr.bf16.mxu0 %v4193
    %6068 = vmatpush1.bf16.msra.mxu0 %v4192
    %6069 = vmatprep.subr.bf16.mxu0 %v4197
    %6070 = vmatpush1.bf16.msra.mxu0 %v4196
    %6071 = vmatprep.subr.bf16.mxu0 %v4201
    %6072 = vmatpush1.bf16.msra.mxu0 %v4200
    %6073 = vmatprep.mubr.bf16.mxu0 %v272
    %6074 = vmatmul.mubr.bf16.gmra.mrb[0].mxu0 %v271
    %v6075 = vpop.f32.mrb[0].mxu0
    %v6076 = vadd.f32 %v6035, %v6075
    %v6077 = vpop.f32.mrb[0].mxu0
    %v6078 = vadd.f32 %v6037, %v6077
    %v6079 = vpop.f32.mrb[0].mxu0
    %v6080 = vpop.f32.mrb[0].mxu0
    %6081 = vdwg.mxu0
    %6082 = vmatprep.subr.bf16.mxu0 %v4205
    %6083 = vmatpush1.bf16.msra.mxu0 %v4204
    %6084 = vmatprep.subr.bf16.mxu0 %v4209
    %6085 = vmatpush1.bf16.msra.mxu0 %v4208
    %6086 = vmatprep.subr.bf16.mxu0 %v4213
    %6087 = vmatpush1.bf16.msra.mxu0 %v4212
    %6088 = vmatprep.subr.bf16.mxu0 %v4217
    %6089 = vmatpush1.bf16.msra.mxu0 %v4216
    %6090 = vmatprep.subr.bf16.mxu0 %v4221
    %6091 = vmatpush1.bf16.msra.mxu0 %v4220
    %6092 = vmatprep.subr.bf16.mxu0 %v4225
    %6093 = vmatpush1.bf16.msra.mxu0 %v4224
    %6094 = vmatprep.subr.bf16.mxu0 %v4229
    %6095 = vmatpush1.bf16.msra.mxu0 %v4228
    %6096 = vmatprep.subr.bf16.mxu0 %v4233
    %6097 = vmatpush1.bf16.msra.mxu0 %v4232
    %6098 = vmatprep.subr.bf16.mxu0 %v4237
    %6099 = vmatpush1.bf16.msra.mxu0 %v4236
    %6100 = vmatprep.subr.bf16.mxu0 %v4241
    %6101 = vmatpush1.bf16.msra.mxu0 %v4240
    %6102 = vmatprep.subr.bf16.mxu0 %v4245
    %6103 = vmatpush1.bf16.msra.mxu0 %v4244
    %6104 = vmatprep.subr.bf16.mxu0 %v4249
    %6105 = vmatpush1.bf16.msra.mxu0 %v4248
    %6106 = vmatprep.subr.bf16.mxu0 %v4253
    %6107 = vmatpush1.bf16.msra.mxu0 %v4252
    %6108 = vmatprep.subr.bf16.mxu0 %v4257
    %6109 = vmatpush1.bf16.msra.mxu0 %v4256
    %6110 = vmatprep.subr.bf16.mxu0 %v4261
    %6111 = vmatpush1.bf16.msra.mxu0 %v4260
    %6112 = vmatprep.subr.bf16.mxu0 %v4265
    %6113 = vmatpush1.bf16.msra.mxu0 %v4264
    %6114 = vmatprep.mubr.bf16.mxu0 %v274
    %6115 = vmatmul.mubr.bf16.gmra.mrb[0].mxu0 %v273
    %v6116 = vpop.f32.mrb[0].mxu0
    %v6117 = vadd.f32 %v6076, %v6116
    %v6118 = vpop.f32.mrb[0].mxu0
    %v6119 = vadd.f32 %v6078, %v6118
    %v6120 = vpop.f32.mrb[0].mxu0
    %v6121 = vpop.f32.mrb[0].mxu0
    %6122 = vdwg.mxu0
    %6123 = vmatprep.subr.bf16.mxu0 %v4269
    %6124 = vmatpush1.bf16.msra.mxu0 %v4268
    %6125 = vmatprep.subr.bf16.mxu0 %v4273
    %6126 = vmatpush1.bf16.msra.mxu0 %v4272
    %6127 = vmatprep.subr.bf16.mxu0 %v4277
    %6128 = vmatpush1.bf16.msra.mxu0 %v4276
    %6129 = vmatprep.subr.bf16.mxu0 %v4281
    %6130 = vmatpush1.bf16.msra.mxu0 %v4280
    %6131 = vmatprep.subr.bf16.mxu0 %v4285
    %6132 = vmatpush1.bf16.msra.mxu0 %v4284
    %6133 = vmatprep.subr.bf16.mxu0 %v4289
    %6134 = vmatpush1.bf16.msra.mxu0 %v4288
    %6135 = vmatprep.subr.bf16.mxu0 %v4293
    %6136 = vmatpush1.bf16.msra.mxu0 %v4292
    %6137 = vmatprep.subr.bf16.mxu0 %v4297
    %6138 = vmatpush1.bf16.msra.mxu0 %v4296
    %6139 = vmatprep.subr.bf16.mxu0 0
    %6140 = vmatpush1.bf16.msra.mxu0 0
    %6141 = vmatprep.subr.bf16.mxu0 0
    %6142 = vmatpush1.bf16.msra.mxu0 0
    %6143 = vmatprep.subr.bf16.mxu0 0
    %6144 = vmatpush1.bf16.msra.mxu0 0
    %6145 = vmatprep.subr.bf16.mxu0 0
    %6146 = vmatpush1.bf16.msra.mxu0 0
    %6147 = vmatprep.subr.bf16.mxu0 0
    %6148 = vmatpush1.bf16.msra.mxu0 0
    %6149 = vmatprep.subr.bf16.mxu0 0
    %6150 = vmatpush1.bf16.msra.mxu0 0
    %6151 = vmatprep.subr.bf16.mxu0 0
    %6152 = vmatpush1.bf16.msra.mxu0 0
    %6153 = vmatprep.subr.bf16.mxu0 0
    %6154 = vmatpush1.bf16.msra.mxu0 0
    %6155 = vmatprep.mubr.bf16.mxu0 0
    %6156 = vmatmul.mubr.bf16.gmra.mrb[0].mxu0 %v275
    %v6157 = vpop.f32.mrb[0].mxu0
    %v6158 = vadd.f32 %v6117, %v6157
    %v6159 = vpop.f32.mrb[0].mxu0
    %v6160 = vadd.f32 %v6119, %v6159
    %v6161 = vpop.f32.mrb[0].mxu0
    %v6162 = vpop.f32.mrb[0].mxu0
    %6163 = vdwg.mxu0
    %v6164 = vmax.f32 %v5625, 0.0
    %v6165 = vmax.f32 %v5627, 0.0
    %v6166 = vmax.f32 %v6158, 0.0
    %v6167 = vmax.f32 %v6160, 0.0
    %v6168 = vpack.c.bf16 %v6164, %v6164
    %v6169 = vpack.c.bf16 %v6165, %v6165
    %v6170 = vpack.c.bf16 %v6166, %v6166
    %v6171 = vpack.c.bf16 %v6167, %v6167
    %v6172 = vld [vmem:[#allocation6] sm:$0xff]
    %v6173 = vld [vmem:[#allocation6 + $0x8] sm:$0xff]
    %v6174 = vld [vmem:[#allocation6 + $0x10] sm:$0xff]
    %v6175 = vld [vmem:[#allocation6 + $0x18] sm:$0xff]
    %v6176 = vld [vmem:[#allocation6 + $0x20] sm:$0xff]
    %v6177 = vld [vmem:[#allocation6 + $0x28] sm:$0xff]
    %v6178 = vld [vmem:[#allocation6 + $0x30] sm:$0xff]
    %v6179 = vld [vmem:[#allocation6 + $0x38] sm:$0xff]
    %v6180 = vld [vmem:[#allocation6 + $0x40] sm:$0xff]
    %v6181 = vld [vmem:[#allocation6 + $0x48] sm:$0xff]
    %v6182 = vld [vmem:[#allocation6 + $0x50] sm:$0xff]
    %v6183 = vld [vmem:[#allocation6 + $0x58] sm:$0xff]
    %v6184 = vld [vmem:[#allocation6 + $0x60] sm:$0xff]
    %v6185 = vld [vmem:[#allocation6 + $0x68] sm:$0xff]
    %v6186 = vld [vmem:[#allocation6 + $0x70] sm:$0xff]
    %v6187 = vld [vmem:[#allocation6 + $0x78] sm:$0xff]
    %v6188 = vld [vmem:[#allocation6 + $0x80] sm:$0xff]
    %v6189 = vld [vmem:[#allocation6 + $0x88] sm:$0xff]
    %v6190 = vld [vmem:[#allocation6 + $0x90] sm:$0xff]
    %v6191 = vld [vmem:[#allocation6 + $0x98] sm:$0xff]
    %v6192 = vld [vmem:[#allocation6 + $0xa0] sm:$0xff]
    %v6193 = vld [vmem:[#allocation6 + $0xa8] sm:$0xff]
    %v6194 = vld [vmem:[#allocation6 + $0xb0] sm:$0xff]
    %v6195 = vld [vmem:[#allocation6 + $0xb8] sm:$0xff]
    %v6196 = vld [vmem:[#allocation6 + $0xc0] sm:$0xff]
    %v6197 = vld [vmem:[#allocation6 + $0xc8] sm:$0xff]
    %v6198 = vld [vmem:[#allocation6 + $0xd0] sm:$0xff]
    %v6199 = vld [vmem:[#allocation6 + $0xd8] sm:$0xff]
    %v6200 = vld [vmem:[#allocation6 + $0xe0] sm:$0xff]
    %v6201 = vld [vmem:[#allocation6 + $0xe8] sm:$0xff]
    %v6202 = vld [vmem:[#allocation6 + $0xf0] sm:$0xff]
    %v6203 = vld [vmem:[#allocation6 + $0xf8] sm:$0xff]
    %v6204 = vld [vmem:[#allocation6 + $0x100] sm:$0xff]
    %v6205 = vld [vmem:[#allocation6 + $0x108] sm:$0xff]
    %v6206 = vld [vmem:[#allocation6 + $0x110] sm:$0xff]
    %v6207 = vld [vmem:[#allocation6 + $0x118] sm:$0xff]
    %v6208 = vld [vmem:[#allocation6 + $0x120] sm:$0xff]
    %v6209 = vld [vmem:[#allocation6 + $0x128] sm:$0xff]
    %v6210 = vld [vmem:[#allocation6 + $0x130] sm:$0xff]
    %v6211 = vld [vmem:[#allocation6 + $0x138] sm:$0xff]
    %v6212 = vld [vmem:[#allocation6 + $0x140] sm:$0xff]
    %v6213 = vld [vmem:[#allocation6 + $0x148] sm:$0xff]
    %v6214 = vld [vmem:[#allocation6 + $0x150] sm:$0xff]
    %v6215 = vld [vmem:[#allocation6 + $0x158] sm:$0xff]
    %v6216 = vld [vmem:[#allocation6 + $0x160] sm:$0xff]
    %v6217 = vld [vmem:[#allocation6 + $0x168] sm:$0xff]
    %v6218 = vld [vmem:[#allocation6 + $0x170] sm:$0xff]
    %v6219 = vld [vmem:[#allocation6 + $0x178] sm:$0xff]
    %v6220 = vld [vmem:[#allocation6 + $0x180] sm:$0xff]
    %v6221 = vld [vmem:[#allocation6 + $0x188] sm:$0xff]
    %v6222 = vld [vmem:[#allocation6 + $0x190] sm:$0xff]
    %v6223 = vld [vmem:[#allocation6 + $0x198] sm:$0xff]
    %v6224 = vld [vmem:[#allocation6 + $0x1a0] sm:$0xff]
    %v6225 = vld [vmem:[#allocation6 + $0x1a8] sm:$0xff]
    %v6226 = vld [vmem:[#allocation6 + $0x1b0] sm:$0xff]
    %v6227 = vld [vmem:[#allocation6 + $0x1b8] sm:$0xff]
    %v6228 = vld [vmem:[#allocation6 + $0x1c0] sm:$0xff]
    %v6229 = vld [vmem:[#allocation6 + $0x1c8] sm:$0xff]
    %v6230 = vld [vmem:[#allocation6 + $0x1d0] sm:$0xff]
    %v6231 = vld [vmem:[#allocation6 + $0x1d8] sm:$0xff]
    %v6232 = vld [vmem:[#allocation6 + $0x1e0] sm:$0xff]
    %v6233 = vld [vmem:[#allocation6 + $0x1e8] sm:$0xff]
    %v6234 = vld [vmem:[#allocation6 + $0x1f0] sm:$0xff]
    %v6235 = vld [vmem:[#allocation6 + $0x1f8] sm:$0xff]
    %v6236 = vld [vmem:[#allocation6 + $0x200] sm:$0xff]
    %v6237 = vld [vmem:[#allocation6 + $0x208] sm:$0xff]
    %v6238 = vld [vmem:[#allocation6 + $0x210] sm:$0xff]
    %v6239 = vld [vmem:[#allocation6 + $0x218] sm:$0xff]
    %v6240 = vld [vmem:[#allocation6 + $0x220] sm:$0xff]
    %v6241 = vld [vmem:[#allocation6 + $0x228] sm:$0xff]
    %v6242 = vld [vmem:[#allocation6 + $0x230] sm:$0xff]
    %v6243 = vld [vmem:[#allocation6 + $0x238] sm:$0xff]
    %v6244 = vld [vmem:[#allocation6 + $0x240] sm:$0xff]
    %v6245 = vld [vmem:[#allocation6 + $0x248] sm:$0xff]
    %v6246 = vld [vmem:[#allocation6 + $0x250] sm:$0xff]
    %v6247 = vld [vmem:[#allocation6 + $0x258] sm:$0xff]
    %v6248 = vld [vmem:[#allocation6 + $0x260] sm:$0xff]
    %v6249 = vld [vmem:[#allocation6 + $0x268] sm:$0xff]
    %v6250 = vld [vmem:[#allocation6 + $0x270] sm:$0xff]
    %v6251 = vld [vmem:[#allocation6 + $0x278] sm:$0xff]
    %v6252 = vld [vmem:[#allocation6 + $0x280] sm:$0xff]
    %v6253 = vld [vmem:[#allocation6 + $0x288] sm:$0xff]
    %v6254 = vld [vmem:[#allocation6 + $0x290] sm:$0xff]
    %v6255 = vld [vmem:[#allocation6 + $0x298] sm:$0xff]
    %v6256 = vld [vmem:[#allocation6 + $0x2a0] sm:$0xff]
    %v6257 = vld [vmem:[#allocation6 + $0x2a8] sm:$0xff]
    %v6258 = vld [vmem:[#allocation6 + $0x2b0] sm:$0xff]
    %v6259 = vld [vmem:[#allocation6 + $0x2b8] sm:$0xff]
    %v6260 = vld [vmem:[#allocation6 + $0x2c0] sm:$0xff]
    %v6261 = vld [vmem:[#allocation6 + $0x2c8] sm:$0xff]
    %v6262 = vld [vmem:[#allocation6 + $0x2d0] sm:$0xff]
    %v6263 = vld [vmem:[#allocation6 + $0x2d8] sm:$0xff]
    %v6264 = vld [vmem:[#allocation6 + $0x2e0] sm:$0xff]
    %v6265 = vld [vmem:[#allocation6 + $0x2e8] sm:$0xff]
    %v6266 = vld [vmem:[#allocation6 + $0x2f0] sm:$0xff]
    %v6267 = vld [vmem:[#allocation6 + $0x2f8] sm:$0xff]
    %v6268 = vld [vmem:[#allocation6 + $0x300] sm:$0xff]
    %v6269 = vld [vmem:[#allocation6 + $0x308] sm:$0xff]
    %v6270 = vld [vmem:[#allocation6 + $0x310] sm:$0xff]
    %v6271 = vld [vmem:[#allocation6 + $0x318] sm:$0xff]
    %v6272 = vld [vmem:[#allocation6 + $0x320] sm:$0xff]
    %v6273 = vld [vmem:[#allocation6 + $0x328] sm:$0xff]
    %v6274 = vld [vmem:[#allocation6 + $0x330] sm:$0xff]
    %v6275 = vld [vmem:[#allocation6 + $0x338] sm:$0xff]
    %v6276 = vld [vmem:[#allocation6 + $0x340] sm:$0xff]
    %v6277 = vld [vmem:[#allocation6 + $0x348] sm:$0xff]
    %v6278 = vld [vmem:[#allocation6 + $0x350] sm:$0xff]
    %v6279 = vld [vmem:[#allocation6 + $0x358] sm:$0xff]
    %v6280 = vld [vmem:[#allocation6 + $0x360] sm:$0xff]
    %v6281 = vld [vmem:[#allocation6 + $0x368] sm:$0xff]
    %v6282 = vld [vmem:[#allocation6 + $0x370] sm:$0xff]
    %v6283 = vld [vmem:[#allocation6 + $0x378] sm:$0xff]
    %v6284 = vld [vmem:[#allocation6 + $0x380] sm:$0xff]
    %v6285 = vld [vmem:[#allocation6 + $0x388] sm:$0xff]
    %v6286 = vld [vmem:[#allocation6 + $0x390] sm:$0xff]
    %v6287 = vld [vmem:[#allocation6 + $0x398] sm:$0xff]
    %v6288 = vld [vmem:[#allocation6 + $0x3a0] sm:$0xff]
    %v6289 = vld [vmem:[#allocation6 + $0x3a8] sm:$0xff]
    %v6290 = vld [vmem:[#allocation6 + $0x3b0] sm:$0xff]
    %v6291 = vld [vmem:[#allocation6 + $0x3b8] sm:$0xff]
    %v6292 = vld [vmem:[#allocation6 + $0x3c0] sm:$0xff]
    %v6293 = vld [vmem:[#allocation6 + $0x3c8] sm:$0xff]
    %v6294 = vld [vmem:[#allocation6 + $0x3d0] sm:$0xff]
    %v6295 = vld [vmem:[#allocation6 + $0x3d8] sm:$0xff]
    %v6296 = vld [vmem:[#allocation6 + $0x3e0] sm:$0xff]
    %v6297 = vld [vmem:[#allocation6 + $0x3e8] sm:$0xff]
    %v6298 = vld [vmem:[#allocation6 + $0x3f0] sm:$0xff]
    %v6299 = vld [vmem:[#allocation6 + $0x3f8] sm:$0xff]
    %v6300 = vld [vmem:[#allocation7] sm:$0xf]
    %v6302 = vlaneseq
    %v6303 = vshrl.u32 %v6302, 7
    %v6304 = vsub.s32 0, %v6303
    %v6305 = vrot.slane %v6300, %v6304
    %v6306 = vlaneseq
    %v6307 = vshrl.u32 %v6306, 7
    %v6308 = vsub.s32 1, %v6307
    %v6309 = vrot.slane %v6300, %v6308
    %v6310 = vlaneseq
    %v6311 = vshrl.u32 %v6310, 7
    %v6312 = vsub.s32 2, %v6311
    %v6313 = vrot.slane %v6300, %v6312
    %v6314 = vlaneseq
    %v6315 = vshrl.u32 %v6314, 7
    %v6316 = vsub.s32 3, %v6315
    %v6317 = vrot.slane %v6300, %v6316
    %v6450 = vunpack.c.l.b16 %v6172
    %v6451 = vunpack.c.h.b16 %v6172
    %v6452 = vunpack.c.l.b16 %v6173
    %v6453 = vunpack.c.h.b16 %v6173
    %v6454 = vunpack.c.l.b16 %v6174
    %v6455 = vunpack.c.h.b16 %v6174
    %v6456 = vunpack.c.l.b16 %v6175
    %v6457 = vunpack.c.h.b16 %v6175
    %v6458 = vunpack.c.l.b16 %v6176
    %v6459 = vunpack.c.h.b16 %v6176
    %v6460 = vunpack.c.l.b16 %v6177
    %v6461 = vunpack.c.h.b16 %v6177
    %v6462 = vunpack.c.l.b16 %v6178
    %v6463 = vunpack.c.h.b16 %v6178
    %v6464 = vunpack.c.l.b16 %v6179
    %v6465 = vunpack.c.h.b16 %v6179
    %v6466 = vunpack.c.l.b16 %v6180
    %v6467 = vunpack.c.h.b16 %v6180
    %v6468 = vunpack.c.l.b16 %v6181
    %v6469 = vunpack.c.h.b16 %v6181
    %v6470 = vunpack.c.l.b16 %v6182
    %v6471 = vunpack.c.h.b16 %v6182
    %v6472 = vunpack.c.l.b16 %v6183
    %v6473 = vunpack.c.h.b16 %v6183
    %v6474 = vunpack.c.l.b16 %v6184
    %v6475 = vunpack.c.h.b16 %v6184
    %v6476 = vunpack.c.l.b16 %v6185
    %v6477 = vunpack.c.h.b16 %v6185
    %v6478 = vunpack.c.l.b16 %v6186
    %v6479 = vunpack.c.h.b16 %v6186
    %v6480 = vunpack.c.l.b16 %v6187
    %v6481 = vunpack.c.h.b16 %v6187
    %v6482 = vunpack.c.l.b16 %v6188
    %v6483 = vunpack.c.h.b16 %v6188
    %v6484 = vunpack.c.l.b16 %v6189
    %v6485 = vunpack.c.h.b16 %v6189
    %v6486 = vunpack.c.l.b16 %v6190
    %v6487 = vunpack.c.h.b16 %v6190
    %v6488 = vunpack.c.l.b16 %v6191
    %v6489 = vunpack.c.h.b16 %v6191
    %v6490 = vunpack.c.l.b16 %v6192
    %v6491 = vunpack.c.h.b16 %v6192
    %v6492 = vunpack.c.l.b16 %v6193
    %v6493 = vunpack.c.h.b16 %v6193
    %v6494 = vunpack.c.l.b16 %v6194
    %v6495 = vunpack.c.h.b16 %v6194
    %v6496 = vunpack.c.l.b16 %v6195
    %v6497 = vunpack.c.h.b16 %v6195
    %v6498 = vunpack.c.l.b16 %v6196
    %v6499 = vunpack.c.h.b16 %v6196
    %v6500 = vunpack.c.l.b16 %v6197
    %v6501 = vunpack.c.h.b16 %v6197
    %v6502 = vunpack.c.l.b16 %v6198
    %v6503 = vunpack.c.h.b16 %v6198
    %v6504 = vunpack.c.l.b16 %v6199
    %v6505 = vunpack.c.h.b16 %v6199
    %v6506 = vunpack.c.l.b16 %v6200
    %v6507 = vunpack.c.h.b16 %v6200
    %v6508 = vunpack.c.l.b16 %v6201
    %v6509 = vunpack.c.h.b16 %v6201
    %v6510 = vunpack.c.l.b16 %v6202
    %v6511 = vunpack.c.h.b16 %v6202
    %v6512 = vunpack.c.l.b16 %v6203
    %v6513 = vunpack.c.h.b16 %v6203
    %v6514 = vunpack.c.l.b16 %v6204
    %v6515 = vunpack.c.h.b16 %v6204
    %v6516 = vunpack.c.l.b16 %v6205
    %v6517 = vunpack.c.h.b16 %v6205
    %v6518 = vunpack.c.l.b16 %v6206
    %v6519 = vunpack.c.h.b16 %v6206
    %v6520 = vunpack.c.l.b16 %v6207
    %v6521 = vunpack.c.h.b16 %v6207
    %v6522 = vunpack.c.l.b16 %v6208
    %v6523 = vunpack.c.h.b16 %v6208
    %v6524 = vunpack.c.l.b16 %v6209
    %v6525 = vunpack.c.h.b16 %v6209
    %v6526 = vunpack.c.l.b16 %v6210
    %v6527 = vunpack.c.h.b16 %v6210
    %v6528 = vunpack.c.l.b16 %v6211
    %v6529 = vunpack.c.h.b16 %v6211
    %v6530 = vunpack.c.l.b16 %v6212
    %v6531 = vunpack.c.h.b16 %v6212
    %v6532 = vunpack.c.l.b16 %v6213
    %v6533 = vunpack.c.h.b16 %v6213
    %v6534 = vunpack.c.l.b16 %v6214
    %v6535 = vunpack.c.h.b16 %v6214
    %v6536 = vunpack.c.l.b16 %v6215
    %v6537 = vunpack.c.h.b16 %v6215
    %v6538 = vunpack.c.l.b16 %v6216
    %v6539 = vunpack.c.h.b16 %v6216
    %v6540 = vunpack.c.l.b16 %v6217
    %v6541 = vunpack.c.h.b16 %v6217
    %v6542 = vunpack.c.l.b16 %v6218
    %v6543 = vunpack.c.h.b16 %v6218
    %v6544 = vunpack.c.l.b16 %v6219
    %v6545 = vunpack.c.h.b16 %v6219
    %v6546 = vunpack.c.l.b16 %v6220
    %v6547 = vunpack.c.h.b16 %v6220
    %v6548 = vunpack.c.l.b16 %v6221
    %v6549 = vunpack.c.h.b16 %v6221
    %v6550 = vunpack.c.l.b16 %v6222
    %v6551 = vunpack.c.h.b16 %v6222
    %v6552 = vunpack.c.l.b16 %v6223
    %v6553 = vunpack.c.h.b16 %v6223
    %v6554 = vunpack.c.l.b16 %v6224
    %v6555 = vunpack.c.h.b16 %v6224
    %v6556 = vunpack.c.l.b16 %v6225
    %v6557 = vunpack.c.h.b16 %v6225
    %v6558 = vunpack.c.l.b16 %v6226
    %v6559 = vunpack.c.h.b16 %v6226
    %v6560 = vunpack.c.l.b16 %v6227
    %v6561 = vunpack.c.h.b16 %v6227
    %v6562 = vunpack.c.l.b16 %v6228
    %v6563 = vunpack.c.h.b16 %v6228
    %v6564 = vunpack.c.l.b16 %v6229
    %v6565 = vunpack.c.h.b16 %v6229
    %v6566 = vunpack.c.l.b16 %v6230
    %v6567 = vunpack.c.h.b16 %v6230
    %v6568 = vunpack.c.l.b16 %v6231
    %v6569 = vunpack.c.h.b16 %v6231
    %v6570 = vunpack.c.l.b16 %v6232
    %v6571 = vunpack.c.h.b16 %v6232
    %v6572 = vunpack.c.l.b16 %v6233
    %v6573 = vunpack.c.h.b16 %v6233
    %v6574 = vunpack.c.l.b16 %v6234
    %v6575 = vunpack.c.h.b16 %v6234
    %v6576 = vunpack.c.l.b16 %v6235
    %v6577 = vunpack.c.h.b16 %v6235
    %v6578 = vunpack.c.l.b16 %v6236
    %v6579 = vunpack.c.h.b16 %v6236
    %v6580 = vunpack.c.l.b16 %v6237
    %v6581 = vunpack.c.h.b16 %v6237
    %v6582 = vunpack.c.l.b16 %v6238
    %v6583 = vunpack.c.h.b16 %v6238
    %v6584 = vunpack.c.l.b16 %v6239
    %v6585 = vunpack.c.h.b16 %v6239
    %v6586 = vunpack.c.l.b16 %v6240
    %v6587 = vunpack.c.h.b16 %v6240
    %v6588 = vunpack.c.l.b16 %v6241
    %v6589 = vunpack.c.h.b16 %v6241
    %v6590 = vunpack.c.l.b16 %v6242
    %v6591 = vunpack.c.h.b16 %v6242
    %v6592 = vunpack.c.l.b16 %v6243
    %v6593 = vunpack.c.h.b16 %v6243
    %v6594 = vunpack.c.l.b16 %v6244
    %v6595 = vunpack.c.h.b16 %v6244
    %v6596 = vunpack.c.l.b16 %v6245
    %v6597 = vunpack.c.h.b16 %v6245
    %v6598 = vunpack.c.l.b16 %v6246
    %v6599 = vunpack.c.h.b16 %v6246
    %v6600 = vunpack.c.l.b16 %v6247
    %v6601 = vunpack.c.h.b16 %v6247
    %v6602 = vunpack.c.l.b16 %v6248
    %v6603 = vunpack.c.h.b16 %v6248
    %v6604 = vunpack.c.l.b16 %v6249
    %v6605 = vunpack.c.h.b16 %v6249
    %v6606 = vunpack.c.l.b16 %v6250
    %v6607 = vunpack.c.h.b16 %v6250
    %v6608 = vunpack.c.l.b16 %v6251
    %v6609 = vunpack.c.h.b16 %v6251
    %v6610 = vunpack.c.l.b16 %v6252
    %v6611 = vunpack.c.h.b16 %v6252
    %v6612 = vunpack.c.l.b16 %v6253
    %v6613 = vunpack.c.h.b16 %v6253
    %v6614 = vunpack.c.l.b16 %v6254
    %v6615 = vunpack.c.h.b16 %v6254
    %v6616 = vunpack.c.l.b16 %v6255
    %v6617 = vunpack.c.h.b16 %v6255
    %v6618 = vunpack.c.l.b16 %v6256
    %v6619 = vunpack.c.h.b16 %v6256
    %v6620 = vunpack.c.l.b16 %v6257
    %v6621 = vunpack.c.h.b16 %v6257
    %v6622 = vunpack.c.l.b16 %v6258
    %v6623 = vunpack.c.h.b16 %v6258
    %v6624 = vunpack.c.l.b16 %v6259
    %v6625 = vunpack.c.h.b16 %v6259
    %v6626 = vunpack.c.l.b16 %v6260
    %v6627 = vunpack.c.h.b16 %v6260
    %v6628 = vunpack.c.l.b16 %v6261
    %v6629 = vunpack.c.h.b16 %v6261
    %v6630 = vunpack.c.l.b16 %v6262
    %v6631 = vunpack.c.h.b16 %v6262
    %v6632 = vunpack.c.l.b16 %v6263
    %v6633 = vunpack.c.h.b16 %v6263
    %v6634 = vunpack.c.l.b16 %v6264
    %v6635 = vunpack.c.h.b16 %v6264
    %v6636 = vunpack.c.l.b16 %v6265
    %v6637 = vunpack.c.h.b16 %v6265
    %v6638 = vunpack.c.l.b16 %v6266
    %v6639 = vunpack.c.h.b16 %v6266
    %v6640 = vunpack.c.l.b16 %v6267
    %v6641 = vunpack.c.h.b16 %v6267
    %v6642 = vunpack.c.l.b16 %v6268
    %v6643 = vunpack.c.h.b16 %v6268
    %v6644 = vunpack.c.l.b16 %v6269
    %v6645 = vunpack.c.h.b16 %v6269
    %v6646 = vunpack.c.l.b16 %v6270
    %v6647 = vunpack.c.h.b16 %v6270
    %v6648 = vunpack.c.l.b16 %v6271
    %v6649 = vunpack.c.h.b16 %v6271
    %v6650 = vunpack.c.l.b16 %v6272
    %v6651 = vunpack.c.h.b16 %v6272
    %v6652 = vunpack.c.l.b16 %v6273
    %v6653 = vunpack.c.h.b16 %v6273
    %v6654 = vunpack.c.l.b16 %v6274
    %v6655 = vunpack.c.h.b16 %v6274
    %v6656 = vunpack.c.l.b16 %v6275
    %v6657 = vunpack.c.h.b16 %v6275
    %v6658 = vunpack.c.l.b16 %v6276
    %v6659 = vunpack.c.h.b16 %v6276
    %v6660 = vunpack.c.l.b16 %v6277
    %v6661 = vunpack.c.h.b16 %v6277
    %v6662 = vunpack.c.l.b16 %v6278
    %v6663 = vunpack.c.h.b16 %v6278
    %v6664 = vunpack.c.l.b16 %v6279
    %v6665 = vunpack.c.h.b16 %v6279
    %v6666 = vunpack.c.l.b16 %v6280
    %v6667 = vunpack.c.h.b16 %v6280
    %v6668 = vunpack.c.l.b16 %v6281
    %v6669 = vunpack.c.h.b16 %v6281
    %v6670 = vunpack.c.l.b16 %v6282
    %v6671 = vunpack.c.h.b16 %v6282
    %v6672 = vunpack.c.l.b16 %v6283
    %v6673 = vunpack.c.h.b16 %v6283
    %v6674 = vunpack.c.l.b16 %v6284
    %v6675 = vunpack.c.h.b16 %v6284
    %v6676 = vunpack.c.l.b16 %v6285
    %v6677 = vunpack.c.h.b16 %v6285
    %v6678 = vunpack.c.l.b16 %v6286
    %v6679 = vunpack.c.h.b16 %v6286
    %v6680 = vunpack.c.l.b16 %v6287
    %v6681 = vunpack.c.h.b16 %v6287
    %v6682 = vunpack.c.l.b16 %v6288
    %v6683 = vunpack.c.h.b16 %v6288
    %v6684 = vunpack.c.l.b16 %v6289
    %v6685 = vunpack.c.h.b16 %v6289
    %v6686 = vunpack.c.l.b16 %v6290
    %v6687 = vunpack.c.h.b16 %v6290
    %v6688 = vunpack.c.l.b16 %v6291
    %v6689 = vunpack.c.h.b16 %v6291
    %v6690 = vunpack.c.l.b16 %v6292
    %v6691 = vunpack.c.h.b16 %v6292
    %v6692 = vunpack.c.l.b16 %v6293
    %v6693 = vunpack.c.h.b16 %v6293
    %v6694 = vunpack.c.l.b16 %v6294
    %v6695 = vunpack.c.h.b16 %v6294
    %v6696 = vunpack.c.l.b16 %v6295
    %v6697 = vunpack.c.h.b16 %v6295
    %v6698 = vunpack.c.l.b16 %v6296
    %v6699 = vunpack.c.h.b16 %v6296
    %v6700 = vunpack.c.l.b16 %v6297
    %v6701 = vunpack.c.h.b16 %v6297
    %v6702 = vunpack.c.l.b16 %v6298
    %v6703 = vunpack.c.h.b16 %v6298
    %v6704 = vunpack.c.l.b16 %v6299
    %v6705 = vunpack.c.h.b16 %v6299
    %v6706 = vpack.c.b16 %v6454, %v6450
    %v6707 = vpack.c.b16 %v6455, %v6451
    %v6708 = vpack.c.b16 %v6456, %v6452
    %v6709 = vpack.c.b16 %v6457, %v6453
    %v6710 = vpack.c.b16 %v6462, %v6458
    %v6711 = vpack.c.b16 %v6463, %v6459
    %v6712 = vpack.c.b16 %v6464, %v6460
    %v6713 = vpack.c.b16 %v6465, %v6461
    %v6714 = vpack.c.b16 %v6470, %v6466
    %v6715 = vpack.c.b16 %v6471, %v6467
    %v6716 = vpack.c.b16 %v6472, %v6468
    %v6717 = vpack.c.b16 %v6473, %v6469
    %v6718 = vpack.c.b16 %v6478, %v6474
    %v6719 = vpack.c.b16 %v6479, %v6475
    %v6720 = vpack.c.b16 %v6480, %v6476
    %v6721 = vpack.c.b16 %v6481, %v6477
    %v6722 = vpack.c.b16 %v6486, %v6482
    %v6723 = vpack.c.b16 %v6487, %v6483
    %v6724 = vpack.c.b16 %v6488, %v6484
    %v6725 = vpack.c.b16 %v6489, %v6485
    %v6726 = vpack.c.b16 %v6494, %v6490
    %v6727 = vpack.c.b16 %v6495, %v6491
    %v6728 = vpack.c.b16 %v6496, %v6492
    %v6729 = vpack.c.b16 %v6497, %v6493
    %v6730 = vpack.c.b16 %v6502, %v6498
    %v6731 = vpack.c.b16 %v6503, %v6499
    %v6732 = vpack.c.b16 %v6504, %v6500
    %v6733 = vpack.c.b16 %v6505, %v6501
    %v6734 = vpack.c.b16 %v6510, %v6506
    %v6735 = vpack.c.b16 %v6511, %v6507
    %v6736 = vpack.c.b16 %v6512, %v6508
    %v6737 = vpack.c.b16 %v6513, %v6509
    %v6738 = vpack.c.b16 %v6518, %v6514
    %v6739 = vpack.c.b16 %v6519, %v6515
    %v6740 = vpack.c.b16 %v6520, %v6516
    %v6741 = vpack.c.b16 %v6521, %v6517
    %v6742 = vpack.c.b16 %v6526, %v6522
    %v6743 = vpack.c.b16 %v6527, %v6523
    %v6744 = vpack.c.b16 %v6528, %v6524
    %v6745 = vpack.c.b16 %v6529, %v6525
    %v6746 = vpack.c.b16 %v6534, %v6530
    %v6747 = vpack.c.b16 %v6535, %v6531
    %v6748 = vpack.c.b16 %v6536, %v6532
    %v6749 = vpack.c.b16 %v6537, %v6533
    %v6750 = vpack.c.b16 %v6542, %v6538
    %v6751 = vpack.c.b16 %v6543, %v6539
    %v6752 = vpack.c.b16 %v6544, %v6540
    %v6753 = vpack.c.b16 %v6545, %v6541
    %v6754 = vpack.c.b16 %v6550, %v6546
    %v6755 = vpack.c.b16 %v6551, %v6547
    %v6756 = vpack.c.b16 %v6552, %v6548
    %v6757 = vpack.c.b16 %v6553, %v6549
    %v6758 = vpack.c.b16 %v6558, %v6554
    %v6759 = vpack.c.b16 %v6559, %v6555
    %v6760 = vpack.c.b16 %v6560, %v6556
    %v6761 = vpack.c.b16 %v6561, %v6557
    %v6762 = vpack.c.b16 %v6566, %v6562
    %v6763 = vpack.c.b16 %v6567, %v6563
    %v6764 = vpack.c.b16 %v6568, %v6564
    %v6765 = vpack.c.b16 %v6569, %v6565
    %v6766 = vpack.c.b16 %v6574, %v6570
    %v6767 = vpack.c.b16 %v6575, %v6571
    %v6768 = vpack.c.b16 %v6576, %v6572
    %v6769 = vpack.c.b16 %v6577, %v6573
    %v6770 = vpack.c.b16 %v6582, %v6578
    %v6771 = vpack.c.b16 %v6583, %v6579
    %v6772 = vpack.c.b16 %v6584, %v6580
    %v6773 = vpack.c.b16 %v6585, %v6581
    %v6774 = vpack.c.b16 %v6590, %v6586
    %v6775 = vpack.c.b16 %v6591, %v6587
    %v6776 = vpack.c.b16 %v6592, %v6588
    %v6777 = vpack.c.b16 %v6593, %v6589
    %v6778 = vpack.c.b16 %v6598, %v6594
    %v6779 = vpack.c.b16 %v6599, %v6595
    %v6780 = vpack.c.b16 %v6600, %v6596
    %v6781 = vpack.c.b16 %v6601, %v6597
    %v6782 = vpack.c.b16 %v6606, %v6602
    %v6783 = vpack.c.b16 %v6607, %v6603
    %v6784 = vpack.c.b16 %v6608, %v6604
    %v6785 = vpack.c.b16 %v6609, %v6605
    %v6786 = vpack.c.b16 %v6614, %v6610
    %v6787 = vpack.c.b16 %v6615, %v6611
    %v6788 = vpack.c.b16 %v6616, %v6612
    %v6789 = vpack.c.b16 %v6617, %v6613
    %v6790 = vpack.c.b16 %v6622, %v6618
    %v6791 = vpack.c.b16 %v6623, %v6619
    %v6792 = vpack.c.b16 %v6624, %v6620
    %v6793 = vpack.c.b16 %v6625, %v6621
    %v6794 = vpack.c.b16 %v6630, %v6626
    %v6795 = vpack.c.b16 %v6631, %v6627
    %v6796 = vpack.c.b16 %v6632, %v6628
    %v6797 = vpack.c.b16 %v6633, %v6629
    %v6798 = vpack.c.b16 %v6638, %v6634
    %v6799 = vpack.c.b16 %v6639, %v6635
    %v6800 = vpack.c.b16 %v6640, %v6636
    %v6801 = vpack.c.b16 %v6641, %v6637
    %v6802 = vpack.c.b16 %v6646, %v6642
    %v6803 = vpack.c.b16 %v6647, %v6643
    %v6804 = vpack.c.b16 %v6648, %v6644
    %v6805 = vpack.c.b16 %v6649, %v6645
    %v6806 = vpack.c.b16 %v6654, %v6650
    %v6807 = vpack.c.b16 %v6655, %v6651
    %v6808 = vpack.c.b16 %v6656, %v6652
    %v6809 = vpack.c.b16 %v6657, %v6653
    %v6810 = vpack.c.b16 %v6662, %v6658
    %v6811 = vpack.c.b16 %v6663, %v6659
    %v6812 = vpack.c.b16 %v6664, %v6660
    %v6813 = vpack.c.b16 %v6665, %v6661
    %v6814 = vpack.c.b16 %v6670, %v6666
    %v6815 = vpack.c.b16 %v6671, %v6667
    %v6816 = vpack.c.b16 %v6672, %v6668
    %v6817 = vpack.c.b16 %v6673, %v6669
    %v6818 = vpack.c.b16 %v6678, %v6674
    %v6819 = vpack.c.b16 %v6679, %v6675
    %v6820 = vpack.c.b16 %v6680, %v6676
    %v6821 = vpack.c.b16 %v6681, %v6677
    %v6822 = vpack.c.b16 %v6686, %v6682
    %v6823 = vpack.c.b16 %v6687, %v6683
    %v6824 = vpack.c.b16 %v6688, %v6684
    %v6825 = vpack.c.b16 %v6689, %v6685
    %v6826 = vpack.c.b16 %v6694, %v6690
    %v6827 = vpack.c.b16 %v6695, %v6691
    %v6828 = vpack.c.b16 %v6696, %v6692
    %v6829 = vpack.c.b16 %v6697, %v6693
    %v6830 = vpack.c.b16 %v6702, %v6698
    %v6831 = vpack.c.b16 %v6703, %v6699
    %v6832 = vpack.c.b16 %v6704, %v6700
    %v6833 = vpack.c.b16 %v6705, %v6701
    %6962 = vmatprep.subr.bf16.mxu0 %v6707
    %6963 = vmatpush1.bf16.msra.mxu0 %v6706
    %6964 = vmatprep.subr.bf16.mxu0 %v6711
    %6965 = vmatpush1.bf16.msra.mxu0 %v6710
    %6966 = vmatprep.subr.bf16.mxu0 %v6715
    %6967 = vmatpush1.bf16.msra.mxu0 %v6714
    %6968 = vmatprep.subr.bf16.mxu0 %v6719
    %6969 = vmatpush1.bf16.msra.mxu0 %v6718
    %6970 = vmatprep.subr.bf16.mxu0 %v6723
    %6971 = vmatpush1.bf16.msra.mxu0 %v6722
    %6972 = vmatprep.subr.bf16.mxu0 %v6727
    %6973 = vmatpush1.bf16.msra.mxu0 %v6726
    %6974 = vmatprep.subr.bf16.mxu0 %v6731
    %6975 = vmatpush1.bf16.msra.mxu0 %v6730
    %6976 = vmatprep.subr.bf16.mxu0 %v6735
    %6977 = vmatpush1.bf16.msra.mxu0 %v6734
    %6978 = vmatprep.subr.bf16.mxu0 %v6739
    %6979 = vmatpush1.bf16.msra.mxu0 %v6738
    %6980 = vmatprep.subr.bf16.mxu0 %v6743
    %6981 = vmatpush1.bf16.msra.mxu0 %v6742
    %6982 = vmatprep.subr.bf16.mxu0 %v6747
    %6983 = vmatpush1.bf16.msra.mxu0 %v6746
    %6984 = vmatprep.subr.bf16.mxu0 %v6751
    %6985 = vmatpush1.bf16.msra.mxu0 %v6750
    %6986 = vmatprep.subr.bf16.mxu0 %v6755
    %6987 = vmatpush1.bf16.msra.mxu0 %v6754
    %6988 = vmatprep.subr.bf16.mxu0 %v6759
    %6989 = vmatpush1.bf16.msra.mxu0 %v6758
    %6990 = vmatprep.subr.bf16.mxu0 %v6763
    %6991 = vmatpush1.bf16.msra.mxu0 %v6762
    %6992 = vmatprep.subr.bf16.mxu0 %v6767
    %6993 = vmatpush1.bf16.msra.mxu0 %v6766
    %6994 = vmatprep.mubr.bf16.mxu0 %v6169
    %6995 = vmatmul.mubr.bf16.gmra.mrb[0].mxu0 %v6168
    %v6996 = vpop.f32.mrb[0].mxu0
    %v6997 = vadd.f32 %v6305, %v6996
    %v6998 = vpop.f32.mrb[0].mxu0
    %v6999 = vadd.f32 %v6309, %v6998
    %v7000 = vpop.f32.mrb[0].mxu0
    %v7001 = vpop.f32.mrb[0].mxu0
    %7002 = vdwg.mxu0
    %7003 = vmatprep.subr.bf16.mxu0 %v6771
    %7004 = vmatpush1.bf16.msra.mxu0 %v6770
    %7005 = vmatprep.subr.bf16.mxu0 %v6775
    %7006 = vmatpush1.bf16.msra.mxu0 %v6774
    %7007 = vmatprep.subr.bf16.mxu0 %v6779
    %7008 = vmatpush1.bf16.msra.mxu0 %v6778
    %7009 = vmatprep.subr.bf16.mxu0 %v6783
    %7010 = vmatpush1.bf16.msra.mxu0 %v6782
    %7011 = vmatprep.subr.bf16.mxu0 %v6787
    %7012 = vmatpush1.bf16.msra.mxu0 %v6786
    %7013 = vmatprep.subr.bf16.mxu0 %v6791
    %7014 = vmatpush1.bf16.msra.mxu0 %v6790
    %7015 = vmatprep.subr.bf16.mxu0 %v6795
    %7016 = vmatpush1.bf16.msra.mxu0 %v6794
    %7017 = vmatprep.subr.bf16.mxu0 %v6799
    %7018 = vmatpush1.bf16.msra.mxu0 %v6798
    %7019 = vmatprep.subr.bf16.mxu0 %v6803
    %7020 = vmatpush1.bf16.msra.mxu0 %v6802
    %7021 = vmatprep.subr.bf16.mxu0 %v6807
    %7022 = vmatpush1.bf16.msra.mxu0 %v6806
    %7023 = vmatprep.subr.bf16.mxu0 %v6811
    %7024 = vmatpush1.bf16.msra.mxu0 %v6810
    %7025 = vmatprep.subr.bf16.mxu0 %v6815
    %7026 = vmatpush1.bf16.msra.mxu0 %v6814
    %7027 = vmatprep.subr.bf16.mxu0 %v6819
    %7028 = vmatpush1.bf16.msra.mxu0 %v6818
    %7029 = vmatprep.subr.bf16.mxu0 %v6823
    %7030 = vmatpush1.bf16.msra.mxu0 %v6822
    %7031 = vmatprep.subr.bf16.mxu0 %v6827
    %7032 = vmatpush1.bf16.msra.mxu0 %v6826
    %7033 = vmatprep.subr.bf16.mxu0 %v6831
    %7034 = vmatpush1.bf16.msra.mxu0 %v6830
    %7035 = vmatprep.mubr.bf16.mxu0 %v6171
    %7036 = vmatmul.mubr.bf16.gmra.mrb[0].mxu0 %v6170
    %v7037 = vpop.f32.mrb[0].mxu0
    %v7038 = vadd.f32 %v6997, %v7037
    %v7039 = vpop.f32.mrb[0].mxu0
    %v7040 = vadd.f32 %v6999, %v7039
    %v7041 = vpop.f32.mrb[0].mxu0
    %v7042 = vpop.f32.mrb[0].mxu0
    %7043 = vdwg.mxu0
    %7044 = vmatprep.subr.bf16.mxu0 %v6709
    %7045 = vmatpush1.bf16.msra.mxu0 %v6708
    %7046 = vmatprep.subr.bf16.mxu0 %v6713
    %7047 = vmatpush1.bf16.msra.mxu0 %v6712
    %7048 = vmatprep.subr.bf16.mxu0 %v6717
    %7049 = vmatpush1.bf16.msra.mxu0 %v6716
    %7050 = vmatprep.subr.bf16.mxu0 %v6721
    %7051 = vmatpush1.bf16.msra.mxu0 %v6720
    %7052 = vmatprep.subr.bf16.mxu0 %v6725
    %7053 = vmatpush1.bf16.msra.mxu0 %v6724
    %7054 = vmatprep.subr.bf16.mxu0 %v6729
    %7055 = vmatpush1.bf16.msra.mxu0 %v6728
    %7056 = vmatprep.subr.bf16.mxu0 %v6733
    %7057 = vmatpush1.bf16.msra.mxu0 %v6732
    %7058 = vmatprep.subr.bf16.mxu0 %v6737
    %7059 = vmatpush1.bf16.msra.mxu0 %v6736
    %7060 = vmatprep.subr.bf16.mxu0 %v6741
    %7061 = vmatpush1.bf16.msra.mxu0 %v6740
    %7062 = vmatprep.subr.bf16.mxu0 %v6745
    %7063 = vmatpush1.bf16.msra.mxu0 %v6744
    %7064 = vmatprep.subr.bf16.mxu0 %v6749
    %7065 = vmatpush1.bf16.msra.mxu0 %v6748
    %7066 = vmatprep.subr.bf16.mxu0 %v6753
    %7067 = vmatpush1.bf16.msra.mxu0 %v6752
    %7068 = vmatprep.subr.bf16.mxu0 %v6757
    %7069 = vmatpush1.bf16.msra.mxu0 %v6756
    %7070 = vmatprep.subr.bf16.mxu0 %v6761
    %7071 = vmatpush1.bf16.msra.mxu0 %v6760
    %7072 = vmatprep.subr.bf16.mxu0 %v6765
    %7073 = vmatpush1.bf16.msra.mxu0 %v6764
    %7074 = vmatprep.subr.bf16.mxu0 %v6769
    %7075 = vmatpush1.bf16.msra.mxu0 %v6768
    %7076 = vmatprep.mubr.bf16.mxu0 %v6169
    %7077 = vmatmul.mubr.bf16.gmra.mrb[0].mxu0 %v6168
    %v7078 = vpop.f32.mrb[0].mxu0
    %v7079 = vadd.f32 %v6313, %v7078
    %v7080 = vpop.f32.mrb[0].mxu0
    %v7081 = vadd.f32 %v6317, %v7080
    %v7082 = vpop.f32.mrb[0].mxu0
    %v7083 = vpop.f32.mrb[0].mxu0
    %7084 = vdwg.mxu0
    %7085 = vmatprep.subr.bf16.mxu0 %v6773
    %7086 = vmatpush1.bf16.msra.mxu0 %v6772
    %7087 = vmatprep.subr.bf16.mxu0 %v6777
    %7088 = vmatpush1.bf16.msra.mxu0 %v6776
    %7089 = vmatprep.subr.bf16.mxu0 %v6781
    %7090 = vmatpush1.bf16.msra.mxu0 %v6780
    %7091 = vmatprep.subr.bf16.mxu0 %v6785
    %7092 = vmatpush1.bf16.msra.mxu0 %v6784
    %7093 = vmatprep.subr.bf16.mxu0 %v6789
    %7094 = vmatpush1.bf16.msra.mxu0 %v6788
    %7095 = vmatprep.subr.bf16.mxu0 %v6793
    %7096 = vmatpush1.bf16.msra.mxu0 %v6792
    %7097 = vmatprep.subr.bf16.mxu0 %v6797
    %7098 = vmatpush1.bf16.msra.mxu0 %v6796
    %7099 = vmatprep.subr.bf16.mxu0 %v6801
    %7100 = vmatpush1.bf16.msra.mxu0 %v6800
    %7101 = vmatprep.subr.bf16.mxu0 %v6805
    %7102 = vmatpush1.bf16.msra.mxu0 %v6804
    %7103 = vmatprep.subr.bf16.mxu0 %v6809
    %7104 = vmatpush1.bf16.msra.mxu0 %v6808
    %7105 = vmatprep.subr.bf16.mxu0 %v6813
    %7106 = vmatpush1.bf16.msra.mxu0 %v6812
    %7107 = vmatprep.subr.bf16.mxu0 %v6817
    %7108 = vmatpush1.bf16.msra.mxu0 %v6816
    %7109 = vmatprep.subr.bf16.mxu0 %v6821
    %7110 = vmatpush1.bf16.msra.mxu0 %v6820
    %7111 = vmatprep.subr.bf16.mxu0 %v6825
    %7112 = vmatpush1.bf16.msra.mxu0 %v6824
    %7113 = vmatprep.subr.bf16.mxu0 %v6829
    %7114 = vmatpush1.bf16.msra.mxu0 %v6828
    %7115 = vmatprep.subr.bf16.mxu0 %v6833
    %7116 = vmatpush1.bf16.msra.mxu0 %v6832
    %7117 = vmatprep.mubr.bf16.mxu0 %v6171
    %7118 = vmatmul.mubr.bf16.gmra.mrb[0].mxu0 %v6170
    %v7119 = vpop.f32.mrb[0].mxu0
    %v7120 = vadd.f32 %v7079, %v7119
    %v7121 = vpop.f32.mrb[0].mxu0
    %v7122 = vadd.f32 %v7081, %v7121
    %v7123 = vpop.f32.mrb[0].mxu0
    %v7124 = vpop.f32.mrb[0].mxu0
    %7125 = vdwg.mxu0
    %v7126 = vmax.f32 %v7038, 0.0
    %v7127 = vmax.f32 %v7040, 0.0
    %v7128 = vmax.f32 %v7120, 0.0
    %v7129 = vmax.f32 %v7122, 0.0
    %v7130 = vpack.c.bf16 %v7126, %v7126
    %v7131 = vpack.c.bf16 %v7127, %v7127
    %v7132 = vpack.c.bf16 %v7128, %v7128
    %v7133 = vpack.c.bf16 %v7129, %v7129
    %v7134 = vld [vmem:[#allocation9] sm:$0xf]
    %v7135 = vld [vmem:[#allocation9 + $0x4] sm:$0xf]
    %v7136 = vld [vmem:[#allocation9 + $0x8] sm:$0xf]
    %v7137 = vld [vmem:[#allocation9 + $0xc] sm:$0xf]
    %v7138 = vld [vmem:[#allocation9 + $0x10] sm:$0xf]
    %v7139 = vld [vmem:[#allocation9 + $0x14] sm:$0xf]
    %v7140 = vld [vmem:[#allocation9 + $0x18] sm:$0xf]
    %v7141 = vld [vmem:[#allocation9 + $0x1c] sm:$0xf]
    %v7142 = vld [vmem:[#allocation9 + $0x20] sm:$0xf]
    %v7143 = vld [vmem:[#allocation9 + $0x24] sm:$0xf]
    %v7144 = vld [vmem:[#allocation9 + $0x28] sm:$0xf]
    %v7145 = vld [vmem:[#allocation9 + $0x2c] sm:$0xf]
    %v7146 = vld [vmem:[#allocation9 + $0x30] sm:$0xf]
    %v7147 = vld [vmem:[#allocation9 + $0x34] sm:$0xf]
    %v7148 = vld [vmem:[#allocation9 + $0x38] sm:$0xf]
    %v7149 = vld [vmem:[#allocation9 + $0x3c] sm:$0xf]
    %v7150 = vld [vmem:[#allocation9 + $0x40] sm:$0xf]
    %v7151 = vld [vmem:[#allocation9 + $0x44] sm:$0xf]
    %v7152 = vld [vmem:[#allocation9 + $0x48] sm:$0xf]
    %v7153 = vld [vmem:[#allocation9 + $0x4c] sm:$0xf]
    %v7154 = vld [vmem:[#allocation9 + $0x50] sm:$0xf]
    %v7155 = vld [vmem:[#allocation9 + $0x54] sm:$0xf]
    %v7156 = vld [vmem:[#allocation9 + $0x58] sm:$0xf]
    %v7157 = vld [vmem:[#allocation9 + $0x5c] sm:$0xf]
    %v7158 = vld [vmem:[#allocation9 + $0x60] sm:$0xf]
    %v7159 = vld [vmem:[#allocation9 + $0x64] sm:$0xf]
    %v7160 = vld [vmem:[#allocation9 + $0x68] sm:$0xf]
    %v7161 = vld [vmem:[#allocation9 + $0x6c] sm:$0xf]
    %v7162 = vld [vmem:[#allocation9 + $0x70] sm:$0xf]
    %v7163 = vld [vmem:[#allocation9 + $0x74] sm:$0xf]
    %v7164 = vld [vmem:[#allocation9 + $0x78] sm:$0xf]
    %v7165 = vld [vmem:[#allocation9 + $0x7c] sm:$0xf]
    %v7166 = vld [vmem:[#allocation9 + $0x80] sm:$0xf]
    %v7167 = vld [vmem:[#allocation9 + $0x84] sm:$0xf]
    %v7168 = vld [vmem:[#allocation9 + $0x88] sm:$0xf]
    %v7169 = vld [vmem:[#allocation9 + $0x8c] sm:$0xf]
    %v7170 = vld [vmem:[#allocation9 + $0x90] sm:$0xf]
    %v7171 = vld [vmem:[#allocation9 + $0x94] sm:$0xf]
    %v7172 = vld [vmem:[#allocation9 + $0x98] sm:$0xf]
    %v7173 = vld [vmem:[#allocation9 + $0x9c] sm:$0xf]
    %v7174 = vld [vmem:[#allocation9 + $0xa0] sm:$0xf]
    %v7175 = vld [vmem:[#allocation9 + $0xa4] sm:$0xf]
    %v7176 = vld [vmem:[#allocation9 + $0xa8] sm:$0xf]
    %v7177 = vld [vmem:[#allocation9 + $0xac] sm:$0xf]
    %v7178 = vld [vmem:[#allocation9 + $0xb0] sm:$0xf]
    %v7179 = vld [vmem:[#allocation9 + $0xb4] sm:$0xf]
    %v7180 = vld [vmem:[#allocation9 + $0xb8] sm:$0xf]
    %v7181 = vld [vmem:[#allocation9 + $0xbc] sm:$0xf]
    %v7182 = vld [vmem:[#allocation9 + $0xc0] sm:$0xf]
    %v7183 = vld [vmem:[#allocation9 + $0xc4] sm:$0xf]
    %v7184 = vld [vmem:[#allocation9 + $0xc8] sm:$0xf]
    %v7185 = vld [vmem:[#allocation9 + $0xcc] sm:$0xf]
    %v7186 = vld [vmem:[#allocation9 + $0xd0] sm:$0xf]
    %v7187 = vld [vmem:[#allocation9 + $0xd4] sm:$0xf]
    %v7188 = vld [vmem:[#allocation9 + $0xd8] sm:$0xf]
    %v7189 = vld [vmem:[#allocation9 + $0xdc] sm:$0xf]
    %v7190 = vld [vmem:[#allocation9 + $0xe0] sm:$0xf]
    %v7191 = vld [vmem:[#allocation9 + $0xe4] sm:$0xf]
    %v7192 = vld [vmem:[#allocation9 + $0xe8] sm:$0xf]
    %v7193 = vld [vmem:[#allocation9 + $0xec] sm:$0xf]
    %v7194 = vld [vmem:[#allocation9 + $0xf0] sm:$0xf]
    %v7195 = vld [vmem:[#allocation9 + $0xf4] sm:$0xf]
    %v7196 = vld [vmem:[#allocation9 + $0xf8] sm:$0xf]
    %v7197 = vld [vmem:[#allocation9 + $0xfc] sm:$0xf]
    %v7198 = vld [vmem:[#allocation10] sm:$0x1]
    %v7200 = vlaneseq
    %v7201 = vshrl.u32 %v7200, 7
    %v7202 = vsub.s32 0, %v7201
    %v7203 = vrot.slane %v7198, %v7202
    %v7269 = vunpack.c.l.b16 %v7134
    %v7270 = vunpack.c.l.b16 %v7135
    %v7271 = vunpack.c.l.b16 %v7136
    %v7272 = vunpack.c.l.b16 %v7137
    %v7273 = vunpack.c.l.b16 %v7138
    %v7274 = vunpack.c.l.b16 %v7139
    %v7275 = vunpack.c.l.b16 %v7140
    %v7276 = vunpack.c.l.b16 %v7141
    %v7277 = vunpack.c.l.b16 %v7142
    %v7278 = vunpack.c.l.b16 %v7143
    %v7279 = vunpack.c.l.b16 %v7144
    %v7280 = vunpack.c.l.b16 %v7145
    %v7281 = vunpack.c.l.b16 %v7146
    %v7282 = vunpack.c.l.b16 %v7147
    %v7283 = vunpack.c.l.b16 %v7148
    %v7284 = vunpack.c.l.b16 %v7149
    %v7285 = vunpack.c.l.b16 %v7150
    %v7286 = vunpack.c.l.b16 %v7151
    %v7287 = vunpack.c.l.b16 %v7152
    %v7288 = vunpack.c.l.b16 %v7153
    %v7289 = vunpack.c.l.b16 %v7154
    %v7290 = vunpack.c.l.b16 %v7155
    %v7291 = vunpack.c.l.b16 %v7156
    %v7292 = vunpack.c.l.b16 %v7157
    %v7293 = vunpack.c.l.b16 %v7158
    %v7294 = vunpack.c.l.b16 %v7159
    %v7295 = vunpack.c.l.b16 %v7160
    %v7296 = vunpack.c.l.b16 %v7161
    %v7297 = vunpack.c.l.b16 %v7162
    %v7298 = vunpack.c.l.b16 %v7163
    %v7299 = vunpack.c.l.b16 %v7164
    %v7300 = vunpack.c.l.b16 %v7165
    %v7301 = vunpack.c.l.b16 %v7166
    %v7302 = vunpack.c.l.b16 %v7167
    %v7303 = vunpack.c.l.b16 %v7168
    %v7304 = vunpack.c.l.b16 %v7169
    %v7305 = vunpack.c.l.b16 %v7170
    %v7306 = vunpack.c.l.b16 %v7171
    %v7307 = vunpack.c.l.b16 %v7172
    %v7308 = vunpack.c.l.b16 %v7173
    %v7309 = vunpack.c.l.b16 %v7174
    %v7310 = vunpack.c.l.b16 %v7175
    %v7311 = vunpack.c.l.b16 %v7176
    %v7312 = vunpack.c.l.b16 %v7177
    %v7313 = vunpack.c.l.b16 %v7178
    %v7314 = vunpack.c.l.b16 %v7179
    %v7315 = vunpack.c.l.b16 %v7180
    %v7316 = vunpack.c.l.b16 %v7181
    %v7317 = vunpack.c.l.b16 %v7182
    %v7318 = vunpack.c.l.b16 %v7183
    %v7319 = vunpack.c.l.b16 %v7184
    %v7320 = vunpack.c.l.b16 %v7185
    %v7321 = vunpack.c.l.b16 %v7186
    %v7322 = vunpack.c.l.b16 %v7187
    %v7323 = vunpack.c.l.b16 %v7188
    %v7324 = vunpack.c.l.b16 %v7189
    %v7325 = vunpack.c.l.b16 %v7190
    %v7326 = vunpack.c.l.b16 %v7191
    %v7327 = vunpack.c.l.b16 %v7192
    %v7328 = vunpack.c.l.b16 %v7193
    %v7329 = vunpack.c.l.b16 %v7194
    %v7330 = vunpack.c.l.b16 %v7195
    %v7331 = vunpack.c.l.b16 %v7196
    %v7332 = vunpack.c.l.b16 %v7197
    %v7333 = vpack.c.b16 %v7270, %v7269
    %v7334 = vpack.c.b16 %v7272, %v7271
    %v7335 = vpack.c.b16 %v7274, %v7273
    %v7336 = vpack.c.b16 %v7276, %v7275
    %v7337 = vpack.c.b16 %v7278, %v7277
    %v7338 = vpack.c.b16 %v7280, %v7279
    %v7339 = vpack.c.b16 %v7282, %v7281
    %v7340 = vpack.c.b16 %v7284, %v7283
    %v7341 = vpack.c.b16 %v7286, %v7285
    %v7342 = vpack.c.b16 %v7288, %v7287
    %v7343 = vpack.c.b16 %v7290, %v7289
    %v7344 = vpack.c.b16 %v7292, %v7291
    %v7345 = vpack.c.b16 %v7294, %v7293
    %v7346 = vpack.c.b16 %v7296, %v7295
    %v7347 = vpack.c.b16 %v7298, %v7297
    %v7348 = vpack.c.b16 %v7300, %v7299
    %v7349 = vpack.c.b16 %v7302, %v7301
    %v7350 = vpack.c.b16 %v7304, %v7303
    %v7351 = vpack.c.b16 %v7306, %v7305
    %v7352 = vpack.c.b16 %v7308, %v7307
    %v7353 = vpack.c.b16 %v7310, %v7309
    %v7354 = vpack.c.b16 %v7312, %v7311
    %v7355 = vpack.c.b16 %v7314, %v7313
    %v7356 = vpack.c.b16 %v7316, %v7315
    %v7357 = vpack.c.b16 %v7318, %v7317
    %v7358 = vpack.c.b16 %v7320, %v7319
    %v7359 = vpack.c.b16 %v7322, %v7321
    %v7360 = vpack.c.b16 %v7324, %v7323
    %v7361 = vpack.c.b16 %v7326, %v7325
    %v7362 = vpack.c.b16 %v7328, %v7327
    %v7363 = vpack.c.b16 %v7330, %v7329
    %v7364 = vpack.c.b16 %v7332, %v7331
    %7397 = vmatprep.subr.bf16.mxu0 0
    %7398 = vmatpush1.bf16.msra.mxu0 %v7333
    %7399 = vmatprep.subr.bf16.mxu0 0
    %7400 = vmatpush1.bf16.msra.mxu0 %v7334
    %7401 = vmatprep.subr.bf16.mxu0 0
    %7402 = vmatpush1.bf16.msra.mxu0 %v7335
    %7403 = vmatprep.subr.bf16.mxu0 0
    %7404 = vmatpush1.bf16.msra.mxu0 %v7336
    %7405 = vmatprep.subr.bf16.mxu0 0
    %7406 = vmatpush1.bf16.msra.mxu0 %v7337
    %7407 = vmatprep.subr.bf16.mxu0 0
    %7408 = vmatpush1.bf16.msra.mxu0 %v7338
    %7409 = vmatprep.subr.bf16.mxu0 0
    %7410 = vmatpush1.bf16.msra.mxu0 %v7339
    %7411 = vmatprep.subr.bf16.mxu0 0
    %7412 = vmatpush1.bf16.msra.mxu0 %v7340
    %7413 = vmatprep.subr.bf16.mxu0 0
    %7414 = vmatpush1.bf16.msra.mxu0 %v7341
    %7415 = vmatprep.subr.bf16.mxu0 0
    %7416 = vmatpush1.bf16.msra.mxu0 %v7342
    %7417 = vmatprep.subr.bf16.mxu0 0
    %7418 = vmatpush1.bf16.msra.mxu0 %v7343
    %7419 = vmatprep.subr.bf16.mxu0 0
    %7420 = vmatpush1.bf16.msra.mxu0 %v7344
    %7421 = vmatprep.subr.bf16.mxu0 0
    %7422 = vmatpush1.bf16.msra.mxu0 %v7345
    %7423 = vmatprep.subr.bf16.mxu0 0
    %7424 = vmatpush1.bf16.msra.mxu0 %v7346
    %7425 = vmatprep.subr.bf16.mxu0 0
    %7426 = vmatpush1.bf16.msra.mxu0 %v7347
    %7427 = vmatprep.subr.bf16.mxu0 0
    %7428 = vmatpush1.bf16.msra.mxu0 %v7348
    %7429 = vmatprep.mubr.bf16.mxu0 %v7131
    %7430 = vmatmul.mubr.bf16.gmra.mrb[0].mxu0 %v7130
    %v7431 = vpop.f32.mrb[0].mxu0
    %v7432 = vadd.f32 %v7203, %v7431
    %v7433 = vpop.f32.mrb[0].mxu0
    %v7434 = vpop.f32.mrb[0].mxu0
    %v7435 = vpop.f32.mrb[0].mxu0
    %7436 = vdwg.mxu0
    %7437 = vmatprep.subr.bf16.mxu0 0
    %7438 = vmatpush1.bf16.msra.mxu0 %v7349
    %7439 = vmatprep.subr.bf16.mxu0 0
    %7440 = vmatpush1.bf16.msra.mxu0 %v7350
    %7441 = vmatprep.subr.bf16.mxu0 0
    %7442 = vmatpush1.bf16.msra.mxu0 %v7351
    %7443 = vmatprep.subr.bf16.mxu0 0
    %7444 = vmatpush1.bf16.msra.mxu0 %v7352
    %7445 = vmatprep.subr.bf16.mxu0 0
    %7446 = vmatpush1.bf16.msra.mxu0 %v7353
    %7447 = vmatprep.subr.bf16.mxu0 0
    %7448 = vmatpush1.bf16.msra.mxu0 %v7354
    %7449 = vmatprep.subr.bf16.mxu0 0
    %7450 = vmatpush1.bf16.msra.mxu0 %v7355
    %7451 = vmatprep.subr.bf16.mxu0 0
    %7452 = vmatpush1.bf16.msra.mxu0 %v7356
    %7453 = vmatprep.subr.bf16.mxu0 0
    %7454 = vmatpush1.bf16.msra.mxu0 %v7357
    %7455 = vmatprep.subr.bf16.mxu0 0
    %7456 = vmatpush1.bf16.msra.mxu0 %v7358
    %7457 = vmatprep.subr.bf16.mxu0 0
    %7458 = vmatpush1.bf16.msra.mxu0 %v7359
    %7459 = vmatprep.subr.bf16.mxu0 0
    %7460 = vmatpush1.bf16.msra.mxu0 %v7360
    %7461 = vmatprep.subr.bf16.mxu0 0
    %7462 = vmatpush1.bf16.msra.mxu0 %v7361
    %7463 = vmatprep.subr.bf16.mxu0 0
    %7464 = vmatpush1.bf16.msra.mxu0 %v7362
    %7465 = vmatprep.subr.bf16.mxu0 0
    %7466 = vmatpush1.bf16.msra.mxu0 %v7363
    %7467 = vmatprep.subr.bf16.mxu0 0
    %7468 = vmatpush1.bf16.msra.mxu0 %v7364
    %7469 = vmatprep.mubr.bf16.mxu0 %v7133
    %7470 = vmatmul.mubr.bf16.gmra.mrb[0].mxu0 %v7132
    %v7471 = vpop.f32.mrb[0].mxu0
    %v7472 = vadd.f32 %v7432, %v7471
    %v7473 = vpop.f32.mrb[0].mxu0
    %v7474 = vpop.f32.mrb[0].mxu0
    %v7475 = vpop.f32.mrb[0].mxu0
    %7476 = vdwg.mxu0
    %v7477 = vpack.c.bf16 %v7472, %v7472
    %7478 = vst [vmem:[%s7] sm:$0x1] %v7477
    // Predicated region
    $region54: #{adda_discriminator_forward.1} parent=1 // pred_check
      _
    $region55: #{adda_discriminator_forward.1} parent=1 // pred_check_branch
      %7480 = sbr.rel (0) target = $region57
    $region56: #{adda_discriminator_forward.1} parent=1 // pred_region
      _
    $region57: #{adda_discriminator_forward.1} parent=1 // pred_fallthru
      _
    // Predicated region
    $region58: #{adda_discriminator_forward.1} parent=1 // pred_check
      _
    $region59: #{adda_discriminator_forward.1} parent=1 // pred_check_branch
      %7482 = sbr.rel (0) target = $region61
    $region60: #{adda_discriminator_forward.1} parent=1 // pred_region
      _
    $region61: #{adda_discriminator_forward.1} parent=1 // pred_fallthru
      _
    %7483 = vsyncpa [#allocation3], 1
    %7484 = vsyncpa [#allocation5], 1
    %7485 = vsyncpa [#allocation8], 1
    %7486 = vsyncpa [#allocation11], 1

</llo_original>
